<compile_context>
chip_gen: v7x
topology: tpu7x:2x2x1
jax: 0.10.0
libtpu: 0.0.40
codegen_flags: <defaults>
</compile_context>

<pallas_src>
import functools

import jax
import jax.numpy as jnp
from jax import lax
from jax.experimental import pallas as pl
from jax.experimental.pallas import tpu as pltpu


# ----------------------------------------------------------------------------
# Primary kernel: pure data movement (no MXU).
# ----------------------------------------------------------------------------
def _copy_kernel(x_ref, o_ref, sc_ref, *, bs, s_depth):
    """x_ref: (bt, C, H, W); o_ref: (bt, s_depth, H, bs*W*bs);
    sc_ref: (bs*W*bs, H) VMEM scratch holding one output slab, transposed."""
    bt, _, H, W = x_ref.shape
    for b in range(bt):
        for c in range(s_depth):
            for i in range(bs):
                for j in range(bs):
                    plane = x_ref[b, (i * bs + j) * s_depth + c, :, :]  # (H, W)
                    # Transposed plane: rows are input columns.  Scatter row w
                    # to scratch row q = i*W*bs + w*bs + j (sublane-strided),
                    # which is exactly the lane-dense output column index.
                    sc_ref[pl.ds(i * W * bs + j, W, stride=bs), :] = (
                        jnp.transpose(plane))
            # sc_ref[q, h] == out_slab[h, q]: one transpose per (b, c) and one
            # contiguous, lane-dense store.
            o_ref[b, c, :, :] = jnp.transpose(sc_ref[...])


# ----------------------------------------------------------------------------
# Fallback kernel: exact 0/1 right-placement matmuls (hoisted one-hots, one
# dot per (i, j)).  Only used if the copy kernel cannot be lowered.
# ----------------------------------------------------------------------------
def _onehot_kernel(x_ref, o_ref, *, bs, s_depth):
    bt, _, H, W = x_ref.shape
    Q = bs * W * bs
    w_idx = lax.broadcasted_iota(jnp.int32, (W, Q), 0)   # input column
    q_idx = lax.broadcasted_iota(jnp.int32, (W, Q), 1)   # output slab column
    # One-hot placement matrices, hoisted out of every loop (shared by all b,c).
    place = [[(q_idx == i * W * bs + w_idx * bs + j).astype(jnp.float32)
              for j in range(bs)] for i in range(bs)]
    for b in range(bt):
        for c in range(s_depth):
            acc = jnp.zeros((H, Q), jnp.float32)
            for i in range(bs):
                for j in range(bs):
                    plane = x_ref[b, (i * bs + j) * s_depth + c, :, :]
                    acc = acc + jnp.dot(
                        plane.astype(jnp.float32), place[i][j],
                        preferred_element_type=jnp.float32,
                        precision=lax.Precision.HIGHEST)   # exact for 0/1
            o_ref[b, c, :, :] = acc.astype(o_ref.dtype)


# ----------------------------------------------------------------------------
# Wrappers.
# ----------------------------------------------------------------------------
def _pick_batch_tile(B, per_batch_bytes, budget_bytes=16 * 1024 * 1024,
                     max_tile=8):
    """Largest divisor of B (capped) whose double-buffered blocks fit VMEM."""
    bt = max(1, min(B, max_tile, budget_bytes // max(1, 2 * per_batch_bytes)))
    while B % bt:
        bt -= 1
    return bt


def _run_kernel(kernel_body, x, block_size, with_scratch):
    B, C, H, W = x.shape
    bs = block_size
    assert C % (bs * bs) == 0, "channels must be divisible by block_size**2"
    s_depth = C // (bs * bs)
    Q = bs * W * bs
    itemsize = jnp.dtype(x.dtype).itemsize
    bt = _pick_batch_tile(B, 2 * C * H * W * itemsize)

    kern = functools.partial(kernel_body, bs=bs, s_depth=s_depth)
    scratch = [pltpu.VMEM((Q, H), x.dtype)] if with_scratch else []

    out_flat = pl.pallas_call(
        kern,
        out_shape=jax.ShapeDtypeStruct((B, s_depth, H, Q), x.dtype),
        grid=(B // bt,),
        in_specs=[pl.BlockSpec((bt, C, H, W), lambda g: (g, 0, 0, 0))],
        out_specs=pl.BlockSpec((bt, s_depth, H, Q), lambda g: (g, 0, 0, 0)),
        scratch_shapes=scratch,
        compiler_params=pltpu.CompilerParams(
            dimension_semantics=("parallel",),
            vmem_limit_bytes=32 * 1024 * 1024),
    )(x)
    # Free, contiguous reshape: the (H, bs*W*bs) slab is row-major identical to
    # the (H*bs, W*bs) output.
    return out_flat.reshape(B, s_depth, H * bs, W * bs)


def _depth_to_space_copy(x, block_size):
    return _run_kernel(_copy_kernel, x, block_size, with_scratch=True)


def _depth_to_space_onehot(x, block_size):
    return _run_kernel(_onehot_kernel, x, block_size, with_scratch=False)


def _reference_depth_to_space(x, bs):
    # Pure-JAX transcription of the PyTorch forward (verification only).
    B, C, H, W = x.shape
    s = C // (bs * bs)
    t = jnp.transpose(x, (0, 2, 3, 1)).reshape(B, H, W, bs, bs, s)
    t = jnp.transpose(t, (0, 1, 3, 2, 4, 5)).reshape(B, H * bs, W * bs, s)
    return jnp.transpose(t, (0, 3, 1, 2))


_USE_COPY_KERNEL = None  # resolved once: can this Mosaic build lower the copy kernel?


def _copy_kernel_usable(x, block_size):
    # One-time self-test: the strided-store / in-register-transpose pattern is
    # the fast path, but some Mosaic builds may not lower it; fall back to the
    # exact one-hot MXU kernel in that case.
    # TODO(synk): drop the fallback once strided VMEM stores are universally supported.
    try:
        out = jax.block_until_ready(_depth_to_space_copy(x, block_size))
        return bool(jnp.array_equal(out, _reference_depth_to_space(x, block_size)))
    except Exception:
        return False


def depth_to_space(x, block_size):
    """Pallas TPU implementation of DepthToSpace.forward (NCHW in / NCHW out)."""
    global _USE_COPY_KERNEL
    if _USE_COPY_KERNEL is None:
        _USE_COPY_KERNEL = _copy_kernel_usable(x, block_size)
    if _USE_COPY_KERNEL:
        return _depth_to_space_copy(x, block_size)
    return _depth_to_space_onehot(x, block_size)


if __name__ == "__main__":
    block_size = 2
    x = jax.random.normal(jax.random.PRNGKey(0), (2, 4, 16, 16), jnp.float32)

    out = jax.block_until_ready(depth_to_space(x, block_size))
    ref = jax.block_until_ready(_reference_depth_to_space(x, block_size))

    assert out.shape == (2, 1, 32, 32), out.shape
    assert out.dtype == x.dtype
    assert jnp.allclose(out, ref, atol=1e-6, rtol=1e-6), "mismatch vs reference"
    print("KERNEL_OK")
</pallas_src>

<mosaic_0001>
module attributes {stable_mosaic.version = 11 : i64} {
  func.func @_copy_kernel(%arg0: i32, %arg1: memref<2x4x16x16xf32, #tpu.memory_space<vmem>>, %arg2: memref<2x1x16x64xf32, #tpu.memory_space<vmem>>, %arg3: memref<64x16xf32, #tpu.memory_space<vmem>>) attributes {dimension_semantics = [#tpu.dimension_semantics<parallel>], iteration_bounds = array<i64: 1>, scalar_prefetch = 0 : i64, scratch_operands = 1 : i64, tpu.core_type = #tpu.core_type<tc>, window_params = [{transform_indices = @transform_0, window_bounds = array<i64: 2, 4, 16, 16>}, {transform_indices = @transform_1, window_bounds = array<i64: 2, 1, 16, 64>}]} {
    %c0 = arith.constant 0 : index
    %c0_0 = arith.constant 0 : index
    %c0_1 = arith.constant 0 : index
    %c0_2 = arith.constant 0 : index
    %0 = vector.load %arg1[%c0, %c0_0, %c0_1, %c0_2] : memref<2x4x16x16xf32, #tpu.memory_space<vmem>>, vector<1x1x16x16xf32>
    %1 = vector.shape_cast %0 : vector<1x1x16x16xf32> to vector<16x16xf32>
    %2 = tpu.transpose %1, [1, 0] : vector<16x16xf32> -> vector<16x16xf32>
    %c0_3 = arith.constant 0 : index
    %c0_4 = arith.constant 0 : index
    %3 = tpu.strided_load %arg3[%c0_3, %c0_4] {strides = array<i32: 2, 1>} : memref<64x16xf32, #tpu.memory_space<vmem>>, vector<16x16xf32>
    tpu.strided_store %arg3[%c0_3, %c0_4], %2 {strides = array<i32: 2, 1>} : memref<64x16xf32, #tpu.memory_space<vmem>>, vector<16x16xf32>
    %c0_5 = arith.constant 0 : index
    %c1 = arith.constant 1 : index
    %c0_6 = arith.constant 0 : index
    %c0_7 = arith.constant 0 : index
    %4 = vector.load %arg1[%c0_5, %c1, %c0_6, %c0_7] : memref<2x4x16x16xf32, #tpu.memory_space<vmem>>, vector<1x1x16x16xf32>
    %5 = vector.shape_cast %4 : vector<1x1x16x16xf32> to vector<16x16xf32>
    %6 = tpu.transpose %5, [1, 0] : vector<16x16xf32> -> vector<16x16xf32>
    %c1_8 = arith.constant 1 : index
    %c0_9 = arith.constant 0 : index
    %7 = tpu.strided_load %arg3[%c1_8, %c0_9] {strides = array<i32: 2, 1>} : memref<64x16xf32, #tpu.memory_space<vmem>>, vector<16x16xf32>
    tpu.strided_store %arg3[%c1_8, %c0_9], %6 {strides = array<i32: 2, 1>} : memref<64x16xf32, #tpu.memory_space<vmem>>, vector<16x16xf32>
    %c0_10 = arith.constant 0 : index
    %c2 = arith.constant 2 : index
    %c0_11 = arith.constant 0 : index
    %c0_12 = arith.constant 0 : index
    %8 = vector.load %arg1[%c0_10, %c2, %c0_11, %c0_12] : memref<2x4x16x16xf32, #tpu.memory_space<vmem>>, vector<1x1x16x16xf32>
    %9 = vector.shape_cast %8 : vector<1x1x16x16xf32> to vector<16x16xf32>
    %10 = tpu.transpose %9, [1, 0] : vector<16x16xf32> -> vector<16x16xf32>
    %c32 = arith.constant 32 : index
    %c0_13 = arith.constant 0 : index
    %11 = tpu.strided_load %arg3[%c32, %c0_13] {strides = array<i32: 2, 1>} : memref<64x16xf32, #tpu.memory_space<vmem>>, vector<16x16xf32>
    tpu.strided_store %arg3[%c32, %c0_13], %10 {strides = array<i32: 2, 1>} : memref<64x16xf32, #tpu.memory_space<vmem>>, vector<16x16xf32>
    %c0_14 = arith.constant 0 : index
    %c3 = arith.constant 3 : index
    %c0_15 = arith.constant 0 : index
    %c0_16 = arith.constant 0 : index
    %12 = vector.load %arg1[%c0_14, %c3, %c0_15, %c0_16] : memref<2x4x16x16xf32, #tpu.memory_space<vmem>>, vector<1x1x16x16xf32>
    %13 = vector.shape_cast %12 : vector<1x1x16x16xf32> to vector<16x16xf32>
    %14 = tpu.transpose %13, [1, 0] : vector<16x16xf32> -> vector<16x16xf32>
    %c33 = arith.constant 33 : index
    %c0_17 = arith.constant 0 : index
    %15 = tpu.strided_load %arg3[%c33, %c0_17] {strides = array<i32: 2, 1>} : memref<64x16xf32, #tpu.memory_space<vmem>>, vector<16x16xf32>
    tpu.strided_store %arg3[%c33, %c0_17], %14 {strides = array<i32: 2, 1>} : memref<64x16xf32, #tpu.memory_space<vmem>>, vector<16x16xf32>
    %c0_18 = arith.constant 0 : index
    %c0_19 = arith.constant 0 : index
    %16 = vector.load %arg3[%c0_18, %c0_19] : memref<64x16xf32, #tpu.memory_space<vmem>>, vector<64x16xf32>
    %17 = tpu.transpose %16, [1, 0] : vector<64x16xf32> -> vector<16x64xf32>
    %c0_20 = arith.constant 0 : index
    %c0_21 = arith.constant 0 : index
    %c0_22 = arith.constant 0 : index
    %c0_23 = arith.constant 0 : index
    %18 = vector.load %arg2[%c0_20, %c0_21, %c0_22, %c0_23] : memref<2x1x16x64xf32, #tpu.memory_space<vmem>>, vector<1x1x16x64xf32>
    %19 = vector.shape_cast %18 : vector<1x1x16x64xf32> to vector<16x64xf32>
    %20 = vector.shape_cast %17 : vector<16x64xf32> to vector<1x1x16x64xf32>
    tpu.vector_store %arg2[%c0_20, %c0_21, %c0_22, %c0_23], %20 {strides = array<i32>} : memref<2x1x16x64xf32, #tpu.memory_space<vmem>>, vector<1x1x16x64xf32>,
    %c1_24 = arith.constant 1 : index
    %c0_25 = arith.constant 0 : index
    %c0_26 = arith.constant 0 : index
    %c0_27 = arith.constant 0 : index
    %21 = vector.load %arg1[%c1_24, %c0_25, %c0_26, %c0_27] : memref<2x4x16x16xf32, #tpu.memory_space<vmem>>, vector<1x1x16x16xf32>
    %22 = vector.shape_cast %21 : vector<1x1x16x16xf32> to vector<16x16xf32>
    %23 = tpu.transpose %22, [1, 0] : vector<16x16xf32> -> vector<16x16xf32>
    %c0_28 = arith.constant 0 : index
    %c0_29 = arith.constant 0 : index
    %24 = tpu.strided_load %arg3[%c0_28, %c0_29] {strides = array<i32: 2, 1>} : memref<64x16xf32, #tpu.memory_space<vmem>>, vector<16x16xf32>
    tpu.strided_store %arg3[%c0_28, %c0_29], %23 {strides = array<i32: 2, 1>} : memref<64x16xf32, #tpu.memory_space<vmem>>, vector<16x16xf32>
    %c1_30 = arith.constant 1 : index
    %c1_31 = arith.constant 1 : index
    %c0_32 = arith.constant 0 : index
    %c0_33 = arith.constant 0 : index
    %25 = vector.load %arg1[%c1_30, %c1_31, %c0_32, %c0_33] : memref<2x4x16x16xf32, #tpu.memory_space<vmem>>, vector<1x1x16x16xf32>
    %26 = vector.shape_cast %25 : vector<1x1x16x16xf32> to vector<16x16xf32>
    %27 = tpu.transpose %26, [1, 0] : vector<16x16xf32> -> vector<16x16xf32>
    %c1_34 = arith.constant 1 : index
    %c0_35 = arith.constant 0 : index
    %28 = tpu.strided_load %arg3[%c1_34, %c0_35] {strides = array<i32: 2, 1>} : memref<64x16xf32, #tpu.memory_space<vmem>>, vector<16x16xf32>
    tpu.strided_store %arg3[%c1_34, %c0_35], %27 {strides = array<i32: 2, 1>} : memref<64x16xf32, #tpu.memory_space<vmem>>, vector<16x16xf32>
    %c1_36 = arith.constant 1 : index
    %c2_37 = arith.constant 2 : index
    %c0_38 = arith.constant 0 : index
    %c0_39 = arith.constant 0 : index
    %29 = vector.load %arg1[%c1_36, %c2_37, %c0_38, %c0_39] : memref<2x4x16x16xf32, #tpu.memory_space<vmem>>, vector<1x1x16x16xf32>
    %30 = vector.shape_cast %29 : vector<1x1x16x16xf32> to vector<16x16xf32>
    %31 = tpu.transpose %30, [1, 0] : vector<16x16xf32> -> vector<16x16xf32>
    %c32_40 = arith.constant 32 : index
    %c0_41 = arith.constant 0 : index
    %32 = tpu.strided_load %arg3[%c32_40, %c0_41] {strides = array<i32: 2, 1>} : memref<64x16xf32, #tpu.memory_space<vmem>>, vector<16x16xf32>
    tpu.strided_store %arg3[%c32_40, %c0_41], %31 {strides = array<i32: 2, 1>} : memref<64x16xf32, #tpu.memory_space<vmem>>, vector<16x16xf32>
    %c1_42 = arith.constant 1 : index
    %c3_43 = arith.constant 3 : index
    %c0_44 = arith.constant 0 : index
    %c0_45 = arith.constant 0 : index
    %33 = vector.load %arg1[%c1_42, %c3_43, %c0_44, %c0_45] : memref<2x4x16x16xf32, #tpu.memory_space<vmem>>, vector<1x1x16x16xf32>
    %34 = vector.shape_cast %33 : vector<1x1x16x16xf32> to vector<16x16xf32>
    %35 = tpu.transpose %34, [1, 0] : vector<16x16xf32> -> vector<16x16xf32>
    %c33_46 = arith.constant 33 : index
    %c0_47 = arith.constant 0 : index
    %36 = tpu.strided_load %arg3[%c33_46, %c0_47] {strides = array<i32: 2, 1>} : memref<64x16xf32, #tpu.memory_space<vmem>>, vector<16x16xf32>
    tpu.strided_store %arg3[%c33_46, %c0_47], %35 {strides = array<i32: 2, 1>} : memref<64x16xf32, #tpu.memory_space<vmem>>, vector<16x16xf32>
    %c0_48 = arith.constant 0 : index
    %c0_49 = arith.constant 0 : index
    %37 = vector.load %arg3[%c0_48, %c0_49] : memref<64x16xf32, #tpu.memory_space<vmem>>, vector<64x16xf32>
    %38 = tpu.transpose %37, [1, 0] : vector<64x16xf32> -> vector<16x64xf32>
    %c1_50 = arith.constant 1 : index
    %c0_51 = arith.constant 0 : index
    %c0_52 = arith.constant 0 : index
    %c0_53 = arith.constant 0 : index
    %39 = vector.load %arg2[%c1_50, %c0_51, %c0_52, %c0_53] : memref<2x1x16x64xf32, #tpu.memory_space<vmem>>, vector<1x1x16x64xf32>
    %40 = vector.shape_cast %39 : vector<1x1x16x64xf32> to vector<16x64xf32>
    %41 = vector.shape_cast %38 : vector<16x64xf32> to vector<1x1x16x64xf32>
    tpu.vector_store %arg2[%c1_50, %c0_51, %c0_52, %c0_53], %41 {strides = array<i32>} : memref<2x1x16x64xf32, #tpu.memory_space<vmem>>, vector<1x1x16x64xf32>,
    return
  }
  func.func @transform_0(%arg0: i32) -> (i32, i32, i32, i32) {
    %c0_i32 = arith.constant 0 : i32
    %c0_i32_0 = arith.constant 0 : i32
    %c0_i32_1 = arith.constant 0 : i32
    %c0_i32_2 = arith.constant 0 : i32
    return %arg0, %c0_i32, %c0_i32_0, %c0_i32_1 : i32, i32, i32, i32
  }
  func.func @transform_1(%arg0: i32) -> (i32, i32, i32, i32) {
    %c0_i32 = arith.constant 0 : i32
    %c0_i32_0 = arith.constant 0 : i32
    %c0_i32_1 = arith.constant 0 : i32
    %c0_i32_2 = arith.constant 0 : i32
    return %arg0, %c0_i32, %c0_i32_0, %c0_i32_1 : i32, i32, i32, i32
  }
}

module attributes {stable_mosaic.version = 11 : i64} {
  func.func @_onehot_kernel(%arg0: i32, %arg1: memref<2x4x16x16xf32, #tpu.memory_space<vmem>>, %arg2: memref<2x1x16x64xf32, #tpu.memory_space<vmem>>) attributes {dimension_semantics = [#tpu.dimension_semantics<parallel>], iteration_bounds = array<i64: 1>, scalar_prefetch = 0 : i64, scratch_operands = 0 : i64, tpu.core_type = #tpu.core_type<tc>, window_params = [{transform_indices = @transform_0, window_bounds = array<i64: 2, 4, 16, 16>}, {transform_indices = @transform_1, window_bounds = array<i64: 2, 1, 16, 64>}]} {
    %0 = tpu.iota {dimensions = array<i32: 0>} : vector<16x64xi32>
    %1 = tpu.iota {dimensions = array<i32: 1>} : vector<16x64xi32>
    %c2_i32 = arith.constant 2 : i32
    %2 = vector.broadcast %c2_i32 : i32 to vector<16x64xi32>
    %3 = arith.muli %0, %2 : vector<16x64xi32>
    %c0_i32 = arith.constant 0 : i32
    %4 = vector.broadcast %c0_i32 : i32 to vector<16x64xi32>
    %5 = arith.addi %4, %3 : vector<16x64xi32>
    %c0_i32_0 = arith.constant 0 : i32
    %6 = vector.broadcast %c0_i32_0 : i32 to vector<16x64xi32>
    %7 = arith.addi %5, %6 : vector<16x64xi32>
    %8 = arith.cmpi eq, %1, %7 : vector<16x64xi32>
    %9 = arith.extui %8 : vector<16x64xi1> to vector<16x64xi32>
    %10 = arith.sitofp %9 : vector<16x64xi32> to vector<16x64xf32>
    %c2_i32_1 = arith.constant 2 : i32
    %11 = vector.broadcast %c2_i32_1 : i32 to vector<16x64xi32>
    %12 = arith.muli %0, %11 : vector<16x64xi32>
    %c0_i32_2 = arith.constant 0 : i32
    %13 = vector.broadcast %c0_i32_2 : i32 to vector<16x64xi32>
    %14 = arith.addi %13, %12 : vector<16x64xi32>
    %c1_i32 = arith.constant 1 : i32
    %15 = vector.broadcast %c1_i32 : i32 to vector<16x64xi32>
    %16 = arith.addi %14, %15 : vector<16x64xi32>
    %17 = arith.cmpi eq, %1, %16 : vector<16x64xi32>
    %18 = arith.extui %17 : vector<16x64xi1> to vector<16x64xi32>
    %19 = arith.sitofp %18 : vector<16x64xi32> to vector<16x64xf32>
    %c2_i32_3 = arith.constant 2 : i32
    %20 = vector.broadcast %c2_i32_3 : i32 to vector<16x64xi32>
    %21 = arith.muli %0, %20 : vector<16x64xi32>
    %c32_i32 = arith.constant 32 : i32
    %22 = vector.broadcast %c32_i32 : i32 to vector<16x64xi32>
    %23 = arith.addi %22, %21 : vector<16x64xi32>
    %c0_i32_4 = arith.constant 0 : i32
    %24 = vector.broadcast %c0_i32_4 : i32 to vector<16x64xi32>
    %25 = arith.addi %23, %24 : vector<16x64xi32>
    %26 = arith.cmpi eq, %1, %25 : vector<16x64xi32>
    %27 = arith.extui %26 : vector<16x64xi1> to vector<16x64xi32>
    %28 = arith.sitofp %27 : vector<16x64xi32> to vector<16x64xf32>
    %c2_i32_5 = arith.constant 2 : i32
    %29 = vector.broadcast %c2_i32_5 : i32 to vector<16x64xi32>
    %30 = arith.muli %0, %29 : vector<16x64xi32>
    %c32_i32_6 = arith.constant 32 : i32
    %31 = vector.broadcast %c32_i32_6 : i32 to vector<16x64xi32>
    %32 = arith.addi %31, %30 : vector<16x64xi32>
    %c1_i32_7 = arith.constant 1 : i32
    %33 = vector.broadcast %c1_i32_7 : i32 to vector<16x64xi32>
    %34 = arith.addi %32, %33 : vector<16x64xi32>
    %35 = arith.cmpi eq, %1, %34 : vector<16x64xi32>
    %36 = arith.extui %35 : vector<16x64xi1> to vector<16x64xi32>
    %37 = arith.sitofp %36 : vector<16x64xi32> to vector<16x64xf32>
    %cst = arith.constant 0.000000e+00 : f32
    %38 = vector.broadcast %cst : f32 to vector<16x64xf32>
    %c0 = arith.constant 0 : index
    %c0_8 = arith.constant 0 : index
    %c0_9 = arith.constant 0 : index
    %c0_10 = arith.constant 0 : index
    %39 = vector.load %arg1[%c0, %c0_8, %c0_9, %c0_10] : memref<2x4x16x16xf32, #tpu.memory_space<vmem>>, vector<1x1x16x16xf32>
    %40 = vector.shape_cast %39 : vector<1x1x16x16xf32> to vector<16x16xf32>
    %cst_11 = arith.constant dense<0.000000e+00> : vector<16x64xf32>
    %41 = tpu.matmul %40, %10, %cst_11 {dimension_numbers = #tpu.dot_dimension_numbers<[1], [0], [0], [1], [0, 0, 1, 1], [], []>, precision = #tpu.contract_precision<fp32>} : vector<16x16xf32>, vector<16x64xf32>, vector<16x64xf32> -> vector<16x64xf32>
    %42 = arith.addf %38, %41 : vector<16x64xf32>
    %c0_12 = arith.constant 0 : index
    %c1 = arith.constant 1 : index
    %c0_13 = arith.constant 0 : index
    %c0_14 = arith.constant 0 : index
    %43 = vector.load %arg1[%c0_12, %c1, %c0_13, %c0_14] : memref<2x4x16x16xf32, #tpu.memory_space<vmem>>, vector<1x1x16x16xf32>
    %44 = vector.shape_cast %43 : vector<1x1x16x16xf32> to vector<16x16xf32>
    %cst_15 = arith.constant dense<0.000000e+00> : vector<16x64xf32>
    %45 = tpu.matmul %44, %19, %cst_15 {dimension_numbers = #tpu.dot_dimension_numbers<[1], [0], [0], [1], [0, 0, 1, 1], [], []>, precision = #tpu.contract_precision<fp32>} : vector<16x16xf32>, vector<16x64xf32>, vector<16x64xf32> -> vector<16x64xf32>
    %46 = arith.addf %42, %45 : vector<16x64xf32>
    %c0_16 = arith.constant 0 : index
    %c2 = arith.constant 2 : index
    %c0_17 = arith.constant 0 : index
    %c0_18 = arith.constant 0 : index
    %47 = vector.load %arg1[%c0_16, %c2, %c0_17, %c0_18] : memref<2x4x16x16xf32, #tpu.memory_space<vmem>>, vector<1x1x16x16xf32>
    %48 = vector.shape_cast %47 : vector<1x1x16x16xf32> to vector<16x16xf32>
    %cst_19 = arith.constant dense<0.000000e+00> : vector<16x64xf32>
    %49 = tpu.matmul %48, %28, %cst_19 {dimension_numbers = #tpu.dot_dimension_numbers<[1], [0], [0], [1], [0, 0, 1, 1], [], []>, precision = #tpu.contract_precision<fp32>} : vector<16x16xf32>, vector<16x64xf32>, vector<16x64xf32> -> vector<16x64xf32>
    %50 = arith.addf %46, %49 : vector<16x64xf32>
    %c0_20 = arith.constant 0 : index
    %c3 = arith.constant 3 : index
    %c0_21 = arith.constant 0 : index
    %c0_22 = arith.constant 0 : index
    %51 = vector.load %arg1[%c0_20, %c3, %c0_21, %c0_22] : memref<2x4x16x16xf32, #tpu.memory_space<vmem>>, vector<1x1x16x16xf32>
    %52 = vector.shape_cast %51 : vector<1x1x16x16xf32> to vector<16x16xf32>
    %cst_23 = arith.constant dense<0.000000e+00> : vector<16x64xf32>
    %53 = tpu.matmul %52, %37, %cst_23 {dimension_numbers = #tpu.dot_dimension_numbers<[1], [0], [0], [1], [0, 0, 1, 1], [], []>, precision = #tpu.contract_precision<fp32>} : vector<16x16xf32>, vector<16x64xf32>, vector<16x64xf32> -> vector<16x64xf32>
    %54 = arith.addf %50, %53 : vector<16x64xf32>
    %c0_24 = arith.constant 0 : index
    %c0_25 = arith.constant 0 : index
    %c0_26 = arith.constant 0 : index
    %c0_27 = arith.constant 0 : index
    %55 = vector.load %arg2[%c0_24, %c0_25, %c0_26, %c0_27] : memref<2x1x16x64xf32, #tpu.memory_space<vmem>>, vector<1x1x16x64xf32>
    %56 = vector.shape_cast %55 : vector<1x1x16x64xf32> to vector<16x64xf32>
    %57 = vector.shape_cast %54 : vector<16x64xf32> to vector<1x1x16x64xf32>
    tpu.vector_store %arg2[%c0_24, %c0_25, %c0_26, %c0_27], %57 {strides = array<i32>} : memref<2x1x16x64xf32, #tpu.memory_space<vmem>>, vector<1x1x16x64xf32>,
    %cst_28 = arith.constant 0.000000e+00 : f32
    %58 = vector.broadcast %cst_28 : f32 to vector<16x64xf32>
    %c1_29 = arith.constant 1 : index
    %c0_30 = arith.constant 0 : index
    %c0_31 = arith.constant 0 : index
    %c0_32 = arith.constant 0 : index
    %59 = vector.load %arg1[%c1_29, %c0_30, %c0_31, %c0_32] : memref<2x4x16x16xf32, #tpu.memory_space<vmem>>, vector<1x1x16x16xf32>
    %60 = vector.shape_cast %59 : vector<1x1x16x16xf32> to vector<16x16xf32>
    %cst_33 = arith.constant dense<0.000000e+00> : vector<16x64xf32>
    %61 = tpu.matmul %60, %10, %cst_33 {dimension_numbers = #tpu.dot_dimension_numbers<[1], [0], [0], [1], [0, 0, 1, 1], [], []>, precision = #tpu.contract_precision<fp32>} : vector<16x16xf32>, vector<16x64xf32>, vector<16x64xf32> -> vector<16x64xf32>
    %62 = arith.addf %58, %61 : vector<16x64xf32>
    %c1_34 = arith.constant 1 : index
    %c1_35 = arith.constant 1 : index
    %c0_36 = arith.constant 0 : index
    %c0_37 = arith.constant 0 : index
    %63 = vector.load %arg1[%c1_34, %c1_35, %c0_36, %c0_37] : memref<2x4x16x16xf32, #tpu.memory_space<vmem>>, vector<1x1x16x16xf32>
    %64 = vector.shape_cast %63 : vector<1x1x16x16xf32> to vector<16x16xf32>
    %cst_38 = arith.constant dense<0.000000e+00> : vector<16x64xf32>
    %65 = tpu.matmul %64, %19, %cst_38 {dimension_numbers = #tpu.dot_dimension_numbers<[1], [0], [0], [1], [0, 0, 1, 1], [], []>, precision = #tpu.contract_precision<fp32>} : vector<16x16xf32>, vector<16x64xf32>, vector<16x64xf32> -> vector<16x64xf32>
    %66 = arith.addf %62, %65 : vector<16x64xf32>
    %c1_39 = arith.constant 1 : index
    %c2_40 = arith.constant 2 : index
    %c0_41 = arith.constant 0 : index
    %c0_42 = arith.constant 0 : index
    %67 = vector.load %arg1[%c1_39, %c2_40, %c0_41, %c0_42] : memref<2x4x16x16xf32, #tpu.memory_space<vmem>>, vector<1x1x16x16xf32>
    %68 = vector.shape_cast %67 : vector<1x1x16x16xf32> to vector<16x16xf32>
    %cst_43 = arith.constant dense<0.000000e+00> : vector<16x64xf32>
    %69 = tpu.matmul %68, %28, %cst_43 {dimension_numbers = #tpu.dot_dimension_numbers<[1], [0], [0], [1], [0, 0, 1, 1], [], []>, precision = #tpu.contract_precision<fp32>} : vector<16x16xf32>, vector<16x64xf32>, vector<16x64xf32> -> vector<16x64xf32>
    %70 = arith.addf %66, %69 : vector<16x64xf32>
    %c1_44 = arith.constant 1 : index
    %c3_45 = arith.constant 3 : index
    %c0_46 = arith.constant 0 : index
    %c0_47 = arith.constant 0 : index
    %71 = vector.load %arg1[%c1_44, %c3_45, %c0_46, %c0_47] : memref<2x4x16x16xf32, #tpu.memory_space<vmem>>, vector<1x1x16x16xf32>
    %72 = vector.shape_cast %71 : vector<1x1x16x16xf32> to vector<16x16xf32>
    %cst_48 = arith.constant dense<0.000000e+00> : vector<16x64xf32>
    %73 = tpu.matmul %72, %37, %cst_48 {dimension_numbers = #tpu.dot_dimension_numbers<[1], [0], [0], [1], [0, 0, 1, 1], [], []>, precision = #tpu.contract_precision<fp32>} : vector<16x16xf32>, vector<16x64xf32>, vector<16x64xf32> -> vector<16x64xf32>
    %74 = arith.addf %70, %73 : vector<16x64xf32>
    %c1_49 = arith.constant 1 : index
    %c0_50 = arith.constant 0 : index
    %c0_51 = arith.constant 0 : index
    %c0_52 = arith.constant 0 : index
    %75 = vector.load %arg2[%c1_49, %c0_50, %c0_51, %c0_52] : memref<2x1x16x64xf32, #tpu.memory_space<vmem>>, vector<1x1x16x64xf32>
    %76 = vector.shape_cast %75 : vector<1x1x16x64xf32> to vector<16x64xf32>
    %77 = vector.shape_cast %74 : vector<16x64xf32> to vector<1x1x16x64xf32>
    tpu.vector_store %arg2[%c1_49, %c0_50, %c0_51, %c0_52], %77 {strides = array<i32>} : memref<2x1x16x64xf32, #tpu.memory_space<vmem>>, vector<1x1x16x64xf32>,
    return
  }
  func.func @transform_0(%arg0: i32) -> (i32, i32, i32, i32) {
    %c0_i32 = arith.constant 0 : i32
    %c0_i32_0 = arith.constant 0 : i32
    %c0_i32_1 = arith.constant 0 : i32
    %c0_i32_2 = arith.constant 0 : i32
    return %arg0, %c0_i32, %c0_i32_0, %c0_i32_1 : i32, i32, i32, i32
  }
  func.func @transform_1(%arg0: i32) -> (i32, i32, i32, i32) {
    %c0_i32 = arith.constant 0 : i32
    %c0_i32_0 = arith.constant 0 : i32
    %c0_i32_1 = arith.constant 0 : i32
    %c0_i32_2 = arith.constant 0 : i32
    return %arg0, %c0_i32, %c0_i32_0, %c0_i32_1 : i32, i32, i32, i32
  }
}

</mosaic_0001>

<llo_original>
// kernel: tpu_custom_call.1
$region0: #{tpu_custom_call.1}
  #allocation0 [shape = 'u32[]', space=smem, size = 0x4, offset = 0x4, fixed_abs, tag = 'smem constant byte address 0x4 - core index']
  #allocation1 [shape = 'u32[144,128]{1,0:T(1,128)}', space=vmem, size = 0x12000, scoped, tag = 'internal scratch']
  #allocation2 [shape = 'f32[64,16]{1,0:T(8,128)}', space=vmem, size = 0x8000, scoped, tag = 'scratch operand']
  %s0 = inlined_call_operand.hbm [shape: f32[2,4,16,16], index: 0, kind: input, shape index: {}]
  %s1 = inlined_call_operand.hbm [shape: f32[2,1,16,64], index: 1, kind: output, shape index: {}]
  %s2 = sld [smem:[#allocation0]]
  $region18: #{tpu_custom_call.1} parent=0
    _
  %s4 = ssub.s32 1, %s2
  %s5 = scalar_select 0, %s4, %s2
  $region1: #{tpu_custom_call.1} parent=0
    #allocation3 [shape = 'u8[65536]{0}', space=vmem, size = 0x10000, scoped, tag = 'input window, operand 0, single buffered']
    #allocation4 [shape = 's32[1]{0}', space=sflag, size = 0x4, scoped, tag = 'scoped memory for tpu_custom_call.1']
    #allocation5 [shape = 's32[1]{0}', space=sflag, size = 0x4, scoped, tag = 'scoped memory for tpu_custom_call.1']
    #allocation6 [shape = 'u8[16384]{0}', space=vmem, size = 0x4000, scoped, tag = 'output window, operand 0, single buffered']
    %6 = vsyncpa [#allocation4], 0
    %7 = vsyncpa [#allocation5], 0
    // Predicated region
    $region2: #{tpu_custom_call.1} parent=1 // pred_check
      _
    $region3: #{tpu_custom_call.1} parent=1 // pred_check_branch
      %9 = sbr.rel (0) target = $region5
    $region4: #{tpu_custom_call.1} parent=1 // pred_region
      %s11 = ssub.s32 2048, 2048
      %12 = vsyncadd [#allocation4], %s11
      %s13 = sshll.u32 [#allocation3], 4
      %s14 = int_to_ptr.vmem [resolvable:$true] %s13
      %19 = dma.hbm_to_vmem [thread:$0]  %s0, 2048, %s14, [#allocation4], 128, 128, 8
    $region5: #{tpu_custom_call.1} parent=1 // pred_fallthru
      _
    // Predicated region
    $region6: #{tpu_custom_call.1} parent=1 // pred_check
      _
    $region7: #{tpu_custom_call.1} parent=1 // pred_check_branch
      %21 = sbr.rel (0) target = $region9
    $region8: #{tpu_custom_call.1} parent=1 // pred_region
      %22 = dma.done [#allocation4], 2048
    $region9: #{tpu_custom_call.1} parent=1 // pred_fallthru
      _
    %v23 = vld [vmem:[#allocation3] sm:$0xff]
    %v24 = vld [vmem:[#allocation3 + $0x8] sm:$0xff]
    %25 = vxpose.xlu0.b32.start [1/16] %v23, 128
    %26 = vxpose.xlu0.b32.cont [2/16] %v24, 128
    %27 = vxpose.xlu0.b32.cont [3/16] 0.0, 128
    %28 = vxpose.xlu0.b32.cont [4/16] 0.0, 128
    %29 = vxpose.xlu0.b32.cont [5/16] 0.0, 128
    %30 = vxpose.xlu0.b32.cont [6/16] 0.0, 128
    %31 = vxpose.xlu0.b32.cont [7/16] 0.0, 128
    %32 = vxpose.xlu0.b32.cont [8/16] 0.0, 128
    %33 = vxpose.xlu0.b32.cont [9/16] 0.0, 128
    %34 = vxpose.xlu0.b32.cont [10/16] 0.0, 128
    %35 = vxpose.xlu0.b32.cont [11/16] 0.0, 128
    %36 = vxpose.xlu0.b32.cont [12/16] 0.0, 128
    %37 = vxpose.xlu0.b32.cont [13/16] 0.0, 128
    %38 = vxpose.xlu0.b32.cont [14/16] 0.0, 128
    %39 = vxpose.xlu0.b32.cont [15/16] 0.0, 128
    %40 = vxpose.xlu0.b32.end [16/16] 0.0, 128
    %v41 = vpop.trf.xlu0
    %v42 = vpop.trf.xlu0
    %v43 = vpop.trf.xlu0
    %v44 = vpop.trf.xlu0
    %v45 = vpop.trf.xlu0
    %v46 = vpop.trf.xlu0
    %v47 = vpop.trf.xlu0
    %v48 = vpop.trf.xlu0
    %v49 = vpop.trf.xlu0
    %v50 = vpop.trf.xlu0
    %v51 = vpop.trf.xlu0
    %v52 = vpop.trf.xlu0
    %v53 = vpop.trf.xlu0
    %v54 = vpop.trf.xlu0
    %v55 = vpop.trf.xlu0
    %v56 = vpop.trf.xlu0
    %57 = vst [vmem:[#allocation2] ss:$2 sm:$0xff] %v41
    %s58 = scalar_lea.vmem [#allocation2], 16
    %59 = vst [vmem:[%s58] ss:$2 sm:$0xff] %v42
    %s60 = scalar_lea.vmem [#allocation3], 16
    %v61 = vld [vmem:[%s60] sm:$0xff]
    %v62 = vld [vmem:[%s60 + $0x8] sm:$0xff]
    %63 = vxpose.xlu0.b32.start [1/16] %v61, 128
    %64 = vxpose.xlu0.b32.cont [2/16] %v62, 128
    %65 = vxpose.xlu0.b32.cont [3/16] 0.0, 128
    %66 = vxpose.xlu0.b32.cont [4/16] 0.0, 128
    %67 = vxpose.xlu0.b32.cont [5/16] 0.0, 128
    %68 = vxpose.xlu0.b32.cont [6/16] 0.0, 128
    %69 = vxpose.xlu0.b32.cont [7/16] 0.0, 128
    %70 = vxpose.xlu0.b32.cont [8/16] 0.0, 128
    %71 = vxpose.xlu0.b32.cont [9/16] 0.0, 128
    %72 = vxpose.xlu0.b32.cont [10/16] 0.0, 128
    %73 = vxpose.xlu0.b32.cont [11/16] 0.0, 128
    %74 = vxpose.xlu0.b32.cont [12/16] 0.0, 128
    %75 = vxpose.xlu0.b32.cont [13/16] 0.0, 128
    %76 = vxpose.xlu0.b32.cont [14/16] 0.0, 128
    %77 = vxpose.xlu0.b32.cont [15/16] 0.0, 128
    %78 = vxpose.xlu0.b32.end [16/16] 0.0, 128
    %v79 = vpop.trf.xlu0
    %v80 = vpop.trf.xlu0
    %v81 = vpop.trf.xlu0
    %v82 = vpop.trf.xlu0
    %v83 = vpop.trf.xlu0
    %v84 = vpop.trf.xlu0
    %v85 = vpop.trf.xlu0
    %v86 = vpop.trf.xlu0
    %v87 = vpop.trf.xlu0
    %v88 = vpop.trf.xlu0
    %v89 = vpop.trf.xlu0
    %v90 = vpop.trf.xlu0
    %v91 = vpop.trf.xlu0
    %v92 = vpop.trf.xlu0
    %v93 = vpop.trf.xlu0
    %v94 = vpop.trf.xlu0
    %s95 = scalar_lea.vmem [#allocation2], 1
    %96 = vst [vmem:[%s95] ss:$2 sm:$0xff] %v79
    %s97 = scalar_lea.vmem [#allocation2], 17
    %98 = vst [vmem:[%s97] ss:$2 sm:$0xff] %v80
    %s99 = scalar_lea.vmem [#allocation3], 32
    %v100 = vld [vmem:[%s99] sm:$0xff]
    %v101 = vld [vmem:[%s99 + $0x8] sm:$0xff]
    %102 = vxpose.xlu0.b32.start [1/16] %v100, 128
    %103 = vxpose.xlu0.b32.cont [2/16] %v101, 128
    %104 = vxpose.xlu0.b32.cont [3/16] 0.0, 128
    %105 = vxpose.xlu0.b32.cont [4/16] 0.0, 128
    %106 = vxpose.xlu0.b32.cont [5/16] 0.0, 128
    %107 = vxpose.xlu0.b32.cont [6/16] 0.0, 128
    %108 = vxpose.xlu0.b32.cont [7/16] 0.0, 128
    %109 = vxpose.xlu0.b32.cont [8/16] 0.0, 128
    %110 = vxpose.xlu0.b32.cont [9/16] 0.0, 128
    %111 = vxpose.xlu0.b32.cont [10/16] 0.0, 128
    %112 = vxpose.xlu0.b32.cont [11/16] 0.0, 128
    %113 = vxpose.xlu0.b32.cont [12/16] 0.0, 128
    %114 = vxpose.xlu0.b32.cont [13/16] 0.0, 128
    %115 = vxpose.xlu0.b32.cont [14/16] 0.0, 128
    %116 = vxpose.xlu0.b32.cont [15/16] 0.0, 128
    %117 = vxpose.xlu0.b32.end [16/16] 0.0, 128
    %v118 = vpop.trf.xlu0
    %v119 = vpop.trf.xlu0
    %v120 = vpop.trf.xlu0
    %v121 = vpop.trf.xlu0
    %v122 = vpop.trf.xlu0
    %v123 = vpop.trf.xlu0
    %v124 = vpop.trf.xlu0
    %v125 = vpop.trf.xlu0
    %v126 = vpop.trf.xlu0
    %v127 = vpop.trf.xlu0
    %v128 = vpop.trf.xlu0
    %v129 = vpop.trf.xlu0
    %v130 = vpop.trf.xlu0
    %v131 = vpop.trf.xlu0
    %v132 = vpop.trf.xlu0
    %v133 = vpop.trf.xlu0
    %s134 = scalar_lea.vmem [#allocation2], 32
    %135 = vst [vmem:[%s134] ss:$2 sm:$0xff] %v118
    %s136 = scalar_lea.vmem [#allocation2], 48
    %137 = vst [vmem:[%s136] ss:$2 sm:$0xff] %v119
    %s138 = scalar_lea.vmem [#allocation3], 48
    %v139 = vld [vmem:[%s138] sm:$0xff]
    %v140 = vld [vmem:[%s138 + $0x8] sm:$0xff]
    %141 = vxpose.xlu0.b32.start [1/16] %v139, 128
    %142 = vxpose.xlu0.b32.cont [2/16] %v140, 128
    %143 = vxpose.xlu0.b32.cont [3/16] 0.0, 128
    %144 = vxpose.xlu0.b32.cont [4/16] 0.0, 128
    %145 = vxpose.xlu0.b32.cont [5/16] 0.0, 128
    %146 = vxpose.xlu0.b32.cont [6/16] 0.0, 128
    %147 = vxpose.xlu0.b32.cont [7/16] 0.0, 128
    %148 = vxpose.xlu0.b32.cont [8/16] 0.0, 128
    %149 = vxpose.xlu0.b32.cont [9/16] 0.0, 128
    %150 = vxpose.xlu0.b32.cont [10/16] 0.0, 128
    %151 = vxpose.xlu0.b32.cont [11/16] 0.0, 128
    %152 = vxpose.xlu0.b32.cont [12/16] 0.0, 128
    %153 = vxpose.xlu0.b32.cont [13/16] 0.0, 128
    %154 = vxpose.xlu0.b32.cont [14/16] 0.0, 128
    %155 = vxpose.xlu0.b32.cont [15/16] 0.0, 128
    %156 = vxpose.xlu0.b32.end [16/16] 0.0, 128
    %v157 = vpop.trf.xlu0
    %v158 = vpop.trf.xlu0
    %v159 = vpop.trf.xlu0
    %v160 = vpop.trf.xlu0
    %v161 = vpop.trf.xlu0
    %v162 = vpop.trf.xlu0
    %v163 = vpop.trf.xlu0
    %v164 = vpop.trf.xlu0
    %v165 = vpop.trf.xlu0
    %v166 = vpop.trf.xlu0
    %v167 = vpop.trf.xlu0
    %v168 = vpop.trf.xlu0
    %v169 = vpop.trf.xlu0
    %v170 = vpop.trf.xlu0
    %v171 = vpop.trf.xlu0
    %v172 = vpop.trf.xlu0
    %s173 = scalar_lea.vmem [#allocation2], 33
    %174 = vst [vmem:[%s173] ss:$2 sm:$0xff] %v157
    %s175 = scalar_lea.vmem [#allocation2], 49
    %176 = vst [vmem:[%s175] ss:$2 sm:$0xff] %v158
    %v177 = vld [vmem:[#allocation2] sm:$0xff]
    %v178 = vld [vmem:[#allocation2 + $0x8] sm:$0xff]
    %v179 = vld [vmem:[#allocation2 + $0x10] sm:$0xff]
    %v180 = vld [vmem:[#allocation2 + $0x18] sm:$0xff]
    %v181 = vld [vmem:[#allocation2 + $0x20] sm:$0xff]
    %v182 = vld [vmem:[#allocation2 + $0x28] sm:$0xff]
    %v183 = vld [vmem:[#allocation2 + $0x30] sm:$0xff]
    %v184 = vld [vmem:[#allocation2 + $0x38] sm:$0xff]
    %185 = vxpose.xlu0.b32.start [1/16] %v177, 128
    %186 = vxpose.xlu0.b32.cont [2/16] %v178, 128
    %187 = vxpose.xlu0.b32.cont [3/16] %v179, 128
    %188 = vxpose.xlu0.b32.cont [4/16] %v180, 128
    %189 = vxpose.xlu0.b32.cont [5/16] %v181, 128
    %190 = vxpose.xlu0.b32.cont [6/16] %v182, 128
    %191 = vxpose.xlu0.b32.cont [7/16] %v183, 128
    %192 = vxpose.xlu0.b32.cont [8/16] %v184, 128
    %193 = vxpose.xlu0.b32.cont [9/16] 0.0, 128
    %194 = vxpose.xlu0.b32.cont [10/16] 0.0, 128
    %195 = vxpose.xlu0.b32.cont [11/16] 0.0, 128
    %196 = vxpose.xlu0.b32.cont [12/16] 0.0, 128
    %197 = vxpose.xlu0.b32.cont [13/16] 0.0, 128
    %198 = vxpose.xlu0.b32.cont [14/16] 0.0, 128
    %199 = vxpose.xlu0.b32.cont [15/16] 0.0, 128
    %200 = vxpose.xlu0.b32.end [16/16] 0.0, 128
    %v201 = vpop.trf.xlu0
    %v202 = vpop.trf.xlu0
    %v203 = vpop.trf.xlu0
    %v204 = vpop.trf.xlu0
    %v205 = vpop.trf.xlu0
    %v206 = vpop.trf.xlu0
    %v207 = vpop.trf.xlu0
    %v208 = vpop.trf.xlu0
    %v209 = vpop.trf.xlu0
    %v210 = vpop.trf.xlu0
    %v211 = vpop.trf.xlu0
    %v212 = vpop.trf.xlu0
    %v213 = vpop.trf.xlu0
    %v214 = vpop.trf.xlu0
    %v215 = vpop.trf.xlu0
    %v216 = vpop.trf.xlu0
    %vm217 = vcmask 523264
    %218 = vst.msk [vmem:[#allocation6] sm:$0xff] %vm217, %v201
    %219 = vst.msk [vmem:[#allocation6 + $0x8] sm:$0xff] %vm217, %v202
    %s220 = scalar_lea.vmem [#allocation3], 64
    %v221 = vld [vmem:[%s220] sm:$0xff]
    %v222 = vld [vmem:[%s220 + $0x8] sm:$0xff]
    %223 = vxpose.xlu0.b32.start [1/16] %v221, 128
    %224 = vxpose.xlu0.b32.cont [2/16] %v222, 128
    %225 = vxpose.xlu0.b32.cont [3/16] 0.0, 128
    %226 = vxpose.xlu0.b32.cont [4/16] 0.0, 128
    %227 = vxpose.xlu0.b32.cont [5/16] 0.0, 128
    %228 = vxpose.xlu0.b32.cont [6/16] 0.0, 128
    %229 = vxpose.xlu0.b32.cont [7/16] 0.0, 128
    %230 = vxpose.xlu0.b32.cont [8/16] 0.0, 128
    %231 = vxpose.xlu0.b32.cont [9/16] 0.0, 128
    %232 = vxpose.xlu0.b32.cont [10/16] 0.0, 128
    %233 = vxpose.xlu0.b32.cont [11/16] 0.0, 128
    %234 = vxpose.xlu0.b32.cont [12/16] 0.0, 128
    %235 = vxpose.xlu0.b32.cont [13/16] 0.0, 128
    %236 = vxpose.xlu0.b32.cont [14/16] 0.0, 128
    %237 = vxpose.xlu0.b32.cont [15/16] 0.0, 128
    %238 = vxpose.xlu0.b32.end [16/16] 0.0, 128
    %v239 = vpop.trf.xlu0
    %v240 = vpop.trf.xlu0
    %v241 = vpop.trf.xlu0
    %v242 = vpop.trf.xlu0
    %v243 = vpop.trf.xlu0
    %v244 = vpop.trf.xlu0
    %v245 = vpop.trf.xlu0
    %v246 = vpop.trf.xlu0
    %v247 = vpop.trf.xlu0
    %v248 = vpop.trf.xlu0
    %v249 = vpop.trf.xlu0
    %v250 = vpop.trf.xlu0
    %v251 = vpop.trf.xlu0
    %v252 = vpop.trf.xlu0
    %v253 = vpop.trf.xlu0
    %v254 = vpop.trf.xlu0
    %255 = vst [vmem:[#allocation2] ss:$2 sm:$0xff] %v239
    %256 = vst [vmem:[%s58] ss:$2 sm:$0xff] %v240
    %s257 = scalar_lea.vmem [#allocation3], 80
    %v258 = vld [vmem:[%s257] sm:$0xff]
    %v259 = vld [vmem:[%s257 + $0x8] sm:$0xff]
    %260 = vxpose.xlu0.b32.start [1/16] %v258, 128
    %261 = vxpose.xlu0.b32.cont [2/16] %v259, 128
    %262 = vxpose.xlu0.b32.cont [3/16] 0.0, 128
    %263 = vxpose.xlu0.b32.cont [4/16] 0.0, 128
    %264 = vxpose.xlu0.b32.cont [5/16] 0.0, 128
    %265 = vxpose.xlu0.b32.cont [6/16] 0.0, 128
    %266 = vxpose.xlu0.b32.cont [7/16] 0.0, 128
    %267 = vxpose.xlu0.b32.cont [8/16] 0.0, 128
    %268 = vxpose.xlu0.b32.cont [9/16] 0.0, 128
    %269 = vxpose.xlu0.b32.cont [10/16] 0.0, 128
    %270 = vxpose.xlu0.b32.cont [11/16] 0.0, 128
    %271 = vxpose.xlu0.b32.cont [12/16] 0.0, 128
    %272 = vxpose.xlu0.b32.cont [13/16] 0.0, 128
    %273 = vxpose.xlu0.b32.cont [14/16] 0.0, 128
    %274 = vxpose.xlu0.b32.cont [15/16] 0.0, 128
    %275 = vxpose.xlu0.b32.end [16/16] 0.0, 128
    %v276 = vpop.trf.xlu0
    %v277 = vpop.trf.xlu0
    %v278 = vpop.trf.xlu0
    %v279 = vpop.trf.xlu0
    %v280 = vpop.trf.xlu0
    %v281 = vpop.trf.xlu0
    %v282 = vpop.trf.xlu0
    %v283 = vpop.trf.xlu0
    %v284 = vpop.trf.xlu0
    %v285 = vpop.trf.xlu0
    %v286 = vpop.trf.xlu0
    %v287 = vpop.trf.xlu0
    %v288 = vpop.trf.xlu0
    %v289 = vpop.trf.xlu0
    %v290 = vpop.trf.xlu0
    %v291 = vpop.trf.xlu0
    %292 = vst [vmem:[%s95] ss:$2 sm:$0xff] %v276
    %293 = vst [vmem:[%s97] ss:$2 sm:$0xff] %v277
    %s294 = scalar_lea.vmem [#allocation3], 96
    %v295 = vld [vmem:[%s294] sm:$0xff]
    %v296 = vld [vmem:[%s294 + $0x8] sm:$0xff]
    %297 = vxpose.xlu0.b32.start [1/16] %v295, 128
    %298 = vxpose.xlu0.b32.cont [2/16] %v296, 128
    %299 = vxpose.xlu0.b32.cont [3/16] 0.0, 128
    %300 = vxpose.xlu0.b32.cont [4/16] 0.0, 128
    %301 = vxpose.xlu0.b32.cont [5/16] 0.0, 128
    %302 = vxpose.xlu0.b32.cont [6/16] 0.0, 128
    %303 = vxpose.xlu0.b32.cont [7/16] 0.0, 128
    %304 = vxpose.xlu0.b32.cont [8/16] 0.0, 128
    %305 = vxpose.xlu0.b32.cont [9/16] 0.0, 128
    %306 = vxpose.xlu0.b32.cont [10/16] 0.0, 128
    %307 = vxpose.xlu0.b32.cont [11/16] 0.0, 128
    %308 = vxpose.xlu0.b32.cont [12/16] 0.0, 128
    %309 = vxpose.xlu0.b32.cont [13/16] 0.0, 128
    %310 = vxpose.xlu0.b32.cont [14/16] 0.0, 128
    %311 = vxpose.xlu0.b32.cont [15/16] 0.0, 128
    %312 = vxpose.xlu0.b32.end [16/16] 0.0, 128
    %v313 = vpop.trf.xlu0
    %v314 = vpop.trf.xlu0
    %v315 = vpop.trf.xlu0
    %v316 = vpop.trf.xlu0
    %v317 = vpop.trf.xlu0
    %v318 = vpop.trf.xlu0
    %v319 = vpop.trf.xlu0
    %v320 = vpop.trf.xlu0
    %v321 = vpop.trf.xlu0
    %v322 = vpop.trf.xlu0
    %v323 = vpop.trf.xlu0
    %v324 = vpop.trf.xlu0
    %v325 = vpop.trf.xlu0
    %v326 = vpop.trf.xlu0
    %v327 = vpop.trf.xlu0
    %v328 = vpop.trf.xlu0
    %329 = vst [vmem:[%s134] ss:$2 sm:$0xff] %v313
    %330 = vst [vmem:[%s136] ss:$2 sm:$0xff] %v314
    %s331 = scalar_lea.vmem [#allocation3], 112
    %v332 = vld [vmem:[%s331] sm:$0xff]
    %v333 = vld [vmem:[%s331 + $0x8] sm:$0xff]
    %334 = vxpose.xlu0.b32.start [1/16] %v332, 128
    %335 = vxpose.xlu0.b32.cont [2/16] %v333, 128
    %336 = vxpose.xlu0.b32.cont [3/16] 0.0, 128
    %337 = vxpose.xlu0.b32.cont [4/16] 0.0, 128
    %338 = vxpose.xlu0.b32.cont [5/16] 0.0, 128
    %339 = vxpose.xlu0.b32.cont [6/16] 0.0, 128
    %340 = vxpose.xlu0.b32.cont [7/16] 0.0, 128
    %341 = vxpose.xlu0.b32.cont [8/16] 0.0, 128
    %342 = vxpose.xlu0.b32.cont [9/16] 0.0, 128
    %343 = vxpose.xlu0.b32.cont [10/16] 0.0, 128
    %344 = vxpose.xlu0.b32.cont [11/16] 0.0, 128
    %345 = vxpose.xlu0.b32.cont [12/16] 0.0, 128
    %346 = vxpose.xlu0.b32.cont [13/16] 0.0, 128
    %347 = vxpose.xlu0.b32.cont [14/16] 0.0, 128
    %348 = vxpose.xlu0.b32.cont [15/16] 0.0, 128
    %349 = vxpose.xlu0.b32.end [16/16] 0.0, 128
    %v350 = vpop.trf.xlu0
    %v351 = vpop.trf.xlu0
    %v352 = vpop.trf.xlu0
    %v353 = vpop.trf.xlu0
    %v354 = vpop.trf.xlu0
    %v355 = vpop.trf.xlu0
    %v356 = vpop.trf.xlu0
    %v357 = vpop.trf.xlu0
    %v358 = vpop.trf.xlu0
    %v359 = vpop.trf.xlu0
    %v360 = vpop.trf.xlu0
    %v361 = vpop.trf.xlu0
    %v362 = vpop.trf.xlu0
    %v363 = vpop.trf.xlu0
    %v364 = vpop.trf.xlu0
    %v365 = vpop.trf.xlu0
    %366 = vst [vmem:[%s173] ss:$2 sm:$0xff] %v350
    %367 = vst [vmem:[%s175] ss:$2 sm:$0xff] %v351
    %v368 = vld [vmem:[#allocation2] sm:$0xff]
    %v369 = vld [vmem:[#allocation2 + $0x8] sm:$0xff]
    %v370 = vld [vmem:[#allocation2 + $0x10] sm:$0xff]
    %v371 = vld [vmem:[#allocation2 + $0x18] sm:$0xff]
    %v372 = vld [vmem:[#allocation2 + $0x20] sm:$0xff]
    %v373 = vld [vmem:[#allocation2 + $0x28] sm:$0xff]
    %v374 = vld [vmem:[#allocation2 + $0x30] sm:$0xff]
    %v375 = vld [vmem:[#allocation2 + $0x38] sm:$0xff]
    %376 = vxpose.xlu0.b32.start [1/16] %v368, 128
    %377 = vxpose.xlu0.b32.cont [2/16] %v369, 128
    %378 = vxpose.xlu0.b32.cont [3/16] %v370, 128
    %379 = vxpose.xlu0.b32.cont [4/16] %v371, 128
    %380 = vxpose.xlu0.b32.cont [5/16] %v372, 128
    %381 = vxpose.xlu0.b32.cont [6/16] %v373, 128
    %382 = vxpose.xlu0.b32.cont [7/16] %v374, 128
    %383 = vxpose.xlu0.b32.cont [8/16] %v375, 128
    %384 = vxpose.xlu0.b32.cont [9/16] 0.0, 128
    %385 = vxpose.xlu0.b32.cont [10/16] 0.0, 128
    %386 = vxpose.xlu0.b32.cont [11/16] 0.0, 128
    %387 = vxpose.xlu0.b32.cont [12/16] 0.0, 128
    %388 = vxpose.xlu0.b32.cont [13/16] 0.0, 128
    %389 = vxpose.xlu0.b32.cont [14/16] 0.0, 128
    %390 = vxpose.xlu0.b32.cont [15/16] 0.0, 128
    %391 = vxpose.xlu0.b32.end [16/16] 0.0, 128
    %v392 = vpop.trf.xlu0
    %v393 = vpop.trf.xlu0
    %v394 = vpop.trf.xlu0
    %v395 = vpop.trf.xlu0
    %v396 = vpop.trf.xlu0
    %v397 = vpop.trf.xlu0
    %v398 = vpop.trf.xlu0
    %v399 = vpop.trf.xlu0
    %v400 = vpop.trf.xlu0
    %v401 = vpop.trf.xlu0
    %v402 = vpop.trf.xlu0
    %v403 = vpop.trf.xlu0
    %v404 = vpop.trf.xlu0
    %v405 = vpop.trf.xlu0
    %v406 = vpop.trf.xlu0
    %v407 = vpop.trf.xlu0
    %s408 = scalar_lea.vmem [#allocation6], 16
    %409 = vst.msk [vmem:[%s408] sm:$0xff] %vm217, %v392
    %410 = vst.msk [vmem:[%s408 + $0x8] sm:$0xff] %vm217, %v393
    // Predicated region
    $region10: #{tpu_custom_call.1} parent=1 // pred_check
      _
    $region11: #{tpu_custom_call.1} parent=1 // pred_check_branch
      %412 = sbr.rel (0) target = $region13
    $region12: #{tpu_custom_call.1} parent=1 // pred_region
      %s414 = ssub.s32 512, 512
      %415 = vsyncadd [#allocation5], %s414
      %s416 = sshll.u32 [#allocation6], 4
      %s417 = int_to_ptr.vmem [resolvable:$true] %s416
      %422 = dma.vmem_to_hbm [thread:$0]  %s417, 512, %s1, [#allocation5], 128, 128, 8
    $region13: #{tpu_custom_call.1} parent=1 // pred_fallthru
      _
    // Predicated region
    $region14: #{tpu_custom_call.1} parent=1 // pred_check
      _
    $region15: #{tpu_custom_call.1} parent=1 // pred_check_branch
      %424 = sbr.rel (0) target = $region17
    $region16: #{tpu_custom_call.1} parent=1 // pred_region
      %425 = dma.done [#allocation5], 512
    $region17: #{tpu_custom_call.1} parent=1 // pred_fallthru
      _
    %426 = vsyncpa [#allocation4], 1
    %427 = vsyncpa [#allocation5], 1

// kernel: tpu_custom_call.1
$region0: #{tpu_custom_call.1}
  #allocation0 [shape = 'u32[]', space=smem, size = 0x4, offset = 0x4, fixed_abs, tag = 'smem constant byte address 0x4 - core index']
  #allocation1 [shape = 'u32[144,128]{1,0:T(1,128)}', space=vmem, size = 0x12000, scoped, tag = 'internal scratch']
  %s0 = inlined_call_operand.hbm [shape: f32[2,4,16,16], index: 0, kind: input, shape index: {}]
  %s1 = inlined_call_operand.hbm [shape: f32[2,1,16,64], index: 1, kind: output, shape index: {}]
  %s2 = sld [smem:[#allocation0]]
  $region18: #{tpu_custom_call.1} parent=0
    _
  %s4 = ssub.s32 1, %s2
  %s5 = scalar_select 0, %s4, %s2
  $region1: #{tpu_custom_call.1} parent=0
    #allocation2 [shape = 'u8[65536]{0}', space=vmem, size = 0x10000, scoped, tag = 'input window, operand 0, single buffered']
    #allocation3 [shape = 's32[1]{0}', space=sflag, size = 0x4, scoped, tag = 'scoped memory for tpu_custom_call.1']
    #allocation4 [shape = 's32[1]{0}', space=sflag, size = 0x4, scoped, tag = 'scoped memory for tpu_custom_call.1']
    #allocation5 [shape = 'u8[16384]{0}', space=vmem, size = 0x4000, scoped, tag = 'output window, operand 0, single buffered']
    %6 = vsyncpa [#allocation3], 0
    %7 = vsyncpa [#allocation4], 0
    // Predicated region
    $region2: #{tpu_custom_call.1} parent=1 // pred_check
      _
    $region3: #{tpu_custom_call.1} parent=1 // pred_check_branch
      %9 = sbr.rel (0) target = $region5
    $region4: #{tpu_custom_call.1} parent=1 // pred_region
      %s11 = ssub.s32 2048, 2048
      %12 = vsyncadd [#allocation3], %s11
      %s13 = sshll.u32 [#allocation2], 4
      %s14 = int_to_ptr.vmem [resolvable:$true] %s13
      %19 = dma.hbm_to_vmem [thread:$0]  %s0, 2048, %s14, [#allocation3], 128, 128, 8
    $region5: #{tpu_custom_call.1} parent=1 // pred_fallthru
      _
    // Predicated region
    $region6: #{tpu_custom_call.1} parent=1 // pred_check
      _
    $region7: #{tpu_custom_call.1} parent=1 // pred_check_branch
      %21 = sbr.rel (0) target = $region9
    $region8: #{tpu_custom_call.1} parent=1 // pred_region
      %22 = dma.done [#allocation3], 2048
    $region9: #{tpu_custom_call.1} parent=1 // pred_fallthru
      _
    %v23 = vlaneseq
    %v24 = vshrl.u32 %v23, 7
    %v25 = vadd.s32 %v24, 8
    %v26 = vlaneseq
    %v27 = vand.u32 %v26, 127
    %v28 = vmul.u32 %v24, 2
    %v29 = vmul.u32 %v25, 2
    %vm30 = vcmp.eq.s32.totalorder %v27, %v28
    %vm31 = vcmp.eq.s32.totalorder %v27, %v29
    %v32 = vsel %vm30, 1, 0
    %v33 = vsel %vm31, 1, 0
    %v34 = vcvt.s32.f32 %v32
    %v35 = vcvt.s32.f32 %v33
    %v36 = vadd.s32 %v28, 1
    %v37 = vadd.s32 %v29, 1
    %vm38 = vcmp.eq.s32.totalorder %v27, %v36
    %vm39 = vcmp.eq.s32.totalorder %v27, %v37
    %v40 = vsel %vm38, 1, 0
    %v41 = vsel %vm39, 1, 0
    %v42 = vcvt.s32.f32 %v40
    %v43 = vcvt.s32.f32 %v41
    %v44 = vadd.s32 %v28, 32
    %v45 = vadd.s32 %v29, 32
    %vm46 = vcmp.eq.s32.totalorder %v27, %v44
    %vm47 = vcmp.eq.s32.totalorder %v27, %v45
    %v48 = vsel %vm46, 1, 0
    %v49 = vsel %vm47, 1, 0
    %v50 = vcvt.s32.f32 %v48
    %v51 = vcvt.s32.f32 %v49
    %v52 = vadd.s32 %v44, 1
    %v53 = vadd.s32 %v45, 1
    %vm54 = vcmp.eq.s32.totalorder %v27, %v52
    %vm55 = vcmp.eq.s32.totalorder %v27, %v53
    %v56 = vsel %vm54, 1, 0
    %v57 = vsel %vm55, 1, 0
    %v58 = vcvt.s32.f32 %v56
    %v59 = vcvt.s32.f32 %v57
    %v60 = vld [vmem:[#allocation2] sm:$0xff]
    %v61 = vld [vmem:[#allocation2 + $0x8] sm:$0xff]
    %s62 = scalar_lea.vmem [#allocation2], 16
    %v63 = vld [vmem:[%s62] sm:$0xff]
    %v64 = vld [vmem:[%s62 + $0x8] sm:$0xff]
    %vm65 = vcmask 130048
    %v67 = vsel %vm65, %v63, 0
    %v70 = vsel %vm65, %v64, 0
    %72 = vmatprep.subr.mxu0 0.0
    %v73 = vand.u32 %v42, 4294901760
    %74 = vmatpush1.msra.mxu0 %v73
    %75 = vmatprep.subr.mxu0 0.0
    %v76 = vand.u32 %v43, 4294901760
    %77 = vmatpush1.msra.mxu0 %v76
    %78 = vmatprep.subr.mxu0 0.0
    %79 = vmatpush1.msra.mxu0 0.0
    %80 = vmatprep.subr.mxu0 0.0
    %81 = vmatpush1.msra.mxu0 0.0
    %82 = vmatprep.subr.mxu0 0.0
    %83 = vmatpush1.msra.mxu0 0.0
    %84 = vmatprep.subr.mxu0 0.0
    %85 = vmatpush1.msra.mxu0 0.0
    %86 = vmatprep.subr.mxu0 0.0
    %87 = vmatpush1.msra.mxu0 0.0
    %88 = vmatprep.subr.mxu0 0.0
    %89 = vmatpush1.msra.mxu0 0.0
    %90 = vmatprep.subr.mxu0 0.0
    %91 = vmatpush1.msra.mxu0 0.0
    %92 = vmatprep.subr.mxu0 0.0
    %93 = vmatpush1.msra.mxu0 0.0
    %94 = vmatprep.subr.mxu0 0.0
    %95 = vmatpush1.msra.mxu0 0.0
    %96 = vmatprep.subr.mxu0 0.0
    %97 = vmatpush1.msra.mxu0 0.0
    %98 = vmatprep.subr.mxu0 0.0
    %99 = vmatpush1.msra.mxu0 0.0
    %100 = vmatprep.subr.mxu0 0.0
    %101 = vmatpush1.msra.mxu0 0.0
    %102 = vmatprep.subr.mxu0 0.0
    %103 = vmatpush1.msra.mxu0 0.0
    %104 = vmatprep.subr.mxu0 0.0
    %105 = vmatpush1.msra.mxu0 0.0
    %106 = vmatprep.subr.mxu0 0.0
    %107 = vmatpush1.msra.mxu0 0.0
    %108 = vmatprep.subr.mxu0 0.0
    %109 = vmatpush1.msra.mxu0 0.0
    %110 = vmatprep.subr.mxu0 0.0
    %111 = vmatpush1.msra.mxu0 0.0
    %112 = vmatprep.subr.mxu0 0.0
    %113 = vmatpush1.msra.mxu0 0.0
    %114 = vmatprep.subr.mxu0 0.0
    %115 = vmatpush1.msra.mxu0 0.0
    %116 = vmatprep.subr.mxu0 0.0
    %117 = vmatpush1.msra.mxu0 0.0
    %118 = vmatprep.subr.mxu0 0.0
    %119 = vmatpush1.msra.mxu0 0.0
    %120 = vmatprep.subr.mxu0 0.0
    %121 = vmatpush1.msra.mxu0 0.0
    %122 = vmatprep.subr.mxu0 0.0
    %123 = vmatpush1.msra.mxu0 0.0
    %124 = vmatprep.subr.mxu0 0.0
    %125 = vmatpush1.msra.mxu0 0.0
    %126 = vmatprep.subr.mxu0 0.0
    %127 = vmatpush1.msra.mxu0 0.0
    %128 = vmatprep.subr.mxu0 0.0
    %129 = vmatpush1.msra.mxu0 0.0
    %130 = vmatprep.subr.mxu0 0.0
    %131 = vmatpush1.msra.mxu0 0.0
    %132 = vmatprep.subr.mxu0 0.0
    %133 = vmatpush1.msra.mxu0 0.0
    %134 = vmatprep.subr.mxu0 0.0
    %135 = vmatpush1.msra.mxu0 0.0
    %136 = vmatprep.subr.mxu0 0.0
    %137 = vmatpush1.msra.mxu0 0.0
    %138 = vmatprep.mubr.f32.mxu0 0.0
    %v139 = vand.u32 %v67, 4294901760
    %v140 = vsub.f32 %v67, %v139
    %v141 = vand.u32 %v140, 4294901760
    %v142 = vsub.f32 %v140, %v141
    %v143 = vand.u32 %v142, 4294901760
    %144 = vmatmul.mubr.f32.gmra.mrb[0].mxu0 %v143
    %v145 = vpop.f32.mrb[0].mxu0
    %v146 = vadd.f32 0.0, %v145
    %v147 = vpop.f32.mrb[0].mxu0
    %148 = vmatprep.mubr.f32.mxu0 0.0
    %v149 = vand.u32 %v70, 4294901760
    %v150 = vsub.f32 %v70, %v149
    %v151 = vand.u32 %v150, 4294901760
    %v152 = vsub.f32 %v150, %v151
    %v153 = vand.u32 %v152, 4294901760
    %154 = vmatmul.mubr.f32.gmra.mrb[0].mxu0 %v153
    %v155 = vpop.f32.mrb[0].mxu0
    %v156 = vadd.f32 0.0, %v155
    %v157 = vpop.f32.mrb[0].mxu0
    %158 = vdwg.mxu0
    %159 = vmatprep.subr.mxu0 0.0
    %v160 = vand.u32 %v42, 4294901760
    %v161 = vsub.f32 %v42, %v160
    %v162 = vand.u32 %v161, 4294901760
    %v163 = vsub.f32 %v161, %v162
    %v164 = vand.u32 %v163, 4294901760
    %165 = vmatpush1.msra.mxu0 %v164
    %166 = vmatprep.subr.mxu0 0.0
    %v167 = vand.u32 %v43, 4294901760
    %v168 = vsub.f32 %v43, %v167
    %v169 = vand.u32 %v168, 4294901760
    %v170 = vsub.f32 %v168, %v169
    %v171 = vand.u32 %v170, 4294901760
    %172 = vmatpush1.msra.mxu0 %v171
    %173 = vmatprep.subr.mxu0 0.0
    %174 = vmatpush1.msra.mxu0 0.0
    %175 = vmatprep.subr.mxu0 0.0
    %176 = vmatpush1.msra.mxu0 0.0
    %177 = vmatprep.subr.mxu0 0.0
    %178 = vmatpush1.msra.mxu0 0.0
    %179 = vmatprep.subr.mxu0 0.0
    %180 = vmatpush1.msra.mxu0 0.0
    %181 = vmatprep.subr.mxu0 0.0
    %182 = vmatpush1.msra.mxu0 0.0
    %183 = vmatprep.subr.mxu0 0.0
    %184 = vmatpush1.msra.mxu0 0.0
    %185 = vmatprep.subr.mxu0 0.0
    %186 = vmatpush1.msra.mxu0 0.0
    %187 = vmatprep.subr.mxu0 0.0
    %188 = vmatpush1.msra.mxu0 0.0
    %189 = vmatprep.subr.mxu0 0.0
    %190 = vmatpush1.msra.mxu0 0.0
    %191 = vmatprep.subr.mxu0 0.0
    %192 = vmatpush1.msra.mxu0 0.0
    %193 = vmatprep.subr.mxu0 0.0
    %194 = vmatpush1.msra.mxu0 0.0
    %195 = vmatprep.subr.mxu0 0.0
    %196 = vmatpush1.msra.mxu0 0.0
    %197 = vmatprep.subr.mxu0 0.0
    %198 = vmatpush1.msra.mxu0 0.0
    %199 = vmatprep.subr.mxu0 0.0
    %200 = vmatpush1.msra.mxu0 0.0
    %201 = vmatprep.subr.mxu0 0.0
    %202 = vmatpush1.msra.mxu0 0.0
    %203 = vmatprep.subr.mxu0 0.0
    %204 = vmatpush1.msra.mxu0 0.0
    %205 = vmatprep.subr.mxu0 0.0
    %206 = vmatpush1.msra.mxu0 0.0
    %207 = vmatprep.subr.mxu0 0.0
    %208 = vmatpush1.msra.mxu0 0.0
    %209 = vmatprep.subr.mxu0 0.0
    %210 = vmatpush1.msra.mxu0 0.0
    %211 = vmatprep.subr.mxu0 0.0
    %212 = vmatpush1.msra.mxu0 0.0
    %213 = vmatprep.subr.mxu0 0.0
    %214 = vmatpush1.msra.mxu0 0.0
    %215 = vmatprep.subr.mxu0 0.0
    %216 = vmatpush1.msra.mxu0 0.0
    %217 = vmatprep.subr.mxu0 0.0
    %218 = vmatpush1.msra.mxu0 0.0
    %219 = vmatprep.subr.mxu0 0.0
    %220 = vmatpush1.msra.mxu0 0.0
    %221 = vmatprep.subr.mxu0 0.0
    %222 = vmatpush1.msra.mxu0 0.0
    %223 = vmatprep.subr.mxu0 0.0
    %224 = vmatpush1.msra.mxu0 0.0
    %225 = vmatprep.subr.mxu0 0.0
    %226 = vmatpush1.msra.mxu0 0.0
    %227 = vmatprep.subr.mxu0 0.0
    %228 = vmatpush1.msra.mxu0 0.0
    %229 = vmatprep.subr.mxu0 0.0
    %230 = vmatpush1.msra.mxu0 0.0
    %231 = vmatprep.subr.mxu0 0.0
    %232 = vmatpush1.msra.mxu0 0.0
    %233 = vmatprep.mubr.f32.mxu0 0.0
    %v234 = vand.u32 %v67, 4294901760
    %235 = vmatmul.mubr.f32.gmra.mrb[0].mxu0 %v234
    %v236 = vpop.f32.mrb[0].mxu0
    %v237 = vadd.f32 %v146, %v236
    %v238 = vpop.f32.mrb[0].mxu0
    %239 = vmatprep.mubr.f32.mxu0 0.0
    %v240 = vand.u32 %v70, 4294901760
    %241 = vmatmul.mubr.f32.gmra.mrb[0].mxu0 %v240
    %v242 = vpop.f32.mrb[0].mxu0
    %v243 = vadd.f32 %v156, %v242
    %v244 = vpop.f32.mrb[0].mxu0
    %245 = vdwg.mxu0
    %246 = vmatprep.subr.mxu0 0.0
    %v247 = vand.u32 %v42, 4294901760
    %v248 = vsub.f32 %v42, %v247
    %249 = vmatpush1.msra.mxu0 %v248
    %250 = vmatprep.subr.mxu0 0.0
    %v251 = vand.u32 %v43, 4294901760
    %v252 = vsub.f32 %v43, %v251
    %253 = vmatpush1.msra.mxu0 %v252
    %254 = vmatprep.subr.mxu0 0.0
    %255 = vmatpush1.msra.mxu0 0.0
    %256 = vmatprep.subr.mxu0 0.0
    %257 = vmatpush1.msra.mxu0 0.0
    %258 = vmatprep.subr.mxu0 0.0
    %259 = vmatpush1.msra.mxu0 0.0
    %260 = vmatprep.subr.mxu0 0.0
    %261 = vmatpush1.msra.mxu0 0.0
    %262 = vmatprep.subr.mxu0 0.0
    %263 = vmatpush1.msra.mxu0 0.0
    %264 = vmatprep.subr.mxu0 0.0
    %265 = vmatpush1.msra.mxu0 0.0
    %266 = vmatprep.subr.mxu0 0.0
    %267 = vmatpush1.msra.mxu0 0.0
    %268 = vmatprep.subr.mxu0 0.0
    %269 = vmatpush1.msra.mxu0 0.0
    %270 = vmatprep.subr.mxu0 0.0
    %271 = vmatpush1.msra.mxu0 0.0
    %272 = vmatprep.subr.mxu0 0.0
    %273 = vmatpush1.msra.mxu0 0.0
    %274 = vmatprep.subr.mxu0 0.0
    %275 = vmatpush1.msra.mxu0 0.0
    %276 = vmatprep.subr.mxu0 0.0
    %277 = vmatpush1.msra.mxu0 0.0
    %278 = vmatprep.subr.mxu0 0.0
    %279 = vmatpush1.msra.mxu0 0.0
    %280 = vmatprep.subr.mxu0 0.0
    %281 = vmatpush1.msra.mxu0 0.0
    %282 = vmatprep.subr.mxu0 0.0
    %283 = vmatpush1.msra.mxu0 0.0
    %284 = vmatprep.subr.mxu0 0.0
    %285 = vmatpush1.msra.mxu0 0.0
    %286 = vmatprep.subr.mxu0 0.0
    %287 = vmatpush1.msra.mxu0 0.0
    %288 = vmatprep.subr.mxu0 0.0
    %289 = vmatpush1.msra.mxu0 0.0
    %290 = vmatprep.subr.mxu0 0.0
    %291 = vmatpush1.msra.mxu0 0.0
    %292 = vmatprep.subr.mxu0 0.0
    %293 = vmatpush1.msra.mxu0 0.0
    %294 = vmatprep.subr.mxu0 0.0
    %295 = vmatpush1.msra.mxu0 0.0
    %296 = vmatprep.subr.mxu0 0.0
    %297 = vmatpush1.msra.mxu0 0.0
    %298 = vmatprep.subr.mxu0 0.0
    %299 = vmatpush1.msra.mxu0 0.0
    %300 = vmatprep.subr.mxu0 0.0
    %301 = vmatpush1.msra.mxu0 0.0
    %302 = vmatprep.subr.mxu0 0.0
    %303 = vmatpush1.msra.mxu0 0.0
    %304 = vmatprep.subr.mxu0 0.0
    %305 = vmatpush1.msra.mxu0 0.0
    %306 = vmatprep.subr.mxu0 0.0
    %307 = vmatpush1.msra.mxu0 0.0
    %308 = vmatprep.subr.mxu0 0.0
    %309 = vmatpush1.msra.mxu0 0.0
    %310 = vmatprep.subr.mxu0 0.0
    %311 = vmatpush1.msra.mxu0 0.0
    %312 = vmatprep.subr.mxu0 0.0
    %313 = vmatpush1.msra.mxu0 0.0
    %314 = vmatprep.mubr.f32.mxu0 0.0
    %v315 = vand.u32 %v67, 4294901760
    %v316 = vsub.f32 %v67, %v315
    %317 = vmatmul.mubr.f32.gmra.mrb[0].mxu0 %v316
    %v318 = vpop.f32.mrb[0].mxu0
    %v319 = vadd.f32 %v237, %v318
    %v320 = vpop.f32.mrb[0].mxu0
    %321 = vmatprep.mubr.f32.mxu0 0.0
    %v322 = vand.u32 %v70, 4294901760
    %v323 = vsub.f32 %v70, %v322
    %324 = vmatmul.mubr.f32.gmra.mrb[0].mxu0 %v323
    %v325 = vpop.f32.mrb[0].mxu0
    %v326 = vadd.f32 %v243, %v325
    %v327 = vpop.f32.mrb[0].mxu0
    %328 = vdwg.mxu0
    %329 = vmatprep.subr.mxu0 0.0
    %v330 = vand.u32 %v42, 4294901760
    %331 = vmatpush1.msra.mxu0 %v330
    %332 = vmatprep.subr.mxu0 0.0
    %v333 = vand.u32 %v43, 4294901760
    %334 = vmatpush1.msra.mxu0 %v333
    %335 = vmatprep.subr.mxu0 0.0
    %336 = vmatpush1.msra.mxu0 0.0
    %337 = vmatprep.subr.mxu0 0.0
    %338 = vmatpush1.msra.mxu0 0.0
    %339 = vmatprep.subr.mxu0 0.0
    %340 = vmatpush1.msra.mxu0 0.0
    %341 = vmatprep.subr.mxu0 0.0
    %342 = vmatpush1.msra.mxu0 0.0
    %343 = vmatprep.subr.mxu0 0.0
    %344 = vmatpush1.msra.mxu0 0.0
    %345 = vmatprep.subr.mxu0 0.0
    %346 = vmatpush1.msra.mxu0 0.0
    %347 = vmatprep.subr.mxu0 0.0
    %348 = vmatpush1.msra.mxu0 0.0
    %349 = vmatprep.subr.mxu0 0.0
    %350 = vmatpush1.msra.mxu0 0.0
    %351 = vmatprep.subr.mxu0 0.0
    %352 = vmatpush1.msra.mxu0 0.0
    %353 = vmatprep.subr.mxu0 0.0
    %354 = vmatpush1.msra.mxu0 0.0
    %355 = vmatprep.subr.mxu0 0.0
    %356 = vmatpush1.msra.mxu0 0.0
    %357 = vmatprep.subr.mxu0 0.0
    %358 = vmatpush1.msra.mxu0 0.0
    %359 = vmatprep.subr.mxu0 0.0
    %360 = vmatpush1.msra.mxu0 0.0
    %361 = vmatprep.subr.mxu0 0.0
    %362 = vmatpush1.msra.mxu0 0.0
    %363 = vmatprep.subr.mxu0 0.0
    %364 = vmatpush1.msra.mxu0 0.0
    %365 = vmatprep.subr.mxu0 0.0
    %366 = vmatpush1.msra.mxu0 0.0
    %367 = vmatprep.subr.mxu0 0.0
    %368 = vmatpush1.msra.mxu0 0.0
    %369 = vmatprep.subr.mxu0 0.0
    %370 = vmatpush1.msra.mxu0 0.0
    %371 = vmatprep.subr.mxu0 0.0
    %372 = vmatpush1.msra.mxu0 0.0
    %373 = vmatprep.subr.mxu0 0.0
    %374 = vmatpush1.msra.mxu0 0.0
    %375 = vmatprep.subr.mxu0 0.0
    %376 = vmatpush1.msra.mxu0 0.0
    %377 = vmatprep.subr.mxu0 0.0
    %378 = vmatpush1.msra.mxu0 0.0
    %379 = vmatprep.subr.mxu0 0.0
    %380 = vmatpush1.msra.mxu0 0.0
    %381 = vmatprep.subr.mxu0 0.0
    %382 = vmatpush1.msra.mxu0 0.0
    %383 = vmatprep.subr.mxu0 0.0
    %384 = vmatpush1.msra.mxu0 0.0
    %385 = vmatprep.subr.mxu0 0.0
    %386 = vmatpush1.msra.mxu0 0.0
    %387 = vmatprep.subr.mxu0 0.0
    %388 = vmatpush1.msra.mxu0 0.0
    %389 = vmatprep.subr.mxu0 0.0
    %390 = vmatpush1.msra.mxu0 0.0
    %391 = vmatprep.subr.mxu0 0.0
    %392 = vmatpush1.msra.mxu0 0.0
    %393 = vmatprep.subr.mxu0 0.0
    %394 = vmatpush1.msra.mxu0 0.0
    %395 = vmatprep.mubr.f32.mxu0 0.0
    %v396 = vand.u32 %v67, 4294901760
    %v397 = vsub.f32 %v67, %v396
    %v398 = vand.u32 %v397, 4294901760
    %399 = vmatmul.mubr.f32.gmra.mrb[0].mxu0 %v398
    %v400 = vpop.f32.mrb[0].mxu0
    %v401 = vadd.f32 %v319, %v400
    %v402 = vpop.f32.mrb[0].mxu0
    %403 = vmatprep.mubr.f32.mxu0 0.0
    %v404 = vand.u32 %v70, 4294901760
    %v405 = vsub.f32 %v70, %v404
    %v406 = vand.u32 %v405, 4294901760
    %407 = vmatmul.mubr.f32.gmra.mrb[0].mxu0 %v406
    %v408 = vpop.f32.mrb[0].mxu0
    %v409 = vadd.f32 %v326, %v408
    %v410 = vpop.f32.mrb[0].mxu0
    %411 = vdwg.mxu0
    %412 = vmatprep.subr.mxu0 0.0
    %v413 = vand.u32 %v42, 4294901760
    %v414 = vsub.f32 %v42, %v413
    %v415 = vand.u32 %v414, 4294901760
    %416 = vmatpush1.msra.mxu0 %v415
    %417 = vmatprep.subr.mxu0 0.0
    %v418 = vand.u32 %v43, 4294901760
    %v419 = vsub.f32 %v43, %v418
    %v420 = vand.u32 %v419, 4294901760
    %421 = vmatpush1.msra.mxu0 %v420
    %422 = vmatprep.subr.mxu0 0.0
    %423 = vmatpush1.msra.mxu0 0.0
    %424 = vmatprep.subr.mxu0 0.0
    %425 = vmatpush1.msra.mxu0 0.0
    %426 = vmatprep.subr.mxu0 0.0
    %427 = vmatpush1.msra.mxu0 0.0
    %428 = vmatprep.subr.mxu0 0.0
    %429 = vmatpush1.msra.mxu0 0.0
    %430 = vmatprep.subr.mxu0 0.0
    %431 = vmatpush1.msra.mxu0 0.0
    %432 = vmatprep.subr.mxu0 0.0
    %433 = vmatpush1.msra.mxu0 0.0
    %434 = vmatprep.subr.mxu0 0.0
    %435 = vmatpush1.msra.mxu0 0.0
    %436 = vmatprep.subr.mxu0 0.0
    %437 = vmatpush1.msra.mxu0 0.0
    %438 = vmatprep.subr.mxu0 0.0
    %439 = vmatpush1.msra.mxu0 0.0
    %440 = vmatprep.subr.mxu0 0.0
    %441 = vmatpush1.msra.mxu0 0.0
    %442 = vmatprep.subr.mxu0 0.0
    %443 = vmatpush1.msra.mxu0 0.0
    %444 = vmatprep.subr.mxu0 0.0
    %445 = vmatpush1.msra.mxu0 0.0
    %446 = vmatprep.subr.mxu0 0.0
    %447 = vmatpush1.msra.mxu0 0.0
    %448 = vmatprep.subr.mxu0 0.0
    %449 = vmatpush1.msra.mxu0 0.0
    %450 = vmatprep.subr.mxu0 0.0
    %451 = vmatpush1.msra.mxu0 0.0
    %452 = vmatprep.subr.mxu0 0.0
    %453 = vmatpush1.msra.mxu0 0.0
    %454 = vmatprep.subr.mxu0 0.0
    %455 = vmatpush1.msra.mxu0 0.0
    %456 = vmatprep.subr.mxu0 0.0
    %457 = vmatpush1.msra.mxu0 0.0
    %458 = vmatprep.subr.mxu0 0.0
    %459 = vmatpush1.msra.mxu0 0.0
    %460 = vmatprep.subr.mxu0 0.0
    %461 = vmatpush1.msra.mxu0 0.0
    %462 = vmatprep.subr.mxu0 0.0
    %463 = vmatpush1.msra.mxu0 0.0
    %464 = vmatprep.subr.mxu0 0.0
    %465 = vmatpush1.msra.mxu0 0.0
    %466 = vmatprep.subr.mxu0 0.0
    %467 = vmatpush1.msra.mxu0 0.0
    %468 = vmatprep.subr.mxu0 0.0
    %469 = vmatpush1.msra.mxu0 0.0
    %470 = vmatprep.subr.mxu0 0.0
    %471 = vmatpush1.msra.mxu0 0.0
    %472 = vmatprep.subr.mxu0 0.0
    %473 = vmatpush1.msra.mxu0 0.0
    %474 = vmatprep.subr.mxu0 0.0
    %475 = vmatpush1.msra.mxu0 0.0
    %476 = vmatprep.subr.mxu0 0.0
    %477 = vmatpush1.msra.mxu0 0.0
    %478 = vmatprep.subr.mxu0 0.0
    %479 = vmatpush1.msra.mxu0 0.0
    %480 = vmatprep.subr.mxu0 0.0
    %481 = vmatpush1.msra.mxu0 0.0
    %482 = vmatprep.mubr.f32.mxu0 0.0
    %v483 = vand.u32 %v67, 4294901760
    %484 = vmatmul.mubr.f32.gmra.mrb[0].mxu0 %v483
    %v485 = vpop.f32.mrb[0].mxu0
    %v486 = vadd.f32 %v401, %v485
    %v487 = vpop.f32.mrb[0].mxu0
    %488 = vmatprep.mubr.f32.mxu0 0.0
    %v489 = vand.u32 %v70, 4294901760
    %490 = vmatmul.mubr.f32.gmra.mrb[0].mxu0 %v489
    %v491 = vpop.f32.mrb[0].mxu0
    %v492 = vadd.f32 %v409, %v491
    %v493 = vpop.f32.mrb[0].mxu0
    %494 = vdwg.mxu0
    %495 = vmatprep.subr.mxu0 0.0
    %v496 = vand.u32 %v42, 4294901760
    %497 = vmatpush1.msra.mxu0 %v496
    %498 = vmatprep.subr.mxu0 0.0
    %v499 = vand.u32 %v43, 4294901760
    %500 = vmatpush1.msra.mxu0 %v499
    %501 = vmatprep.subr.mxu0 0.0
    %502 = vmatpush1.msra.mxu0 0.0
    %503 = vmatprep.subr.mxu0 0.0
    %504 = vmatpush1.msra.mxu0 0.0
    %505 = vmatprep.subr.mxu0 0.0
    %506 = vmatpush1.msra.mxu0 0.0
    %507 = vmatprep.subr.mxu0 0.0
    %508 = vmatpush1.msra.mxu0 0.0
    %509 = vmatprep.subr.mxu0 0.0
    %510 = vmatpush1.msra.mxu0 0.0
    %511 = vmatprep.subr.mxu0 0.0
    %512 = vmatpush1.msra.mxu0 0.0
    %513 = vmatprep.subr.mxu0 0.0
    %514 = vmatpush1.msra.mxu0 0.0
    %515 = vmatprep.subr.mxu0 0.0
    %516 = vmatpush1.msra.mxu0 0.0
    %517 = vmatprep.subr.mxu0 0.0
    %518 = vmatpush1.msra.mxu0 0.0
    %519 = vmatprep.subr.mxu0 0.0
    %520 = vmatpush1.msra.mxu0 0.0
    %521 = vmatprep.subr.mxu0 0.0
    %522 = vmatpush1.msra.mxu0 0.0
    %523 = vmatprep.subr.mxu0 0.0
    %524 = vmatpush1.msra.mxu0 0.0
    %525 = vmatprep.subr.mxu0 0.0
    %526 = vmatpush1.msra.mxu0 0.0
    %527 = vmatprep.subr.mxu0 0.0
    %528 = vmatpush1.msra.mxu0 0.0
    %529 = vmatprep.subr.mxu0 0.0
    %530 = vmatpush1.msra.mxu0 0.0
    %531 = vmatprep.subr.mxu0 0.0
    %532 = vmatpush1.msra.mxu0 0.0
    %533 = vmatprep.subr.mxu0 0.0
    %534 = vmatpush1.msra.mxu0 0.0
    %535 = vmatprep.subr.mxu0 0.0
    %536 = vmatpush1.msra.mxu0 0.0
    %537 = vmatprep.subr.mxu0 0.0
    %538 = vmatpush1.msra.mxu0 0.0
    %539 = vmatprep.subr.mxu0 0.0
    %540 = vmatpush1.msra.mxu0 0.0
    %541 = vmatprep.subr.mxu0 0.0
    %542 = vmatpush1.msra.mxu0 0.0
    %543 = vmatprep.subr.mxu0 0.0
    %544 = vmatpush1.msra.mxu0 0.0
    %545 = vmatprep.subr.mxu0 0.0
    %546 = vmatpush1.msra.mxu0 0.0
    %547 = vmatprep.subr.mxu0 0.0
    %548 = vmatpush1.msra.mxu0 0.0
    %549 = vmatprep.subr.mxu0 0.0
    %550 = vmatpush1.msra.mxu0 0.0
    %551 = vmatprep.subr.mxu0 0.0
    %552 = vmatpush1.msra.mxu0 0.0
    %553 = vmatprep.subr.mxu0 0.0
    %554 = vmatpush1.msra.mxu0 0.0
    %555 = vmatprep.subr.mxu0 0.0
    %556 = vmatpush1.msra.mxu0 0.0
    %557 = vmatprep.subr.mxu0 0.0
    %558 = vmatpush1.msra.mxu0 0.0
    %559 = vmatprep.subr.mxu0 0.0
    %560 = vmatpush1.msra.mxu0 0.0
    %561 = vmatprep.mubr.f32.mxu0 0.0
    %v562 = vand.u32 %v67, 4294901760
    %563 = vmatmul.mubr.f32.gmra.mrb[0].mxu0 %v562
    %v564 = vpop.f32.mrb[0].mxu0
    %v565 = vadd.f32 %v486, %v564
    %v566 = vpop.f32.mrb[0].mxu0
    %567 = vmatprep.mubr.f32.mxu0 0.0
    %v568 = vand.u32 %v70, 4294901760
    %569 = vmatmul.mubr.f32.gmra.mrb[0].mxu0 %v568
    %v570 = vpop.f32.mrb[0].mxu0
    %v571 = vadd.f32 %v492, %v570
    %v572 = vpop.f32.mrb[0].mxu0
    %573 = vdwg.mxu0
    %v575 = vsel %vm65, %v60, 0
    %v578 = vsel %vm65, %v61, 0
    %580 = vmatprep.subr.mxu0 0.0
    %v581 = vand.u32 %v34, 4294901760
    %582 = vmatpush1.msra.mxu0 %v581
    %583 = vmatprep.subr.mxu0 0.0
    %v584 = vand.u32 %v35, 4294901760
    %585 = vmatpush1.msra.mxu0 %v584
    %586 = vmatprep.subr.mxu0 0.0
    %587 = vmatpush1.msra.mxu0 0.0
    %588 = vmatprep.subr.mxu0 0.0
    %589 = vmatpush1.msra.mxu0 0.0
    %590 = vmatprep.subr.mxu0 0.0
    %591 = vmatpush1.msra.mxu0 0.0
    %592 = vmatprep.subr.mxu0 0.0
    %593 = vmatpush1.msra.mxu0 0.0
    %594 = vmatprep.subr.mxu0 0.0
    %595 = vmatpush1.msra.mxu0 0.0
    %596 = vmatprep.subr.mxu0 0.0
    %597 = vmatpush1.msra.mxu0 0.0
    %598 = vmatprep.subr.mxu0 0.0
    %599 = vmatpush1.msra.mxu0 0.0
    %600 = vmatprep.subr.mxu0 0.0
    %601 = vmatpush1.msra.mxu0 0.0
    %602 = vmatprep.subr.mxu0 0.0
    %603 = vmatpush1.msra.mxu0 0.0
    %604 = vmatprep.subr.mxu0 0.0
    %605 = vmatpush1.msra.mxu0 0.0
    %606 = vmatprep.subr.mxu0 0.0
    %607 = vmatpush1.msra.mxu0 0.0
    %608 = vmatprep.subr.mxu0 0.0
    %609 = vmatpush1.msra.mxu0 0.0
    %610 = vmatprep.subr.mxu0 0.0
    %611 = vmatpush1.msra.mxu0 0.0
    %612 = vmatprep.subr.mxu0 0.0
    %613 = vmatpush1.msra.mxu0 0.0
    %614 = vmatprep.subr.mxu0 0.0
    %615 = vmatpush1.msra.mxu0 0.0
    %616 = vmatprep.subr.mxu0 0.0
    %617 = vmatpush1.msra.mxu0 0.0
    %618 = vmatprep.subr.mxu0 0.0
    %619 = vmatpush1.msra.mxu0 0.0
    %620 = vmatprep.subr.mxu0 0.0
    %621 = vmatpush1.msra.mxu0 0.0
    %622 = vmatprep.subr.mxu0 0.0
    %623 = vmatpush1.msra.mxu0 0.0
    %624 = vmatprep.subr.mxu0 0.0
    %625 = vmatpush1.msra.mxu0 0.0
    %626 = vmatprep.subr.mxu0 0.0
    %627 = vmatpush1.msra.mxu0 0.0
    %628 = vmatprep.subr.mxu0 0.0
    %629 = vmatpush1.msra.mxu0 0.0
    %630 = vmatprep.subr.mxu0 0.0
    %631 = vmatpush1.msra.mxu0 0.0
    %632 = vmatprep.subr.mxu0 0.0
    %633 = vmatpush1.msra.mxu0 0.0
    %634 = vmatprep.subr.mxu0 0.0
    %635 = vmatpush1.msra.mxu0 0.0
    %636 = vmatprep.subr.mxu0 0.0
    %637 = vmatpush1.msra.mxu0 0.0
    %638 = vmatprep.subr.mxu0 0.0
    %639 = vmatpush1.msra.mxu0 0.0
    %640 = vmatprep.subr.mxu0 0.0
    %641 = vmatpush1.msra.mxu0 0.0
    %642 = vmatprep.subr.mxu0 0.0
    %643 = vmatpush1.msra.mxu0 0.0
    %644 = vmatprep.subr.mxu0 0.0
    %645 = vmatpush1.msra.mxu0 0.0
    %646 = vmatprep.mubr.f32.mxu0 0.0
    %v647 = vand.u32 %v575, 4294901760
    %v648 = vsub.f32 %v575, %v647
    %v649 = vand.u32 %v648, 4294901760
    %v650 = vsub.f32 %v648, %v649
    %v651 = vand.u32 %v650, 4294901760
    %652 = vmatmul.mubr.f32.gmra.mrb[0].mxu0 %v651
    %v653 = vpop.f32.mrb[0].mxu0
    %v654 = vadd.f32 %v565, %v653
    %v655 = vpop.f32.mrb[0].mxu0
    %656 = vmatprep.mubr.f32.mxu0 0.0
    %v657 = vand.u32 %v578, 4294901760
    %v658 = vsub.f32 %v578, %v657
    %v659 = vand.u32 %v658, 4294901760
    %v660 = vsub.f32 %v658, %v659
    %v661 = vand.u32 %v660, 4294901760
    %662 = vmatmul.mubr.f32.gmra.mrb[0].mxu0 %v661
    %v663 = vpop.f32.mrb[0].mxu0
    %v664 = vadd.f32 %v571, %v663
    %v665 = vpop.f32.mrb[0].mxu0
    %666 = vdwg.mxu0
    %667 = vmatprep.subr.mxu0 0.0
    %v668 = vand.u32 %v34, 4294901760
    %v669 = vsub.f32 %v34, %v668
    %v670 = vand.u32 %v669, 4294901760
    %v671 = vsub.f32 %v669, %v670
    %v672 = vand.u32 %v671, 4294901760
    %673 = vmatpush1.msra.mxu0 %v672
    %674 = vmatprep.subr.mxu0 0.0
    %v675 = vand.u32 %v35, 4294901760
    %v676 = vsub.f32 %v35, %v675
    %v677 = vand.u32 %v676, 4294901760
    %v678 = vsub.f32 %v676, %v677
    %v679 = vand.u32 %v678, 4294901760
    %680 = vmatpush1.msra.mxu0 %v679
    %681 = vmatprep.subr.mxu0 0.0
    %682 = vmatpush1.msra.mxu0 0.0
    %683 = vmatprep.subr.mxu0 0.0
    %684 = vmatpush1.msra.mxu0 0.0
    %685 = vmatprep.subr.mxu0 0.0
    %686 = vmatpush1.msra.mxu0 0.0
    %687 = vmatprep.subr.mxu0 0.0
    %688 = vmatpush1.msra.mxu0 0.0
    %689 = vmatprep.subr.mxu0 0.0
    %690 = vmatpush1.msra.mxu0 0.0
    %691 = vmatprep.subr.mxu0 0.0
    %692 = vmatpush1.msra.mxu0 0.0
    %693 = vmatprep.subr.mxu0 0.0
    %694 = vmatpush1.msra.mxu0 0.0
    %695 = vmatprep.subr.mxu0 0.0
    %696 = vmatpush1.msra.mxu0 0.0
    %697 = vmatprep.subr.mxu0 0.0
    %698 = vmatpush1.msra.mxu0 0.0
    %699 = vmatprep.subr.mxu0 0.0
    %700 = vmatpush1.msra.mxu0 0.0
    %701 = vmatprep.subr.mxu0 0.0
    %702 = vmatpush1.msra.mxu0 0.0
    %703 = vmatprep.subr.mxu0 0.0
    %704 = vmatpush1.msra.mxu0 0.0
    %705 = vmatprep.subr.mxu0 0.0
    %706 = vmatpush1.msra.mxu0 0.0
    %707 = vmatprep.subr.mxu0 0.0
    %708 = vmatpush1.msra.mxu0 0.0
    %709 = vmatprep.subr.mxu0 0.0
    %710 = vmatpush1.msra.mxu0 0.0
    %711 = vmatprep.subr.mxu0 0.0
    %712 = vmatpush1.msra.mxu0 0.0
    %713 = vmatprep.subr.mxu0 0.0
    %714 = vmatpush1.msra.mxu0 0.0
    %715 = vmatprep.subr.mxu0 0.0
    %716 = vmatpush1.msra.mxu0 0.0
    %717 = vmatprep.subr.mxu0 0.0
    %718 = vmatpush1.msra.mxu0 0.0
    %719 = vmatprep.subr.mxu0 0.0
    %720 = vmatpush1.msra.mxu0 0.0
    %721 = vmatprep.subr.mxu0 0.0
    %722 = vmatpush1.msra.mxu0 0.0
    %723 = vmatprep.subr.mxu0 0.0
    %724 = vmatpush1.msra.mxu0 0.0
    %725 = vmatprep.subr.mxu0 0.0
    %726 = vmatpush1.msra.mxu0 0.0
    %727 = vmatprep.subr.mxu0 0.0
    %728 = vmatpush1.msra.mxu0 0.0
    %729 = vmatprep.subr.mxu0 0.0
    %730 = vmatpush1.msra.mxu0 0.0
    %731 = vmatprep.subr.mxu0 0.0
    %732 = vmatpush1.msra.mxu0 0.0
    %733 = vmatprep.subr.mxu0 0.0
    %734 = vmatpush1.msra.mxu0 0.0
    %735 = vmatprep.subr.mxu0 0.0
    %736 = vmatpush1.msra.mxu0 0.0
    %737 = vmatprep.subr.mxu0 0.0
    %738 = vmatpush1.msra.mxu0 0.0
    %739 = vmatprep.subr.mxu0 0.0
    %740 = vmatpush1.msra.mxu0 0.0
    %741 = vmatprep.mubr.f32.mxu0 0.0
    %v742 = vand.u32 %v575, 4294901760
    %743 = vmatmul.mubr.f32.gmra.mrb[0].mxu0 %v742
    %v744 = vpop.f32.mrb[0].mxu0
    %v745 = vadd.f32 %v654, %v744
    %v746 = vpop.f32.mrb[0].mxu0
    %747 = vmatprep.mubr.f32.mxu0 0.0
    %v748 = vand.u32 %v578, 4294901760
    %749 = vmatmul.mubr.f32.gmra.mrb[0].mxu0 %v748
    %v750 = vpop.f32.mrb[0].mxu0
    %v751 = vadd.f32 %v664, %v750
    %v752 = vpop.f32.mrb[0].mxu0
    %753 = vdwg.mxu0
    %754 = vmatprep.subr.mxu0 0.0
    %v755 = vand.u32 %v34, 4294901760
    %v756 = vsub.f32 %v34, %v755
    %757 = vmatpush1.msra.mxu0 %v756
    %758 = vmatprep.subr.mxu0 0.0
    %v759 = vand.u32 %v35, 4294901760
    %v760 = vsub.f32 %v35, %v759
    %761 = vmatpush1.msra.mxu0 %v760
    %762 = vmatprep.subr.mxu0 0.0
    %763 = vmatpush1.msra.mxu0 0.0
    %764 = vmatprep.subr.mxu0 0.0
    %765 = vmatpush1.msra.mxu0 0.0
    %766 = vmatprep.subr.mxu0 0.0
    %767 = vmatpush1.msra.mxu0 0.0
    %768 = vmatprep.subr.mxu0 0.0
    %769 = vmatpush1.msra.mxu0 0.0
    %770 = vmatprep.subr.mxu0 0.0
    %771 = vmatpush1.msra.mxu0 0.0
    %772 = vmatprep.subr.mxu0 0.0
    %773 = vmatpush1.msra.mxu0 0.0
    %774 = vmatprep.subr.mxu0 0.0
    %775 = vmatpush1.msra.mxu0 0.0
    %776 = vmatprep.subr.mxu0 0.0
    %777 = vmatpush1.msra.mxu0 0.0
    %778 = vmatprep.subr.mxu0 0.0
    %779 = vmatpush1.msra.mxu0 0.0
    %780 = vmatprep.subr.mxu0 0.0
    %781 = vmatpush1.msra.mxu0 0.0
    %782 = vmatprep.subr.mxu0 0.0
    %783 = vmatpush1.msra.mxu0 0.0
    %784 = vmatprep.subr.mxu0 0.0
    %785 = vmatpush1.msra.mxu0 0.0
    %786 = vmatprep.subr.mxu0 0.0
    %787 = vmatpush1.msra.mxu0 0.0
    %788 = vmatprep.subr.mxu0 0.0
    %789 = vmatpush1.msra.mxu0 0.0
    %790 = vmatprep.subr.mxu0 0.0
    %791 = vmatpush1.msra.mxu0 0.0
    %792 = vmatprep.subr.mxu0 0.0
    %793 = vmatpush1.msra.mxu0 0.0
    %794 = vmatprep.subr.mxu0 0.0
    %795 = vmatpush1.msra.mxu0 0.0
    %796 = vmatprep.subr.mxu0 0.0
    %797 = vmatpush1.msra.mxu0 0.0
    %798 = vmatprep.subr.mxu0 0.0
    %799 = vmatpush1.msra.mxu0 0.0
    %800 = vmatprep.subr.mxu0 0.0
    %801 = vmatpush1.msra.mxu0 0.0
    %802 = vmatprep.subr.mxu0 0.0
    %803 = vmatpush1.msra.mxu0 0.0
    %804 = vmatprep.subr.mxu0 0.0
    %805 = vmatpush1.msra.mxu0 0.0
    %806 = vmatprep.subr.mxu0 0.0
    %807 = vmatpush1.msra.mxu0 0.0
    %808 = vmatprep.subr.mxu0 0.0
    %809 = vmatpush1.msra.mxu0 0.0
    %810 = vmatprep.subr.mxu0 0.0
    %811 = vmatpush1.msra.mxu0 0.0
    %812 = vmatprep.subr.mxu0 0.0
    %813 = vmatpush1.msra.mxu0 0.0
    %814 = vmatprep.subr.mxu0 0.0
    %815 = vmatpush1.msra.mxu0 0.0
    %816 = vmatprep.subr.mxu0 0.0
    %817 = vmatpush1.msra.mxu0 0.0
    %818 = vmatprep.subr.mxu0 0.0
    %819 = vmatpush1.msra.mxu0 0.0
    %820 = vmatprep.subr.mxu0 0.0
    %821 = vmatpush1.msra.mxu0 0.0
    %822 = vmatprep.mubr.f32.mxu0 0.0
    %v823 = vand.u32 %v575, 4294901760
    %v824 = vsub.f32 %v575, %v823
    %825 = vmatmul.mubr.f32.gmra.mrb[0].mxu0 %v824
    %v826 = vpop.f32.mrb[0].mxu0
    %v827 = vadd.f32 %v745, %v826
    %v828 = vpop.f32.mrb[0].mxu0
    %829 = vmatprep.mubr.f32.mxu0 0.0
    %v830 = vand.u32 %v578, 4294901760
    %v831 = vsub.f32 %v578, %v830
    %832 = vmatmul.mubr.f32.gmra.mrb[0].mxu0 %v831
    %v833 = vpop.f32.mrb[0].mxu0
    %v834 = vadd.f32 %v751, %v833
    %v835 = vpop.f32.mrb[0].mxu0
    %836 = vdwg.mxu0
    %837 = vmatprep.subr.mxu0 0.0
    %v838 = vand.u32 %v34, 4294901760
    %839 = vmatpush1.msra.mxu0 %v838
    %840 = vmatprep.subr.mxu0 0.0
    %v841 = vand.u32 %v35, 4294901760
    %842 = vmatpush1.msra.mxu0 %v841
    %843 = vmatprep.subr.mxu0 0.0
    %844 = vmatpush1.msra.mxu0 0.0
    %845 = vmatprep.subr.mxu0 0.0
    %846 = vmatpush1.msra.mxu0 0.0
    %847 = vmatprep.subr.mxu0 0.0
    %848 = vmatpush1.msra.mxu0 0.0
    %849 = vmatprep.subr.mxu0 0.0
    %850 = vmatpush1.msra.mxu0 0.0
    %851 = vmatprep.subr.mxu0 0.0
    %852 = vmatpush1.msra.mxu0 0.0
    %853 = vmatprep.subr.mxu0 0.0
    %854 = vmatpush1.msra.mxu0 0.0
    %855 = vmatprep.subr.mxu0 0.0
    %856 = vmatpush1.msra.mxu0 0.0
    %857 = vmatprep.subr.mxu0 0.0
    %858 = vmatpush1.msra.mxu0 0.0
    %859 = vmatprep.subr.mxu0 0.0
    %860 = vmatpush1.msra.mxu0 0.0
    %861 = vmatprep.subr.mxu0 0.0
    %862 = vmatpush1.msra.mxu0 0.0
    %863 = vmatprep.subr.mxu0 0.0
    %864 = vmatpush1.msra.mxu0 0.0
    %865 = vmatprep.subr.mxu0 0.0
    %866 = vmatpush1.msra.mxu0 0.0
    %867 = vmatprep.subr.mxu0 0.0
    %868 = vmatpush1.msra.mxu0 0.0
    %869 = vmatprep.subr.mxu0 0.0
    %870 = vmatpush1.msra.mxu0 0.0
    %871 = vmatprep.subr.mxu0 0.0
    %872 = vmatpush1.msra.mxu0 0.0
    %873 = vmatprep.subr.mxu0 0.0
    %874 = vmatpush1.msra.mxu0 0.0
    %875 = vmatprep.subr.mxu0 0.0
    %876 = vmatpush1.msra.mxu0 0.0
    %877 = vmatprep.subr.mxu0 0.0
    %878 = vmatpush1.msra.mxu0 0.0
    %879 = vmatprep.subr.mxu0 0.0
    %880 = vmatpush1.msra.mxu0 0.0
    %881 = vmatprep.subr.mxu0 0.0
    %882 = vmatpush1.msra.mxu0 0.0
    %883 = vmatprep.subr.mxu0 0.0
    %884 = vmatpush1.msra.mxu0 0.0
    %885 = vmatprep.subr.mxu0 0.0
    %886 = vmatpush1.msra.mxu0 0.0
    %887 = vmatprep.subr.mxu0 0.0
    %888 = vmatpush1.msra.mxu0 0.0
    %889 = vmatprep.subr.mxu0 0.0
    %890 = vmatpush1.msra.mxu0 0.0
    %891 = vmatprep.subr.mxu0 0.0
    %892 = vmatpush1.msra.mxu0 0.0
    %893 = vmatprep.subr.mxu0 0.0
    %894 = vmatpush1.msra.mxu0 0.0
    %895 = vmatprep.subr.mxu0 0.0
    %896 = vmatpush1.msra.mxu0 0.0
    %897 = vmatprep.subr.mxu0 0.0
    %898 = vmatpush1.msra.mxu0 0.0
    %899 = vmatprep.subr.mxu0 0.0
    %900 = vmatpush1.msra.mxu0 0.0
    %901 = vmatprep.subr.mxu0 0.0
    %902 = vmatpush1.msra.mxu0 0.0
    %903 = vmatprep.mubr.f32.mxu0 0.0
    %v904 = vand.u32 %v575, 4294901760
    %v905 = vsub.f32 %v575, %v904
    %v906 = vand.u32 %v905, 4294901760
    %907 = vmatmul.mubr.f32.gmra.mrb[0].mxu0 %v906
    %v908 = vpop.f32.mrb[0].mxu0
    %v909 = vadd.f32 %v827, %v908
    %v910 = vpop.f32.mrb[0].mxu0
    %911 = vmatprep.mubr.f32.mxu0 0.0
    %v912 = vand.u32 %v578, 4294901760
    %v913 = vsub.f32 %v578, %v912
    %v914 = vand.u32 %v913, 4294901760
    %915 = vmatmul.mubr.f32.gmra.mrb[0].mxu0 %v914
    %v916 = vpop.f32.mrb[0].mxu0
    %v917 = vadd.f32 %v834, %v916
    %v918 = vpop.f32.mrb[0].mxu0
    %919 = vdwg.mxu0
    %920 = vmatprep.subr.mxu0 0.0
    %v921 = vand.u32 %v34, 4294901760
    %v922 = vsub.f32 %v34, %v921
    %v923 = vand.u32 %v922, 4294901760
    %924 = vmatpush1.msra.mxu0 %v923
    %925 = vmatprep.subr.mxu0 0.0
    %v926 = vand.u32 %v35, 4294901760
    %v927 = vsub.f32 %v35, %v926
    %v928 = vand.u32 %v927, 4294901760
    %929 = vmatpush1.msra.mxu0 %v928
    %930 = vmatprep.subr.mxu0 0.0
    %931 = vmatpush1.msra.mxu0 0.0
    %932 = vmatprep.subr.mxu0 0.0
    %933 = vmatpush1.msra.mxu0 0.0
    %934 = vmatprep.subr.mxu0 0.0
    %935 = vmatpush1.msra.mxu0 0.0
    %936 = vmatprep.subr.mxu0 0.0
    %937 = vmatpush1.msra.mxu0 0.0
    %938 = vmatprep.subr.mxu0 0.0
    %939 = vmatpush1.msra.mxu0 0.0
    %940 = vmatprep.subr.mxu0 0.0
    %941 = vmatpush1.msra.mxu0 0.0
    %942 = vmatprep.subr.mxu0 0.0
    %943 = vmatpush1.msra.mxu0 0.0
    %944 = vmatprep.subr.mxu0 0.0
    %945 = vmatpush1.msra.mxu0 0.0
    %946 = vmatprep.subr.mxu0 0.0
    %947 = vmatpush1.msra.mxu0 0.0
    %948 = vmatprep.subr.mxu0 0.0
    %949 = vmatpush1.msra.mxu0 0.0
    %950 = vmatprep.subr.mxu0 0.0
    %951 = vmatpush1.msra.mxu0 0.0
    %952 = vmatprep.subr.mxu0 0.0
    %953 = vmatpush1.msra.mxu0 0.0
    %954 = vmatprep.subr.mxu0 0.0
    %955 = vmatpush1.msra.mxu0 0.0
    %956 = vmatprep.subr.mxu0 0.0
    %957 = vmatpush1.msra.mxu0 0.0
    %958 = vmatprep.subr.mxu0 0.0
    %959 = vmatpush1.msra.mxu0 0.0
    %960 = vmatprep.subr.mxu0 0.0
    %961 = vmatpush1.msra.mxu0 0.0
    %962 = vmatprep.subr.mxu0 0.0
    %963 = vmatpush1.msra.mxu0 0.0
    %964 = vmatprep.subr.mxu0 0.0
    %965 = vmatpush1.msra.mxu0 0.0
    %966 = vmatprep.subr.mxu0 0.0
    %967 = vmatpush1.msra.mxu0 0.0
    %968 = vmatprep.subr.mxu0 0.0
    %969 = vmatpush1.msra.mxu0 0.0
    %970 = vmatprep.subr.mxu0 0.0
    %971 = vmatpush1.msra.mxu0 0.0
    %972 = vmatprep.subr.mxu0 0.0
    %973 = vmatpush1.msra.mxu0 0.0
    %974 = vmatprep.subr.mxu0 0.0
    %975 = vmatpush1.msra.mxu0 0.0
    %976 = vmatprep.subr.mxu0 0.0
    %977 = vmatpush1.msra.mxu0 0.0
    %978 = vmatprep.subr.mxu0 0.0
    %979 = vmatpush1.msra.mxu0 0.0
    %980 = vmatprep.subr.mxu0 0.0
    %981 = vmatpush1.msra.mxu0 0.0
    %982 = vmatprep.subr.mxu0 0.0
    %983 = vmatpush1.msra.mxu0 0.0
    %984 = vmatprep.subr.mxu0 0.0
    %985 = vmatpush1.msra.mxu0 0.0
    %986 = vmatprep.subr.mxu0 0.0
    %987 = vmatpush1.msra.mxu0 0.0
    %988 = vmatprep.subr.mxu0 0.0
    %989 = vmatpush1.msra.mxu0 0.0
    %990 = vmatprep.mubr.f32.mxu0 0.0
    %v991 = vand.u32 %v575, 4294901760
    %992 = vmatmul.mubr.f32.gmra.mrb[0].mxu0 %v991
    %v993 = vpop.f32.mrb[0].mxu0
    %v994 = vadd.f32 %v909, %v993
    %v995 = vpop.f32.mrb[0].mxu0
    %996 = vmatprep.mubr.f32.mxu0 0.0
    %v997 = vand.u32 %v578, 4294901760
    %998 = vmatmul.mubr.f32.gmra.mrb[0].mxu0 %v997
    %v999 = vpop.f32.mrb[0].mxu0
    %v1000 = vadd.f32 %v917, %v999
    %v1001 = vpop.f32.mrb[0].mxu0
    %1002 = vdwg.mxu0
    %1003 = vmatprep.subr.mxu0 0.0
    %v1004 = vand.u32 %v34, 4294901760
    %1005 = vmatpush1.msra.mxu0 %v1004
    %1006 = vmatprep.subr.mxu0 0.0
    %v1007 = vand.u32 %v35, 4294901760
    %1008 = vmatpush1.msra.mxu0 %v1007
    %1009 = vmatprep.subr.mxu0 0.0
    %1010 = vmatpush1.msra.mxu0 0.0
    %1011 = vmatprep.subr.mxu0 0.0
    %1012 = vmatpush1.msra.mxu0 0.0
    %1013 = vmatprep.subr.mxu0 0.0
    %1014 = vmatpush1.msra.mxu0 0.0
    %1015 = vmatprep.subr.mxu0 0.0
    %1016 = vmatpush1.msra.mxu0 0.0
    %1017 = vmatprep.subr.mxu0 0.0
    %1018 = vmatpush1.msra.mxu0 0.0
    %1019 = vmatprep.subr.mxu0 0.0
    %1020 = vmatpush1.msra.mxu0 0.0
    %1021 = vmatprep.subr.mxu0 0.0
    %1022 = vmatpush1.msra.mxu0 0.0
    %1023 = vmatprep.subr.mxu0 0.0
    %1024 = vmatpush1.msra.mxu0 0.0
    %1025 = vmatprep.subr.mxu0 0.0
    %1026 = vmatpush1.msra.mxu0 0.0
    %1027 = vmatprep.subr.mxu0 0.0
    %1028 = vmatpush1.msra.mxu0 0.0
    %1029 = vmatprep.subr.mxu0 0.0
    %1030 = vmatpush1.msra.mxu0 0.0
    %1031 = vmatprep.subr.mxu0 0.0
    %1032 = vmatpush1.msra.mxu0 0.0
    %1033 = vmatprep.subr.mxu0 0.0
    %1034 = vmatpush1.msra.mxu0 0.0
    %1035 = vmatprep.subr.mxu0 0.0
    %1036 = vmatpush1.msra.mxu0 0.0
    %1037 = vmatprep.subr.mxu0 0.0
    %1038 = vmatpush1.msra.mxu0 0.0
    %1039 = vmatprep.subr.mxu0 0.0
    %1040 = vmatpush1.msra.mxu0 0.0
    %1041 = vmatprep.subr.mxu0 0.0
    %1042 = vmatpush1.msra.mxu0 0.0
    %1043 = vmatprep.subr.mxu0 0.0
    %1044 = vmatpush1.msra.mxu0 0.0
    %1045 = vmatprep.subr.mxu0 0.0
    %1046 = vmatpush1.msra.mxu0 0.0
    %1047 = vmatprep.subr.mxu0 0.0
    %1048 = vmatpush1.msra.mxu0 0.0
    %1049 = vmatprep.subr.mxu0 0.0
    %1050 = vmatpush1.msra.mxu0 0.0
    %1051 = vmatprep.subr.mxu0 0.0
    %1052 = vmatpush1.msra.mxu0 0.0
    %1053 = vmatprep.subr.mxu0 0.0
    %1054 = vmatpush1.msra.mxu0 0.0
    %1055 = vmatprep.subr.mxu0 0.0
    %1056 = vmatpush1.msra.mxu0 0.0
    %1057 = vmatprep.subr.mxu0 0.0
    %1058 = vmatpush1.msra.mxu0 0.0
    %1059 = vmatprep.subr.mxu0 0.0
    %1060 = vmatpush1.msra.mxu0 0.0
    %1061 = vmatprep.subr.mxu0 0.0
    %1062 = vmatpush1.msra.mxu0 0.0
    %1063 = vmatprep.subr.mxu0 0.0
    %1064 = vmatpush1.msra.mxu0 0.0
    %1065 = vmatprep.subr.mxu0 0.0
    %1066 = vmatpush1.msra.mxu0 0.0
    %1067 = vmatprep.subr.mxu0 0.0
    %1068 = vmatpush1.msra.mxu0 0.0
    %1069 = vmatprep.mubr.f32.mxu0 0.0
    %v1070 = vand.u32 %v575, 4294901760
    %1071 = vmatmul.mubr.f32.gmra.mrb[0].mxu0 %v1070
    %v1072 = vpop.f32.mrb[0].mxu0
    %v1073 = vadd.f32 %v994, %v1072
    %v1074 = vpop.f32.mrb[0].mxu0
    %1075 = vmatprep.mubr.f32.mxu0 0.0
    %v1076 = vand.u32 %v578, 4294901760
    %1077 = vmatmul.mubr.f32.gmra.mrb[0].mxu0 %v1076
    %v1078 = vpop.f32.mrb[0].mxu0
    %v1079 = vadd.f32 %v1000, %v1078
    %v1080 = vpop.f32.mrb[0].mxu0
    %1081 = vdwg.mxu0
    %s1082 = scalar_lea.vmem [#allocation2], 32
    %v1083 = vld [vmem:[%s1082] sm:$0xff]
    %v1084 = vld [vmem:[%s1082 + $0x8] sm:$0xff]
    %v1086 = vsel %vm65, %v1083, 0
    %v1089 = vsel %vm65, %v1084, 0
    %1091 = vmatprep.subr.mxu0 0.0
    %v1092 = vand.u32 %v50, 4294901760
    %1093 = vmatpush1.msra.mxu0 %v1092
    %1094 = vmatprep.subr.mxu0 0.0
    %v1095 = vand.u32 %v51, 4294901760
    %1096 = vmatpush1.msra.mxu0 %v1095
    %1097 = vmatprep.subr.mxu0 0.0
    %1098 = vmatpush1.msra.mxu0 0.0
    %1099 = vmatprep.subr.mxu0 0.0
    %1100 = vmatpush1.msra.mxu0 0.0
    %1101 = vmatprep.subr.mxu0 0.0
    %1102 = vmatpush1.msra.mxu0 0.0
    %1103 = vmatprep.subr.mxu0 0.0
    %1104 = vmatpush1.msra.mxu0 0.0
    %1105 = vmatprep.subr.mxu0 0.0
    %1106 = vmatpush1.msra.mxu0 0.0
    %1107 = vmatprep.subr.mxu0 0.0
    %1108 = vmatpush1.msra.mxu0 0.0
    %1109 = vmatprep.subr.mxu0 0.0
    %1110 = vmatpush1.msra.mxu0 0.0
    %1111 = vmatprep.subr.mxu0 0.0
    %1112 = vmatpush1.msra.mxu0 0.0
    %1113 = vmatprep.subr.mxu0 0.0
    %1114 = vmatpush1.msra.mxu0 0.0
    %1115 = vmatprep.subr.mxu0 0.0
    %1116 = vmatpush1.msra.mxu0 0.0
    %1117 = vmatprep.subr.mxu0 0.0
    %1118 = vmatpush1.msra.mxu0 0.0
    %1119 = vmatprep.subr.mxu0 0.0
    %1120 = vmatpush1.msra.mxu0 0.0
    %1121 = vmatprep.subr.mxu0 0.0
    %1122 = vmatpush1.msra.mxu0 0.0
    %1123 = vmatprep.subr.mxu0 0.0
    %1124 = vmatpush1.msra.mxu0 0.0
    %1125 = vmatprep.subr.mxu0 0.0
    %1126 = vmatpush1.msra.mxu0 0.0
    %1127 = vmatprep.subr.mxu0 0.0
    %1128 = vmatpush1.msra.mxu0 0.0
    %1129 = vmatprep.subr.mxu0 0.0
    %1130 = vmatpush1.msra.mxu0 0.0
    %1131 = vmatprep.subr.mxu0 0.0
    %1132 = vmatpush1.msra.mxu0 0.0
    %1133 = vmatprep.subr.mxu0 0.0
    %1134 = vmatpush1.msra.mxu0 0.0
    %1135 = vmatprep.subr.mxu0 0.0
    %1136 = vmatpush1.msra.mxu0 0.0
    %1137 = vmatprep.subr.mxu0 0.0
    %1138 = vmatpush1.msra.mxu0 0.0
    %1139 = vmatprep.subr.mxu0 0.0
    %1140 = vmatpush1.msra.mxu0 0.0
    %1141 = vmatprep.subr.mxu0 0.0
    %1142 = vmatpush1.msra.mxu0 0.0
    %1143 = vmatprep.subr.mxu0 0.0
    %1144 = vmatpush1.msra.mxu0 0.0
    %1145 = vmatprep.subr.mxu0 0.0
    %1146 = vmatpush1.msra.mxu0 0.0
    %1147 = vmatprep.subr.mxu0 0.0
    %1148 = vmatpush1.msra.mxu0 0.0
    %1149 = vmatprep.subr.mxu0 0.0
    %1150 = vmatpush1.msra.mxu0 0.0
    %1151 = vmatprep.subr.mxu0 0.0
    %1152 = vmatpush1.msra.mxu0 0.0
    %1153 = vmatprep.subr.mxu0 0.0
    %1154 = vmatpush1.msra.mxu0 0.0
    %1155 = vmatprep.subr.mxu0 0.0
    %1156 = vmatpush1.msra.mxu0 0.0
    %1157 = vmatprep.mubr.f32.mxu0 0.0
    %v1158 = vand.u32 %v1086, 4294901760
    %v1159 = vsub.f32 %v1086, %v1158
    %v1160 = vand.u32 %v1159, 4294901760
    %v1161 = vsub.f32 %v1159, %v1160
    %v1162 = vand.u32 %v1161, 4294901760
    %1163 = vmatmul.mubr.f32.gmra.mrb[0].mxu0 %v1162
    %v1164 = vpop.f32.mrb[0].mxu0
    %v1165 = vadd.f32 0.0, %v1164
    %v1166 = vpop.f32.mrb[0].mxu0
    %1167 = vmatprep.mubr.f32.mxu0 0.0
    %v1168 = vand.u32 %v1089, 4294901760
    %v1169 = vsub.f32 %v1089, %v1168
    %v1170 = vand.u32 %v1169, 4294901760
    %v1171 = vsub.f32 %v1169, %v1170
    %v1172 = vand.u32 %v1171, 4294901760
    %1173 = vmatmul.mubr.f32.gmra.mrb[0].mxu0 %v1172
    %v1174 = vpop.f32.mrb[0].mxu0
    %v1175 = vadd.f32 0.0, %v1174
    %v1176 = vpop.f32.mrb[0].mxu0
    %1177 = vdwg.mxu0
    %1178 = vmatprep.subr.mxu0 0.0
    %v1179 = vand.u32 %v50, 4294901760
    %v1180 = vsub.f32 %v50, %v1179
    %v1181 = vand.u32 %v1180, 4294901760
    %v1182 = vsub.f32 %v1180, %v1181
    %v1183 = vand.u32 %v1182, 4294901760
    %1184 = vmatpush1.msra.mxu0 %v1183
    %1185 = vmatprep.subr.mxu0 0.0
    %v1186 = vand.u32 %v51, 4294901760
    %v1187 = vsub.f32 %v51, %v1186
    %v1188 = vand.u32 %v1187, 4294901760
    %v1189 = vsub.f32 %v1187, %v1188
    %v1190 = vand.u32 %v1189, 4294901760
    %1191 = vmatpush1.msra.mxu0 %v1190
    %1192 = vmatprep.subr.mxu0 0.0
    %1193 = vmatpush1.msra.mxu0 0.0
    %1194 = vmatprep.subr.mxu0 0.0
    %1195 = vmatpush1.msra.mxu0 0.0
    %1196 = vmatprep.subr.mxu0 0.0
    %1197 = vmatpush1.msra.mxu0 0.0
    %1198 = vmatprep.subr.mxu0 0.0
    %1199 = vmatpush1.msra.mxu0 0.0
    %1200 = vmatprep.subr.mxu0 0.0
    %1201 = vmatpush1.msra.mxu0 0.0
    %1202 = vmatprep.subr.mxu0 0.0
    %1203 = vmatpush1.msra.mxu0 0.0
    %1204 = vmatprep.subr.mxu0 0.0
    %1205 = vmatpush1.msra.mxu0 0.0
    %1206 = vmatprep.subr.mxu0 0.0
    %1207 = vmatpush1.msra.mxu0 0.0
    %1208 = vmatprep.subr.mxu0 0.0
    %1209 = vmatpush1.msra.mxu0 0.0
    %1210 = vmatprep.subr.mxu0 0.0
    %1211 = vmatpush1.msra.mxu0 0.0
    %1212 = vmatprep.subr.mxu0 0.0
    %1213 = vmatpush1.msra.mxu0 0.0
    %1214 = vmatprep.subr.mxu0 0.0
    %1215 = vmatpush1.msra.mxu0 0.0
    %1216 = vmatprep.subr.mxu0 0.0
    %1217 = vmatpush1.msra.mxu0 0.0
    %1218 = vmatprep.subr.mxu0 0.0
    %1219 = vmatpush1.msra.mxu0 0.0
    %1220 = vmatprep.subr.mxu0 0.0
    %1221 = vmatpush1.msra.mxu0 0.0
    %1222 = vmatprep.subr.mxu0 0.0
    %1223 = vmatpush1.msra.mxu0 0.0
    %1224 = vmatprep.subr.mxu0 0.0
    %1225 = vmatpush1.msra.mxu0 0.0
    %1226 = vmatprep.subr.mxu0 0.0
    %1227 = vmatpush1.msra.mxu0 0.0
    %1228 = vmatprep.subr.mxu0 0.0
    %1229 = vmatpush1.msra.mxu0 0.0
    %1230 = vmatprep.subr.mxu0 0.0
    %1231 = vmatpush1.msra.mxu0 0.0
    %1232 = vmatprep.subr.mxu0 0.0
    %1233 = vmatpush1.msra.mxu0 0.0
    %1234 = vmatprep.subr.mxu0 0.0
    %1235 = vmatpush1.msra.mxu0 0.0
    %1236 = vmatprep.subr.mxu0 0.0
    %1237 = vmatpush1.msra.mxu0 0.0
    %1238 = vmatprep.subr.mxu0 0.0
    %1239 = vmatpush1.msra.mxu0 0.0
    %1240 = vmatprep.subr.mxu0 0.0
    %1241 = vmatpush1.msra.mxu0 0.0
    %1242 = vmatprep.subr.mxu0 0.0
    %1243 = vmatpush1.msra.mxu0 0.0
    %1244 = vmatprep.subr.mxu0 0.0
    %1245 = vmatpush1.msra.mxu0 0.0
    %1246 = vmatprep.subr.mxu0 0.0
    %1247 = vmatpush1.msra.mxu0 0.0
    %1248 = vmatprep.subr.mxu0 0.0
    %1249 = vmatpush1.msra.mxu0 0.0
    %1250 = vmatprep.subr.mxu0 0.0
    %1251 = vmatpush1.msra.mxu0 0.0
    %1252 = vmatprep.mubr.f32.mxu0 0.0
    %v1253 = vand.u32 %v1086, 4294901760
    %1254 = vmatmul.mubr.f32.gmra.mrb[0].mxu0 %v1253
    %v1255 = vpop.f32.mrb[0].mxu0
    %v1256 = vadd.f32 %v1165, %v1255
    %v1257 = vpop.f32.mrb[0].mxu0
    %1258 = vmatprep.mubr.f32.mxu0 0.0
    %v1259 = vand.u32 %v1089, 4294901760
    %1260 = vmatmul.mubr.f32.gmra.mrb[0].mxu0 %v1259
    %v1261 = vpop.f32.mrb[0].mxu0
    %v1262 = vadd.f32 %v1175, %v1261
    %v1263 = vpop.f32.mrb[0].mxu0
    %1264 = vdwg.mxu0
    %1265 = vmatprep.subr.mxu0 0.0
    %v1266 = vand.u32 %v50, 4294901760
    %v1267 = vsub.f32 %v50, %v1266
    %1268 = vmatpush1.msra.mxu0 %v1267
    %1269 = vmatprep.subr.mxu0 0.0
    %v1270 = vand.u32 %v51, 4294901760
    %v1271 = vsub.f32 %v51, %v1270
    %1272 = vmatpush1.msra.mxu0 %v1271
    %1273 = vmatprep.subr.mxu0 0.0
    %1274 = vmatpush1.msra.mxu0 0.0
    %1275 = vmatprep.subr.mxu0 0.0
    %1276 = vmatpush1.msra.mxu0 0.0
    %1277 = vmatprep.subr.mxu0 0.0
    %1278 = vmatpush1.msra.mxu0 0.0
    %1279 = vmatprep.subr.mxu0 0.0
    %1280 = vmatpush1.msra.mxu0 0.0
    %1281 = vmatprep.subr.mxu0 0.0
    %1282 = vmatpush1.msra.mxu0 0.0
    %1283 = vmatprep.subr.mxu0 0.0
    %1284 = vmatpush1.msra.mxu0 0.0
    %1285 = vmatprep.subr.mxu0 0.0
    %1286 = vmatpush1.msra.mxu0 0.0
    %1287 = vmatprep.subr.mxu0 0.0
    %1288 = vmatpush1.msra.mxu0 0.0
    %1289 = vmatprep.subr.mxu0 0.0
    %1290 = vmatpush1.msra.mxu0 0.0
    %1291 = vmatprep.subr.mxu0 0.0
    %1292 = vmatpush1.msra.mxu0 0.0
    %1293 = vmatprep.subr.mxu0 0.0
    %1294 = vmatpush1.msra.mxu0 0.0
    %1295 = vmatprep.subr.mxu0 0.0
    %1296 = vmatpush1.msra.mxu0 0.0
    %1297 = vmatprep.subr.mxu0 0.0
    %1298 = vmatpush1.msra.mxu0 0.0
    %1299 = vmatprep.subr.mxu0 0.0
    %1300 = vmatpush1.msra.mxu0 0.0
    %1301 = vmatprep.subr.mxu0 0.0
    %1302 = vmatpush1.msra.mxu0 0.0
    %1303 = vmatprep.subr.mxu0 0.0
    %1304 = vmatpush1.msra.mxu0 0.0
    %1305 = vmatprep.subr.mxu0 0.0
    %1306 = vmatpush1.msra.mxu0 0.0
    %1307 = vmatprep.subr.mxu0 0.0
    %1308 = vmatpush1.msra.mxu0 0.0
    %1309 = vmatprep.subr.mxu0 0.0
    %1310 = vmatpush1.msra.mxu0 0.0
    %1311 = vmatprep.subr.mxu0 0.0
    %1312 = vmatpush1.msra.mxu0 0.0
    %1313 = vmatprep.subr.mxu0 0.0
    %1314 = vmatpush1.msra.mxu0 0.0
    %1315 = vmatprep.subr.mxu0 0.0
    %1316 = vmatpush1.msra.mxu0 0.0
    %1317 = vmatprep.subr.mxu0 0.0
    %1318 = vmatpush1.msra.mxu0 0.0
    %1319 = vmatprep.subr.mxu0 0.0
    %1320 = vmatpush1.msra.mxu0 0.0
    %1321 = vmatprep.subr.mxu0 0.0
    %1322 = vmatpush1.msra.mxu0 0.0
    %1323 = vmatprep.subr.mxu0 0.0
    %1324 = vmatpush1.msra.mxu0 0.0
    %1325 = vmatprep.subr.mxu0 0.0
    %1326 = vmatpush1.msra.mxu0 0.0
    %1327 = vmatprep.subr.mxu0 0.0
    %1328 = vmatpush1.msra.mxu0 0.0
    %1329 = vmatprep.subr.mxu0 0.0
    %1330 = vmatpush1.msra.mxu0 0.0
    %1331 = vmatprep.subr.mxu0 0.0
    %1332 = vmatpush1.msra.mxu0 0.0
    %1333 = vmatprep.mubr.f32.mxu0 0.0
    %v1334 = vand.u32 %v1086, 4294901760
    %v1335 = vsub.f32 %v1086, %v1334
    %1336 = vmatmul.mubr.f32.gmra.mrb[0].mxu0 %v1335
    %v1337 = vpop.f32.mrb[0].mxu0
    %v1338 = vadd.f32 %v1256, %v1337
    %v1339 = vpop.f32.mrb[0].mxu0
    %1340 = vmatprep.mubr.f32.mxu0 0.0
    %v1341 = vand.u32 %v1089, 4294901760
    %v1342 = vsub.f32 %v1089, %v1341
    %1343 = vmatmul.mubr.f32.gmra.mrb[0].mxu0 %v1342
    %v1344 = vpop.f32.mrb[0].mxu0
    %v1345 = vadd.f32 %v1262, %v1344
    %v1346 = vpop.f32.mrb[0].mxu0
    %1347 = vdwg.mxu0
    %1348 = vmatprep.subr.mxu0 0.0
    %v1349 = vand.u32 %v50, 4294901760
    %1350 = vmatpush1.msra.mxu0 %v1349
    %1351 = vmatprep.subr.mxu0 0.0
    %v1352 = vand.u32 %v51, 4294901760
    %1353 = vmatpush1.msra.mxu0 %v1352
    %1354 = vmatprep.subr.mxu0 0.0
    %1355 = vmatpush1.msra.mxu0 0.0
    %1356 = vmatprep.subr.mxu0 0.0
    %1357 = vmatpush1.msra.mxu0 0.0
    %1358 = vmatprep.subr.mxu0 0.0
    %1359 = vmatpush1.msra.mxu0 0.0
    %1360 = vmatprep.subr.mxu0 0.0
    %1361 = vmatpush1.msra.mxu0 0.0
    %1362 = vmatprep.subr.mxu0 0.0
    %1363 = vmatpush1.msra.mxu0 0.0
    %1364 = vmatprep.subr.mxu0 0.0
    %1365 = vmatpush1.msra.mxu0 0.0
    %1366 = vmatprep.subr.mxu0 0.0
    %1367 = vmatpush1.msra.mxu0 0.0
    %1368 = vmatprep.subr.mxu0 0.0
    %1369 = vmatpush1.msra.mxu0 0.0
    %1370 = vmatprep.subr.mxu0 0.0
    %1371 = vmatpush1.msra.mxu0 0.0
    %1372 = vmatprep.subr.mxu0 0.0
    %1373 = vmatpush1.msra.mxu0 0.0
    %1374 = vmatprep.subr.mxu0 0.0
    %1375 = vmatpush1.msra.mxu0 0.0
    %1376 = vmatprep.subr.mxu0 0.0
    %1377 = vmatpush1.msra.mxu0 0.0
    %1378 = vmatprep.subr.mxu0 0.0
    %1379 = vmatpush1.msra.mxu0 0.0
    %1380 = vmatprep.subr.mxu0 0.0
    %1381 = vmatpush1.msra.mxu0 0.0
    %1382 = vmatprep.subr.mxu0 0.0
    %1383 = vmatpush1.msra.mxu0 0.0
    %1384 = vmatprep.subr.mxu0 0.0
    %1385 = vmatpush1.msra.mxu0 0.0
    %1386 = vmatprep.subr.mxu0 0.0
    %1387 = vmatpush1.msra.mxu0 0.0
    %1388 = vmatprep.subr.mxu0 0.0
    %1389 = vmatpush1.msra.mxu0 0.0
    %1390 = vmatprep.subr.mxu0 0.0
    %1391 = vmatpush1.msra.mxu0 0.0
    %1392 = vmatprep.subr.mxu0 0.0
    %1393 = vmatpush1.msra.mxu0 0.0
    %1394 = vmatprep.subr.mxu0 0.0
    %1395 = vmatpush1.msra.mxu0 0.0
    %1396 = vmatprep.subr.mxu0 0.0
    %1397 = vmatpush1.msra.mxu0 0.0
    %1398 = vmatprep.subr.mxu0 0.0
    %1399 = vmatpush1.msra.mxu0 0.0
    %1400 = vmatprep.subr.mxu0 0.0
    %1401 = vmatpush1.msra.mxu0 0.0
    %1402 = vmatprep.subr.mxu0 0.0
    %1403 = vmatpush1.msra.mxu0 0.0
    %1404 = vmatprep.subr.mxu0 0.0
    %1405 = vmatpush1.msra.mxu0 0.0
    %1406 = vmatprep.subr.mxu0 0.0
    %1407 = vmatpush1.msra.mxu0 0.0
    %1408 = vmatprep.subr.mxu0 0.0
    %1409 = vmatpush1.msra.mxu0 0.0
    %1410 = vmatprep.subr.mxu0 0.0
    %1411 = vmatpush1.msra.mxu0 0.0
    %1412 = vmatprep.subr.mxu0 0.0
    %1413 = vmatpush1.msra.mxu0 0.0
    %1414 = vmatprep.mubr.f32.mxu0 0.0
    %v1415 = vand.u32 %v1086, 4294901760
    %v1416 = vsub.f32 %v1086, %v1415
    %v1417 = vand.u32 %v1416, 4294901760
    %1418 = vmatmul.mubr.f32.gmra.mrb[0].mxu0 %v1417
    %v1419 = vpop.f32.mrb[0].mxu0
    %v1420 = vadd.f32 %v1338, %v1419
    %v1421 = vpop.f32.mrb[0].mxu0
    %1422 = vmatprep.mubr.f32.mxu0 0.0
    %v1423 = vand.u32 %v1089, 4294901760
    %v1424 = vsub.f32 %v1089, %v1423
    %v1425 = vand.u32 %v1424, 4294901760
    %1426 = vmatmul.mubr.f32.gmra.mrb[0].mxu0 %v1425
    %v1427 = vpop.f32.mrb[0].mxu0
    %v1428 = vadd.f32 %v1345, %v1427
    %v1429 = vpop.f32.mrb[0].mxu0
    %1430 = vdwg.mxu0
    %1431 = vmatprep.subr.mxu0 0.0
    %v1432 = vand.u32 %v50, 4294901760
    %v1433 = vsub.f32 %v50, %v1432
    %v1434 = vand.u32 %v1433, 4294901760
    %1435 = vmatpush1.msra.mxu0 %v1434
    %1436 = vmatprep.subr.mxu0 0.0
    %v1437 = vand.u32 %v51, 4294901760
    %v1438 = vsub.f32 %v51, %v1437
    %v1439 = vand.u32 %v1438, 4294901760
    %1440 = vmatpush1.msra.mxu0 %v1439
    %1441 = vmatprep.subr.mxu0 0.0
    %1442 = vmatpush1.msra.mxu0 0.0
    %1443 = vmatprep.subr.mxu0 0.0
    %1444 = vmatpush1.msra.mxu0 0.0
    %1445 = vmatprep.subr.mxu0 0.0
    %1446 = vmatpush1.msra.mxu0 0.0
    %1447 = vmatprep.subr.mxu0 0.0
    %1448 = vmatpush1.msra.mxu0 0.0
    %1449 = vmatprep.subr.mxu0 0.0
    %1450 = vmatpush1.msra.mxu0 0.0
    %1451 = vmatprep.subr.mxu0 0.0
    %1452 = vmatpush1.msra.mxu0 0.0
    %1453 = vmatprep.subr.mxu0 0.0
    %1454 = vmatpush1.msra.mxu0 0.0
    %1455 = vmatprep.subr.mxu0 0.0
    %1456 = vmatpush1.msra.mxu0 0.0
    %1457 = vmatprep.subr.mxu0 0.0
    %1458 = vmatpush1.msra.mxu0 0.0
    %1459 = vmatprep.subr.mxu0 0.0
    %1460 = vmatpush1.msra.mxu0 0.0
    %1461 = vmatprep.subr.mxu0 0.0
    %1462 = vmatpush1.msra.mxu0 0.0
    %1463 = vmatprep.subr.mxu0 0.0
    %1464 = vmatpush1.msra.mxu0 0.0
    %1465 = vmatprep.subr.mxu0 0.0
    %1466 = vmatpush1.msra.mxu0 0.0
    %1467 = vmatprep.subr.mxu0 0.0
    %1468 = vmatpush1.msra.mxu0 0.0
    %1469 = vmatprep.subr.mxu0 0.0
    %1470 = vmatpush1.msra.mxu0 0.0
    %1471 = vmatprep.subr.mxu0 0.0
    %1472 = vmatpush1.msra.mxu0 0.0
    %1473 = vmatprep.subr.mxu0 0.0
    %1474 = vmatpush1.msra.mxu0 0.0
    %1475 = vmatprep.subr.mxu0 0.0
    %1476 = vmatpush1.msra.mxu0 0.0
    %1477 = vmatprep.subr.mxu0 0.0
    %1478 = vmatpush1.msra.mxu0 0.0
    %1479 = vmatprep.subr.mxu0 0.0
    %1480 = vmatpush1.msra.mxu0 0.0
    %1481 = vmatprep.subr.mxu0 0.0
    %1482 = vmatpush1.msra.mxu0 0.0
    %1483 = vmatprep.subr.mxu0 0.0
    %1484 = vmatpush1.msra.mxu0 0.0
    %1485 = vmatprep.subr.mxu0 0.0
    %1486 = vmatpush1.msra.mxu0 0.0
    %1487 = vmatprep.subr.mxu0 0.0
    %1488 = vmatpush1.msra.mxu0 0.0
    %1489 = vmatprep.subr.mxu0 0.0
    %1490 = vmatpush1.msra.mxu0 0.0
    %1491 = vmatprep.subr.mxu0 0.0
    %1492 = vmatpush1.msra.mxu0 0.0
    %1493 = vmatprep.subr.mxu0 0.0
    %1494 = vmatpush1.msra.mxu0 0.0
    %1495 = vmatprep.subr.mxu0 0.0
    %1496 = vmatpush1.msra.mxu0 0.0
    %1497 = vmatprep.subr.mxu0 0.0
    %1498 = vmatpush1.msra.mxu0 0.0
    %1499 = vmatprep.subr.mxu0 0.0
    %1500 = vmatpush1.msra.mxu0 0.0
    %1501 = vmatprep.mubr.f32.mxu0 0.0
    %v1502 = vand.u32 %v1086, 4294901760
    %1503 = vmatmul.mubr.f32.gmra.mrb[0].mxu0 %v1502
    %v1504 = vpop.f32.mrb[0].mxu0
    %v1505 = vadd.f32 %v1420, %v1504
    %v1506 = vpop.f32.mrb[0].mxu0
    %1507 = vmatprep.mubr.f32.mxu0 0.0
    %v1508 = vand.u32 %v1089, 4294901760
    %1509 = vmatmul.mubr.f32.gmra.mrb[0].mxu0 %v1508
    %v1510 = vpop.f32.mrb[0].mxu0
    %v1511 = vadd.f32 %v1428, %v1510
    %v1512 = vpop.f32.mrb[0].mxu0
    %1513 = vdwg.mxu0
    %1514 = vmatprep.subr.mxu0 0.0
    %v1515 = vand.u32 %v50, 4294901760
    %1516 = vmatpush1.msra.mxu0 %v1515
    %1517 = vmatprep.subr.mxu0 0.0
    %v1518 = vand.u32 %v51, 4294901760
    %1519 = vmatpush1.msra.mxu0 %v1518
    %1520 = vmatprep.subr.mxu0 0.0
    %1521 = vmatpush1.msra.mxu0 0.0
    %1522 = vmatprep.subr.mxu0 0.0
    %1523 = vmatpush1.msra.mxu0 0.0
    %1524 = vmatprep.subr.mxu0 0.0
    %1525 = vmatpush1.msra.mxu0 0.0
    %1526 = vmatprep.subr.mxu0 0.0
    %1527 = vmatpush1.msra.mxu0 0.0
    %1528 = vmatprep.subr.mxu0 0.0
    %1529 = vmatpush1.msra.mxu0 0.0
    %1530 = vmatprep.subr.mxu0 0.0
    %1531 = vmatpush1.msra.mxu0 0.0
    %1532 = vmatprep.subr.mxu0 0.0
    %1533 = vmatpush1.msra.mxu0 0.0
    %1534 = vmatprep.subr.mxu0 0.0
    %1535 = vmatpush1.msra.mxu0 0.0
    %1536 = vmatprep.subr.mxu0 0.0
    %1537 = vmatpush1.msra.mxu0 0.0
    %1538 = vmatprep.subr.mxu0 0.0
    %1539 = vmatpush1.msra.mxu0 0.0
    %1540 = vmatprep.subr.mxu0 0.0
    %1541 = vmatpush1.msra.mxu0 0.0
    %1542 = vmatprep.subr.mxu0 0.0
    %1543 = vmatpush1.msra.mxu0 0.0
    %1544 = vmatprep.subr.mxu0 0.0
    %1545 = vmatpush1.msra.mxu0 0.0
    %1546 = vmatprep.subr.mxu0 0.0
    %1547 = vmatpush1.msra.mxu0 0.0
    %1548 = vmatprep.subr.mxu0 0.0
    %1549 = vmatpush1.msra.mxu0 0.0
    %1550 = vmatprep.subr.mxu0 0.0
    %1551 = vmatpush1.msra.mxu0 0.0
    %1552 = vmatprep.subr.mxu0 0.0
    %1553 = vmatpush1.msra.mxu0 0.0
    %1554 = vmatprep.subr.mxu0 0.0
    %1555 = vmatpush1.msra.mxu0 0.0
    %1556 = vmatprep.subr.mxu0 0.0
    %1557 = vmatpush1.msra.mxu0 0.0
    %1558 = vmatprep.subr.mxu0 0.0
    %1559 = vmatpush1.msra.mxu0 0.0
    %1560 = vmatprep.subr.mxu0 0.0
    %1561 = vmatpush1.msra.mxu0 0.0
    %1562 = vmatprep.subr.mxu0 0.0
    %1563 = vmatpush1.msra.mxu0 0.0
    %1564 = vmatprep.subr.mxu0 0.0
    %1565 = vmatpush1.msra.mxu0 0.0
    %1566 = vmatprep.subr.mxu0 0.0
    %1567 = vmatpush1.msra.mxu0 0.0
    %1568 = vmatprep.subr.mxu0 0.0
    %1569 = vmatpush1.msra.mxu0 0.0
    %1570 = vmatprep.subr.mxu0 0.0
    %1571 = vmatpush1.msra.mxu0 0.0
    %1572 = vmatprep.subr.mxu0 0.0
    %1573 = vmatpush1.msra.mxu0 0.0
    %1574 = vmatprep.subr.mxu0 0.0
    %1575 = vmatpush1.msra.mxu0 0.0
    %1576 = vmatprep.subr.mxu0 0.0
    %1577 = vmatpush1.msra.mxu0 0.0
    %1578 = vmatprep.subr.mxu0 0.0
    %1579 = vmatpush1.msra.mxu0 0.0
    %1580 = vmatprep.mubr.f32.mxu0 0.0
    %v1581 = vand.u32 %v1086, 4294901760
    %1582 = vmatmul.mubr.f32.gmra.mrb[0].mxu0 %v1581
    %v1583 = vpop.f32.mrb[0].mxu0
    %v1584 = vadd.f32 %v1505, %v1583
    %v1585 = vpop.f32.mrb[0].mxu0
    %1586 = vmatprep.mubr.f32.mxu0 0.0
    %v1587 = vand.u32 %v1089, 4294901760
    %1588 = vmatmul.mubr.f32.gmra.mrb[0].mxu0 %v1587
    %v1589 = vpop.f32.mrb[0].mxu0
    %v1590 = vadd.f32 %v1511, %v1589
    %v1591 = vpop.f32.mrb[0].mxu0
    %1592 = vdwg.mxu0
    %v1593 = vadd.f32 %v1073, %v1584
    %v1594 = vadd.f32 %v1079, %v1590
    %s1595 = scalar_lea.vmem [#allocation2], 48
    %v1596 = vld [vmem:[%s1595] sm:$0xff]
    %v1597 = vld [vmem:[%s1595 + $0x8] sm:$0xff]
    %v1599 = vsel %vm65, %v1596, 0
    %v1602 = vsel %vm65, %v1597, 0
    %1604 = vmatprep.subr.mxu0 0.0
    %v1605 = vand.u32 %v58, 4294901760
    %1606 = vmatpush1.msra.mxu0 %v1605
    %1607 = vmatprep.subr.mxu0 0.0
    %v1608 = vand.u32 %v59, 4294901760
    %1609 = vmatpush1.msra.mxu0 %v1608
    %1610 = vmatprep.subr.mxu0 0.0
    %1611 = vmatpush1.msra.mxu0 0.0
    %1612 = vmatprep.subr.mxu0 0.0
    %1613 = vmatpush1.msra.mxu0 0.0
    %1614 = vmatprep.subr.mxu0 0.0
    %1615 = vmatpush1.msra.mxu0 0.0
    %1616 = vmatprep.subr.mxu0 0.0
    %1617 = vmatpush1.msra.mxu0 0.0
    %1618 = vmatprep.subr.mxu0 0.0
    %1619 = vmatpush1.msra.mxu0 0.0
    %1620 = vmatprep.subr.mxu0 0.0
    %1621 = vmatpush1.msra.mxu0 0.0
    %1622 = vmatprep.subr.mxu0 0.0
    %1623 = vmatpush1.msra.mxu0 0.0
    %1624 = vmatprep.subr.mxu0 0.0
    %1625 = vmatpush1.msra.mxu0 0.0
    %1626 = vmatprep.subr.mxu0 0.0
    %1627 = vmatpush1.msra.mxu0 0.0
    %1628 = vmatprep.subr.mxu0 0.0
    %1629 = vmatpush1.msra.mxu0 0.0
    %1630 = vmatprep.subr.mxu0 0.0
    %1631 = vmatpush1.msra.mxu0 0.0
    %1632 = vmatprep.subr.mxu0 0.0
    %1633 = vmatpush1.msra.mxu0 0.0
    %1634 = vmatprep.subr.mxu0 0.0
    %1635 = vmatpush1.msra.mxu0 0.0
    %1636 = vmatprep.subr.mxu0 0.0
    %1637 = vmatpush1.msra.mxu0 0.0
    %1638 = vmatprep.subr.mxu0 0.0
    %1639 = vmatpush1.msra.mxu0 0.0
    %1640 = vmatprep.subr.mxu0 0.0
    %1641 = vmatpush1.msra.mxu0 0.0
    %1642 = vmatprep.subr.mxu0 0.0
    %1643 = vmatpush1.msra.mxu0 0.0
    %1644 = vmatprep.subr.mxu0 0.0
    %1645 = vmatpush1.msra.mxu0 0.0
    %1646 = vmatprep.subr.mxu0 0.0
    %1647 = vmatpush1.msra.mxu0 0.0
    %1648 = vmatprep.subr.mxu0 0.0
    %1649 = vmatpush1.msra.mxu0 0.0
    %1650 = vmatprep.subr.mxu0 0.0
    %1651 = vmatpush1.msra.mxu0 0.0
    %1652 = vmatprep.subr.mxu0 0.0
    %1653 = vmatpush1.msra.mxu0 0.0
    %1654 = vmatprep.subr.mxu0 0.0
    %1655 = vmatpush1.msra.mxu0 0.0
    %1656 = vmatprep.subr.mxu0 0.0
    %1657 = vmatpush1.msra.mxu0 0.0
    %1658 = vmatprep.subr.mxu0 0.0
    %1659 = vmatpush1.msra.mxu0 0.0
    %1660 = vmatprep.subr.mxu0 0.0
    %1661 = vmatpush1.msra.mxu0 0.0
    %1662 = vmatprep.subr.mxu0 0.0
    %1663 = vmatpush1.msra.mxu0 0.0
    %1664 = vmatprep.subr.mxu0 0.0
    %1665 = vmatpush1.msra.mxu0 0.0
    %1666 = vmatprep.subr.mxu0 0.0
    %1667 = vmatpush1.msra.mxu0 0.0
    %1668 = vmatprep.subr.mxu0 0.0
    %1669 = vmatpush1.msra.mxu0 0.0
    %1670 = vmatprep.mubr.f32.mxu0 0.0
    %v1671 = vand.u32 %v1599, 4294901760
    %v1672 = vsub.f32 %v1599, %v1671
    %v1673 = vand.u32 %v1672, 4294901760
    %v1674 = vsub.f32 %v1672, %v1673
    %v1675 = vand.u32 %v1674, 4294901760
    %1676 = vmatmul.mubr.f32.gmra.mrb[0].mxu0 %v1675
    %v1677 = vpop.f32.mrb[0].mxu0
    %v1678 = vadd.f32 0.0, %v1677
    %v1679 = vpop.f32.mrb[0].mxu0
    %1680 = vmatprep.mubr.f32.mxu0 0.0
    %v1681 = vand.u32 %v1602, 4294901760
    %v1682 = vsub.f32 %v1602, %v1681
    %v1683 = vand.u32 %v1682, 4294901760
    %v1684 = vsub.f32 %v1682, %v1683
    %v1685 = vand.u32 %v1684, 4294901760
    %1686 = vmatmul.mubr.f32.gmra.mrb[0].mxu0 %v1685
    %v1687 = vpop.f32.mrb[0].mxu0
    %v1688 = vadd.f32 0.0, %v1687
    %v1689 = vpop.f32.mrb[0].mxu0
    %1690 = vdwg.mxu0
    %1691 = vmatprep.subr.mxu0 0.0
    %v1692 = vand.u32 %v58, 4294901760
    %v1693 = vsub.f32 %v58, %v1692
    %v1694 = vand.u32 %v1693, 4294901760
    %v1695 = vsub.f32 %v1693, %v1694
    %v1696 = vand.u32 %v1695, 4294901760
    %1697 = vmatpush1.msra.mxu0 %v1696
    %1698 = vmatprep.subr.mxu0 0.0
    %v1699 = vand.u32 %v59, 4294901760
    %v1700 = vsub.f32 %v59, %v1699
    %v1701 = vand.u32 %v1700, 4294901760
    %v1702 = vsub.f32 %v1700, %v1701
    %v1703 = vand.u32 %v1702, 4294901760
    %1704 = vmatpush1.msra.mxu0 %v1703
    %1705 = vmatprep.subr.mxu0 0.0
    %1706 = vmatpush1.msra.mxu0 0.0
    %1707 = vmatprep.subr.mxu0 0.0
    %1708 = vmatpush1.msra.mxu0 0.0
    %1709 = vmatprep.subr.mxu0 0.0
    %1710 = vmatpush1.msra.mxu0 0.0
    %1711 = vmatprep.subr.mxu0 0.0
    %1712 = vmatpush1.msra.mxu0 0.0
    %1713 = vmatprep.subr.mxu0 0.0
    %1714 = vmatpush1.msra.mxu0 0.0
    %1715 = vmatprep.subr.mxu0 0.0
    %1716 = vmatpush1.msra.mxu0 0.0
    %1717 = vmatprep.subr.mxu0 0.0
    %1718 = vmatpush1.msra.mxu0 0.0
    %1719 = vmatprep.subr.mxu0 0.0
    %1720 = vmatpush1.msra.mxu0 0.0
    %1721 = vmatprep.subr.mxu0 0.0
    %1722 = vmatpush1.msra.mxu0 0.0
    %1723 = vmatprep.subr.mxu0 0.0
    %1724 = vmatpush1.msra.mxu0 0.0
    %1725 = vmatprep.subr.mxu0 0.0
    %1726 = vmatpush1.msra.mxu0 0.0
    %1727 = vmatprep.subr.mxu0 0.0
    %1728 = vmatpush1.msra.mxu0 0.0
    %1729 = vmatprep.subr.mxu0 0.0
    %1730 = vmatpush1.msra.mxu0 0.0
    %1731 = vmatprep.subr.mxu0 0.0
    %1732 = vmatpush1.msra.mxu0 0.0
    %1733 = vmatprep.subr.mxu0 0.0
    %1734 = vmatpush1.msra.mxu0 0.0
    %1735 = vmatprep.subr.mxu0 0.0
    %1736 = vmatpush1.msra.mxu0 0.0
    %1737 = vmatprep.subr.mxu0 0.0
    %1738 = vmatpush1.msra.mxu0 0.0
    %1739 = vmatprep.subr.mxu0 0.0
    %1740 = vmatpush1.msra.mxu0 0.0
    %1741 = vmatprep.subr.mxu0 0.0
    %1742 = vmatpush1.msra.mxu0 0.0
    %1743 = vmatprep.subr.mxu0 0.0
    %1744 = vmatpush1.msra.mxu0 0.0
    %1745 = vmatprep.subr.mxu0 0.0
    %1746 = vmatpush1.msra.mxu0 0.0
    %1747 = vmatprep.subr.mxu0 0.0
    %1748 = vmatpush1.msra.mxu0 0.0
    %1749 = vmatprep.subr.mxu0 0.0
    %1750 = vmatpush1.msra.mxu0 0.0
    %1751 = vmatprep.subr.mxu0 0.0
    %1752 = vmatpush1.msra.mxu0 0.0
    %1753 = vmatprep.subr.mxu0 0.0
    %1754 = vmatpush1.msra.mxu0 0.0
    %1755 = vmatprep.subr.mxu0 0.0
    %1756 = vmatpush1.msra.mxu0 0.0
    %1757 = vmatprep.subr.mxu0 0.0
    %1758 = vmatpush1.msra.mxu0 0.0
    %1759 = vmatprep.subr.mxu0 0.0
    %1760 = vmatpush1.msra.mxu0 0.0
    %1761 = vmatprep.subr.mxu0 0.0
    %1762 = vmatpush1.msra.mxu0 0.0
    %1763 = vmatprep.subr.mxu0 0.0
    %1764 = vmatpush1.msra.mxu0 0.0
    %1765 = vmatprep.mubr.f32.mxu0 0.0
    %v1766 = vand.u32 %v1599, 4294901760
    %1767 = vmatmul.mubr.f32.gmra.mrb[0].mxu0 %v1766
    %v1768 = vpop.f32.mrb[0].mxu0
    %v1769 = vadd.f32 %v1678, %v1768
    %v1770 = vpop.f32.mrb[0].mxu0
    %1771 = vmatprep.mubr.f32.mxu0 0.0
    %v1772 = vand.u32 %v1602, 4294901760
    %1773 = vmatmul.mubr.f32.gmra.mrb[0].mxu0 %v1772
    %v1774 = vpop.f32.mrb[0].mxu0
    %v1775 = vadd.f32 %v1688, %v1774
    %v1776 = vpop.f32.mrb[0].mxu0
    %1777 = vdwg.mxu0
    %1778 = vmatprep.subr.mxu0 0.0
    %v1779 = vand.u32 %v58, 4294901760
    %v1780 = vsub.f32 %v58, %v1779
    %1781 = vmatpush1.msra.mxu0 %v1780
    %1782 = vmatprep.subr.mxu0 0.0
    %v1783 = vand.u32 %v59, 4294901760
    %v1784 = vsub.f32 %v59, %v1783
    %1785 = vmatpush1.msra.mxu0 %v1784
    %1786 = vmatprep.subr.mxu0 0.0
    %1787 = vmatpush1.msra.mxu0 0.0
    %1788 = vmatprep.subr.mxu0 0.0
    %1789 = vmatpush1.msra.mxu0 0.0
    %1790 = vmatprep.subr.mxu0 0.0
    %1791 = vmatpush1.msra.mxu0 0.0
    %1792 = vmatprep.subr.mxu0 0.0
    %1793 = vmatpush1.msra.mxu0 0.0
    %1794 = vmatprep.subr.mxu0 0.0
    %1795 = vmatpush1.msra.mxu0 0.0
    %1796 = vmatprep.subr.mxu0 0.0
    %1797 = vmatpush1.msra.mxu0 0.0
    %1798 = vmatprep.subr.mxu0 0.0
    %1799 = vmatpush1.msra.mxu0 0.0
    %1800 = vmatprep.subr.mxu0 0.0
    %1801 = vmatpush1.msra.mxu0 0.0
    %1802 = vmatprep.subr.mxu0 0.0
    %1803 = vmatpush1.msra.mxu0 0.0
    %1804 = vmatprep.subr.mxu0 0.0
    %1805 = vmatpush1.msra.mxu0 0.0
    %1806 = vmatprep.subr.mxu0 0.0
    %1807 = vmatpush1.msra.mxu0 0.0
    %1808 = vmatprep.subr.mxu0 0.0
    %1809 = vmatpush1.msra.mxu0 0.0
    %1810 = vmatprep.subr.mxu0 0.0
    %1811 = vmatpush1.msra.mxu0 0.0
    %1812 = vmatprep.subr.mxu0 0.0
    %1813 = vmatpush1.msra.mxu0 0.0
    %1814 = vmatprep.subr.mxu0 0.0
    %1815 = vmatpush1.msra.mxu0 0.0
    %1816 = vmatprep.subr.mxu0 0.0
    %1817 = vmatpush1.msra.mxu0 0.0
    %1818 = vmatprep.subr.mxu0 0.0
    %1819 = vmatpush1.msra.mxu0 0.0
    %1820 = vmatprep.subr.mxu0 0.0
    %1821 = vmatpush1.msra.mxu0 0.0
    %1822 = vmatprep.subr.mxu0 0.0
    %1823 = vmatpush1.msra.mxu0 0.0
    %1824 = vmatprep.subr.mxu0 0.0
    %1825 = vmatpush1.msra.mxu0 0.0
    %1826 = vmatprep.subr.mxu0 0.0
    %1827 = vmatpush1.msra.mxu0 0.0
    %1828 = vmatprep.subr.mxu0 0.0
    %1829 = vmatpush1.msra.mxu0 0.0
    %1830 = vmatprep.subr.mxu0 0.0
    %1831 = vmatpush1.msra.mxu0 0.0
    %1832 = vmatprep.subr.mxu0 0.0
    %1833 = vmatpush1.msra.mxu0 0.0
    %1834 = vmatprep.subr.mxu0 0.0
    %1835 = vmatpush1.msra.mxu0 0.0
    %1836 = vmatprep.subr.mxu0 0.0
    %1837 = vmatpush1.msra.mxu0 0.0
    %1838 = vmatprep.subr.mxu0 0.0
    %1839 = vmatpush1.msra.mxu0 0.0
    %1840 = vmatprep.subr.mxu0 0.0
    %1841 = vmatpush1.msra.mxu0 0.0
    %1842 = vmatprep.subr.mxu0 0.0
    %1843 = vmatpush1.msra.mxu0 0.0
    %1844 = vmatprep.subr.mxu0 0.0
    %1845 = vmatpush1.msra.mxu0 0.0
    %1846 = vmatprep.mubr.f32.mxu0 0.0
    %v1847 = vand.u32 %v1599, 4294901760
    %v1848 = vsub.f32 %v1599, %v1847
    %1849 = vmatmul.mubr.f32.gmra.mrb[0].mxu0 %v1848
    %v1850 = vpop.f32.mrb[0].mxu0
    %v1851 = vadd.f32 %v1769, %v1850
    %v1852 = vpop.f32.mrb[0].mxu0
    %1853 = vmatprep.mubr.f32.mxu0 0.0
    %v1854 = vand.u32 %v1602, 4294901760
    %v1855 = vsub.f32 %v1602, %v1854
    %1856 = vmatmul.mubr.f32.gmra.mrb[0].mxu0 %v1855
    %v1857 = vpop.f32.mrb[0].mxu0
    %v1858 = vadd.f32 %v1775, %v1857
    %v1859 = vpop.f32.mrb[0].mxu0
    %1860 = vdwg.mxu0
    %1861 = vmatprep.subr.mxu0 0.0
    %v1862 = vand.u32 %v58, 4294901760
    %1863 = vmatpush1.msra.mxu0 %v1862
    %1864 = vmatprep.subr.mxu0 0.0
    %v1865 = vand.u32 %v59, 4294901760
    %1866 = vmatpush1.msra.mxu0 %v1865
    %1867 = vmatprep.subr.mxu0 0.0
    %1868 = vmatpush1.msra.mxu0 0.0
    %1869 = vmatprep.subr.mxu0 0.0
    %1870 = vmatpush1.msra.mxu0 0.0
    %1871 = vmatprep.subr.mxu0 0.0
    %1872 = vmatpush1.msra.mxu0 0.0
    %1873 = vmatprep.subr.mxu0 0.0
    %1874 = vmatpush1.msra.mxu0 0.0
    %1875 = vmatprep.subr.mxu0 0.0
    %1876 = vmatpush1.msra.mxu0 0.0
    %1877 = vmatprep.subr.mxu0 0.0
    %1878 = vmatpush1.msra.mxu0 0.0
    %1879 = vmatprep.subr.mxu0 0.0
    %1880 = vmatpush1.msra.mxu0 0.0
    %1881 = vmatprep.subr.mxu0 0.0
    %1882 = vmatpush1.msra.mxu0 0.0
    %1883 = vmatprep.subr.mxu0 0.0
    %1884 = vmatpush1.msra.mxu0 0.0
    %1885 = vmatprep.subr.mxu0 0.0
    %1886 = vmatpush1.msra.mxu0 0.0
    %1887 = vmatprep.subr.mxu0 0.0
    %1888 = vmatpush1.msra.mxu0 0.0
    %1889 = vmatprep.subr.mxu0 0.0
    %1890 = vmatpush1.msra.mxu0 0.0
    %1891 = vmatprep.subr.mxu0 0.0
    %1892 = vmatpush1.msra.mxu0 0.0
    %1893 = vmatprep.subr.mxu0 0.0
    %1894 = vmatpush1.msra.mxu0 0.0
    %1895 = vmatprep.subr.mxu0 0.0
    %1896 = vmatpush1.msra.mxu0 0.0
    %1897 = vmatprep.subr.mxu0 0.0
    %1898 = vmatpush1.msra.mxu0 0.0
    %1899 = vmatprep.subr.mxu0 0.0
    %1900 = vmatpush1.msra.mxu0 0.0
    %1901 = vmatprep.subr.mxu0 0.0
    %1902 = vmatpush1.msra.mxu0 0.0
    %1903 = vmatprep.subr.mxu0 0.0
    %1904 = vmatpush1.msra.mxu0 0.0
    %1905 = vmatprep.subr.mxu0 0.0
    %1906 = vmatpush1.msra.mxu0 0.0
    %1907 = vmatprep.subr.mxu0 0.0
    %1908 = vmatpush1.msra.mxu0 0.0
    %1909 = vmatprep.subr.mxu0 0.0
    %1910 = vmatpush1.msra.mxu0 0.0
    %1911 = vmatprep.subr.mxu0 0.0
    %1912 = vmatpush1.msra.mxu0 0.0
    %1913 = vmatprep.subr.mxu0 0.0
    %1914 = vmatpush1.msra.mxu0 0.0
    %1915 = vmatprep.subr.mxu0 0.0
    %1916 = vmatpush1.msra.mxu0 0.0
    %1917 = vmatprep.subr.mxu0 0.0
    %1918 = vmatpush1.msra.mxu0 0.0
    %1919 = vmatprep.subr.mxu0 0.0
    %1920 = vmatpush1.msra.mxu0 0.0
    %1921 = vmatprep.subr.mxu0 0.0
    %1922 = vmatpush1.msra.mxu0 0.0
    %1923 = vmatprep.subr.mxu0 0.0
    %1924 = vmatpush1.msra.mxu0 0.0
    %1925 = vmatprep.subr.mxu0 0.0
    %1926 = vmatpush1.msra.mxu0 0.0
    %1927 = vmatprep.mubr.f32.mxu0 0.0
    %v1928 = vand.u32 %v1599, 4294901760
    %v1929 = vsub.f32 %v1599, %v1928
    %v1930 = vand.u32 %v1929, 4294901760
    %1931 = vmatmul.mubr.f32.gmra.mrb[0].mxu0 %v1930
    %v1932 = vpop.f32.mrb[0].mxu0
    %v1933 = vadd.f32 %v1851, %v1932
    %v1934 = vpop.f32.mrb[0].mxu0
    %1935 = vmatprep.mubr.f32.mxu0 0.0
    %v1936 = vand.u32 %v1602, 4294901760
    %v1937 = vsub.f32 %v1602, %v1936
    %v1938 = vand.u32 %v1937, 4294901760
    %1939 = vmatmul.mubr.f32.gmra.mrb[0].mxu0 %v1938
    %v1940 = vpop.f32.mrb[0].mxu0
    %v1941 = vadd.f32 %v1858, %v1940
    %v1942 = vpop.f32.mrb[0].mxu0
    %1943 = vdwg.mxu0
    %1944 = vmatprep.subr.mxu0 0.0
    %v1945 = vand.u32 %v58, 4294901760
    %v1946 = vsub.f32 %v58, %v1945
    %v1947 = vand.u32 %v1946, 4294901760
    %1948 = vmatpush1.msra.mxu0 %v1947
    %1949 = vmatprep.subr.mxu0 0.0
    %v1950 = vand.u32 %v59, 4294901760
    %v1951 = vsub.f32 %v59, %v1950
    %v1952 = vand.u32 %v1951, 4294901760
    %1953 = vmatpush1.msra.mxu0 %v1952
    %1954 = vmatprep.subr.mxu0 0.0
    %1955 = vmatpush1.msra.mxu0 0.0
    %1956 = vmatprep.subr.mxu0 0.0
    %1957 = vmatpush1.msra.mxu0 0.0
    %1958 = vmatprep.subr.mxu0 0.0
    %1959 = vmatpush1.msra.mxu0 0.0
    %1960 = vmatprep.subr.mxu0 0.0
    %1961 = vmatpush1.msra.mxu0 0.0
    %1962 = vmatprep.subr.mxu0 0.0
    %1963 = vmatpush1.msra.mxu0 0.0
    %1964 = vmatprep.subr.mxu0 0.0
    %1965 = vmatpush1.msra.mxu0 0.0
    %1966 = vmatprep.subr.mxu0 0.0
    %1967 = vmatpush1.msra.mxu0 0.0
    %1968 = vmatprep.subr.mxu0 0.0
    %1969 = vmatpush1.msra.mxu0 0.0
    %1970 = vmatprep.subr.mxu0 0.0
    %1971 = vmatpush1.msra.mxu0 0.0
    %1972 = vmatprep.subr.mxu0 0.0
    %1973 = vmatpush1.msra.mxu0 0.0
    %1974 = vmatprep.subr.mxu0 0.0
    %1975 = vmatpush1.msra.mxu0 0.0
    %1976 = vmatprep.subr.mxu0 0.0
    %1977 = vmatpush1.msra.mxu0 0.0
    %1978 = vmatprep.subr.mxu0 0.0
    %1979 = vmatpush1.msra.mxu0 0.0
    %1980 = vmatprep.subr.mxu0 0.0
    %1981 = vmatpush1.msra.mxu0 0.0
    %1982 = vmatprep.subr.mxu0 0.0
    %1983 = vmatpush1.msra.mxu0 0.0
    %1984 = vmatprep.subr.mxu0 0.0
    %1985 = vmatpush1.msra.mxu0 0.0
    %1986 = vmatprep.subr.mxu0 0.0
    %1987 = vmatpush1.msra.mxu0 0.0
    %1988 = vmatprep.subr.mxu0 0.0
    %1989 = vmatpush1.msra.mxu0 0.0
    %1990 = vmatprep.subr.mxu0 0.0
    %1991 = vmatpush1.msra.mxu0 0.0
    %1992 = vmatprep.subr.mxu0 0.0
    %1993 = vmatpush1.msra.mxu0 0.0
    %1994 = vmatprep.subr.mxu0 0.0
    %1995 = vmatpush1.msra.mxu0 0.0
    %1996 = vmatprep.subr.mxu0 0.0
    %1997 = vmatpush1.msra.mxu0 0.0
    %1998 = vmatprep.subr.mxu0 0.0
    %1999 = vmatpush1.msra.mxu0 0.0
    %2000 = vmatprep.subr.mxu0 0.0
    %2001 = vmatpush1.msra.mxu0 0.0
    %2002 = vmatprep.subr.mxu0 0.0
    %2003 = vmatpush1.msra.mxu0 0.0
    %2004 = vmatprep.subr.mxu0 0.0
    %2005 = vmatpush1.msra.mxu0 0.0
    %2006 = vmatprep.subr.mxu0 0.0
    %2007 = vmatpush1.msra.mxu0 0.0
    %2008 = vmatprep.subr.mxu0 0.0
    %2009 = vmatpush1.msra.mxu0 0.0
    %2010 = vmatprep.subr.mxu0 0.0
    %2011 = vmatpush1.msra.mxu0 0.0
    %2012 = vmatprep.subr.mxu0 0.0
    %2013 = vmatpush1.msra.mxu0 0.0
    %2014 = vmatprep.mubr.f32.mxu0 0.0
    %v2015 = vand.u32 %v1599, 4294901760
    %2016 = vmatmul.mubr.f32.gmra.mrb[0].mxu0 %v2015
    %v2017 = vpop.f32.mrb[0].mxu0
    %v2018 = vadd.f32 %v1933, %v2017
    %v2019 = vpop.f32.mrb[0].mxu0
    %2020 = vmatprep.mubr.f32.mxu0 0.0
    %v2021 = vand.u32 %v1602, 4294901760
    %2022 = vmatmul.mubr.f32.gmra.mrb[0].mxu0 %v2021
    %v2023 = vpop.f32.mrb[0].mxu0
    %v2024 = vadd.f32 %v1941, %v2023
    %v2025 = vpop.f32.mrb[0].mxu0
    %2026 = vdwg.mxu0
    %2027 = vmatprep.subr.mxu0 0.0
    %v2028 = vand.u32 %v58, 4294901760
    %2029 = vmatpush1.msra.mxu0 %v2028
    %2030 = vmatprep.subr.mxu0 0.0
    %v2031 = vand.u32 %v59, 4294901760
    %2032 = vmatpush1.msra.mxu0 %v2031
    %2033 = vmatprep.subr.mxu0 0.0
    %2034 = vmatpush1.msra.mxu0 0.0
    %2035 = vmatprep.subr.mxu0 0.0
    %2036 = vmatpush1.msra.mxu0 0.0
    %2037 = vmatprep.subr.mxu0 0.0
    %2038 = vmatpush1.msra.mxu0 0.0
    %2039 = vmatprep.subr.mxu0 0.0
    %2040 = vmatpush1.msra.mxu0 0.0
    %2041 = vmatprep.subr.mxu0 0.0
    %2042 = vmatpush1.msra.mxu0 0.0
    %2043 = vmatprep.subr.mxu0 0.0
    %2044 = vmatpush1.msra.mxu0 0.0
    %2045 = vmatprep.subr.mxu0 0.0
    %2046 = vmatpush1.msra.mxu0 0.0
    %2047 = vmatprep.subr.mxu0 0.0
    %2048 = vmatpush1.msra.mxu0 0.0
    %2049 = vmatprep.subr.mxu0 0.0
    %2050 = vmatpush1.msra.mxu0 0.0
    %2051 = vmatprep.subr.mxu0 0.0
    %2052 = vmatpush1.msra.mxu0 0.0
    %2053 = vmatprep.subr.mxu0 0.0
    %2054 = vmatpush1.msra.mxu0 0.0
    %2055 = vmatprep.subr.mxu0 0.0
    %2056 = vmatpush1.msra.mxu0 0.0
    %2057 = vmatprep.subr.mxu0 0.0
    %2058 = vmatpush1.msra.mxu0 0.0
    %2059 = vmatprep.subr.mxu0 0.0
    %2060 = vmatpush1.msra.mxu0 0.0
    %2061 = vmatprep.subr.mxu0 0.0
    %2062 = vmatpush1.msra.mxu0 0.0
    %2063 = vmatprep.subr.mxu0 0.0
    %2064 = vmatpush1.msra.mxu0 0.0
    %2065 = vmatprep.subr.mxu0 0.0
    %2066 = vmatpush1.msra.mxu0 0.0
    %2067 = vmatprep.subr.mxu0 0.0
    %2068 = vmatpush1.msra.mxu0 0.0
    %2069 = vmatprep.subr.mxu0 0.0
    %2070 = vmatpush1.msra.mxu0 0.0
    %2071 = vmatprep.subr.mxu0 0.0
    %2072 = vmatpush1.msra.mxu0 0.0
    %2073 = vmatprep.subr.mxu0 0.0
    %2074 = vmatpush1.msra.mxu0 0.0
    %2075 = vmatprep.subr.mxu0 0.0
    %2076 = vmatpush1.msra.mxu0 0.0
    %2077 = vmatprep.subr.mxu0 0.0
    %2078 = vmatpush1.msra.mxu0 0.0
    %2079 = vmatprep.subr.mxu0 0.0
    %2080 = vmatpush1.msra.mxu0 0.0
    %2081 = vmatprep.subr.mxu0 0.0
    %2082 = vmatpush1.msra.mxu0 0.0
    %2083 = vmatprep.subr.mxu0 0.0
    %2084 = vmatpush1.msra.mxu0 0.0
    %2085 = vmatprep.subr.mxu0 0.0
    %2086 = vmatpush1.msra.mxu0 0.0
    %2087 = vmatprep.subr.mxu0 0.0
    %2088 = vmatpush1.msra.mxu0 0.0
    %2089 = vmatprep.subr.mxu0 0.0
    %2090 = vmatpush1.msra.mxu0 0.0
    %2091 = vmatprep.subr.mxu0 0.0
    %2092 = vmatpush1.msra.mxu0 0.0
    %2093 = vmatprep.mubr.f32.mxu0 0.0
    %v2094 = vand.u32 %v1599, 4294901760
    %2095 = vmatmul.mubr.f32.gmra.mrb[0].mxu0 %v2094
    %v2096 = vpop.f32.mrb[0].mxu0
    %v2097 = vadd.f32 %v2018, %v2096
    %v2098 = vpop.f32.mrb[0].mxu0
    %2099 = vmatprep.mubr.f32.mxu0 0.0
    %v2100 = vand.u32 %v1602, 4294901760
    %2101 = vmatmul.mubr.f32.gmra.mrb[0].mxu0 %v2100
    %v2102 = vpop.f32.mrb[0].mxu0
    %v2103 = vadd.f32 %v2024, %v2102
    %v2104 = vpop.f32.mrb[0].mxu0
    %2105 = vdwg.mxu0
    %v2106 = vadd.f32 %v1593, %v2097
    %v2107 = vadd.f32 %v1594, %v2103
    %vm2108 = vcmask 523264
    %2109 = vst.msk [vmem:[#allocation5] sm:$0xff] %vm2108, %v2106
    %2110 = vst.msk [vmem:[#allocation5 + $0x8] sm:$0xff] %vm2108, %v2107
    %s2111 = scalar_lea.vmem [#allocation2], 64
    %v2112 = vld [vmem:[%s2111] sm:$0xff]
    %v2113 = vld [vmem:[%s2111 + $0x8] sm:$0xff]
    %s2114 = scalar_lea.vmem [#allocation2], 80
    %v2115 = vld [vmem:[%s2114] sm:$0xff]
    %v2116 = vld [vmem:[%s2114 + $0x8] sm:$0xff]
    %v2118 = vsel %vm65, %v2115, 0
    %v2121 = vsel %vm65, %v2116, 0
    %2123 = vmatprep.subr.mxu0 0.0
    %v2124 = vand.u32 %v42, 4294901760
    %2125 = vmatpush1.msra.mxu0 %v2124
    %2126 = vmatprep.subr.mxu0 0.0
    %v2127 = vand.u32 %v43, 4294901760
    %2128 = vmatpush1.msra.mxu0 %v2127
    %2129 = vmatprep.subr.mxu0 0.0
    %2130 = vmatpush1.msra.mxu0 0.0
    %2131 = vmatprep.subr.mxu0 0.0
    %2132 = vmatpush1.msra.mxu0 0.0
    %2133 = vmatprep.subr.mxu0 0.0
    %2134 = vmatpush1.msra.mxu0 0.0
    %2135 = vmatprep.subr.mxu0 0.0
    %2136 = vmatpush1.msra.mxu0 0.0
    %2137 = vmatprep.subr.mxu0 0.0
    %2138 = vmatpush1.msra.mxu0 0.0
    %2139 = vmatprep.subr.mxu0 0.0
    %2140 = vmatpush1.msra.mxu0 0.0
    %2141 = vmatprep.subr.mxu0 0.0
    %2142 = vmatpush1.msra.mxu0 0.0
    %2143 = vmatprep.subr.mxu0 0.0
    %2144 = vmatpush1.msra.mxu0 0.0
    %2145 = vmatprep.subr.mxu0 0.0
    %2146 = vmatpush1.msra.mxu0 0.0
    %2147 = vmatprep.subr.mxu0 0.0
    %2148 = vmatpush1.msra.mxu0 0.0
    %2149 = vmatprep.subr.mxu0 0.0
    %2150 = vmatpush1.msra.mxu0 0.0
    %2151 = vmatprep.subr.mxu0 0.0
    %2152 = vmatpush1.msra.mxu0 0.0
    %2153 = vmatprep.subr.mxu0 0.0
    %2154 = vmatpush1.msra.mxu0 0.0
    %2155 = vmatprep.subr.mxu0 0.0
    %2156 = vmatpush1.msra.mxu0 0.0
    %2157 = vmatprep.subr.mxu0 0.0
    %2158 = vmatpush1.msra.mxu0 0.0
    %2159 = vmatprep.subr.mxu0 0.0
    %2160 = vmatpush1.msra.mxu0 0.0
    %2161 = vmatprep.subr.mxu0 0.0
    %2162 = vmatpush1.msra.mxu0 0.0
    %2163 = vmatprep.subr.mxu0 0.0
    %2164 = vmatpush1.msra.mxu0 0.0
    %2165 = vmatprep.subr.mxu0 0.0
    %2166 = vmatpush1.msra.mxu0 0.0
    %2167 = vmatprep.subr.mxu0 0.0
    %2168 = vmatpush1.msra.mxu0 0.0
    %2169 = vmatprep.subr.mxu0 0.0
    %2170 = vmatpush1.msra.mxu0 0.0
    %2171 = vmatprep.subr.mxu0 0.0
    %2172 = vmatpush1.msra.mxu0 0.0
    %2173 = vmatprep.subr.mxu0 0.0
    %2174 = vmatpush1.msra.mxu0 0.0
    %2175 = vmatprep.subr.mxu0 0.0
    %2176 = vmatpush1.msra.mxu0 0.0
    %2177 = vmatprep.subr.mxu0 0.0
    %2178 = vmatpush1.msra.mxu0 0.0
    %2179 = vmatprep.subr.mxu0 0.0
    %2180 = vmatpush1.msra.mxu0 0.0
    %2181 = vmatprep.subr.mxu0 0.0
    %2182 = vmatpush1.msra.mxu0 0.0
    %2183 = vmatprep.subr.mxu0 0.0
    %2184 = vmatpush1.msra.mxu0 0.0
    %2185 = vmatprep.subr.mxu0 0.0
    %2186 = vmatpush1.msra.mxu0 0.0
    %2187 = vmatprep.subr.mxu0 0.0
    %2188 = vmatpush1.msra.mxu0 0.0
    %2189 = vmatprep.mubr.f32.mxu0 0.0
    %v2190 = vand.u32 %v2118, 4294901760
    %v2191 = vsub.f32 %v2118, %v2190
    %v2192 = vand.u32 %v2191, 4294901760
    %v2193 = vsub.f32 %v2191, %v2192
    %v2194 = vand.u32 %v2193, 4294901760
    %2195 = vmatmul.mubr.f32.gmra.mrb[0].mxu0 %v2194
    %v2196 = vpop.f32.mrb[0].mxu0
    %v2197 = vadd.f32 0.0, %v2196
    %v2198 = vpop.f32.mrb[0].mxu0
    %2199 = vmatprep.mubr.f32.mxu0 0.0
    %v2200 = vand.u32 %v2121, 4294901760
    %v2201 = vsub.f32 %v2121, %v2200
    %v2202 = vand.u32 %v2201, 4294901760
    %v2203 = vsub.f32 %v2201, %v2202
    %v2204 = vand.u32 %v2203, 4294901760
    %2205 = vmatmul.mubr.f32.gmra.mrb[0].mxu0 %v2204
    %v2206 = vpop.f32.mrb[0].mxu0
    %v2207 = vadd.f32 0.0, %v2206
    %v2208 = vpop.f32.mrb[0].mxu0
    %2209 = vdwg.mxu0
    %2210 = vmatprep.subr.mxu0 0.0
    %v2211 = vand.u32 %v42, 4294901760
    %v2212 = vsub.f32 %v42, %v2211
    %v2213 = vand.u32 %v2212, 4294901760
    %v2214 = vsub.f32 %v2212, %v2213
    %v2215 = vand.u32 %v2214, 4294901760
    %2216 = vmatpush1.msra.mxu0 %v2215
    %2217 = vmatprep.subr.mxu0 0.0
    %v2218 = vand.u32 %v43, 4294901760
    %v2219 = vsub.f32 %v43, %v2218
    %v2220 = vand.u32 %v2219, 4294901760
    %v2221 = vsub.f32 %v2219, %v2220
    %v2222 = vand.u32 %v2221, 4294901760
    %2223 = vmatpush1.msra.mxu0 %v2222
    %2224 = vmatprep.subr.mxu0 0.0
    %2225 = vmatpush1.msra.mxu0 0.0
    %2226 = vmatprep.subr.mxu0 0.0
    %2227 = vmatpush1.msra.mxu0 0.0
    %2228 = vmatprep.subr.mxu0 0.0
    %2229 = vmatpush1.msra.mxu0 0.0
    %2230 = vmatprep.subr.mxu0 0.0
    %2231 = vmatpush1.msra.mxu0 0.0
    %2232 = vmatprep.subr.mxu0 0.0
    %2233 = vmatpush1.msra.mxu0 0.0
    %2234 = vmatprep.subr.mxu0 0.0
    %2235 = vmatpush1.msra.mxu0 0.0
    %2236 = vmatprep.subr.mxu0 0.0
    %2237 = vmatpush1.msra.mxu0 0.0
    %2238 = vmatprep.subr.mxu0 0.0
    %2239 = vmatpush1.msra.mxu0 0.0
    %2240 = vmatprep.subr.mxu0 0.0
    %2241 = vmatpush1.msra.mxu0 0.0
    %2242 = vmatprep.subr.mxu0 0.0
    %2243 = vmatpush1.msra.mxu0 0.0
    %2244 = vmatprep.subr.mxu0 0.0
    %2245 = vmatpush1.msra.mxu0 0.0
    %2246 = vmatprep.subr.mxu0 0.0
    %2247 = vmatpush1.msra.mxu0 0.0
    %2248 = vmatprep.subr.mxu0 0.0
    %2249 = vmatpush1.msra.mxu0 0.0
    %2250 = vmatprep.subr.mxu0 0.0
    %2251 = vmatpush1.msra.mxu0 0.0
    %2252 = vmatprep.subr.mxu0 0.0
    %2253 = vmatpush1.msra.mxu0 0.0
    %2254 = vmatprep.subr.mxu0 0.0
    %2255 = vmatpush1.msra.mxu0 0.0
    %2256 = vmatprep.subr.mxu0 0.0
    %2257 = vmatpush1.msra.mxu0 0.0
    %2258 = vmatprep.subr.mxu0 0.0
    %2259 = vmatpush1.msra.mxu0 0.0
    %2260 = vmatprep.subr.mxu0 0.0
    %2261 = vmatpush1.msra.mxu0 0.0
    %2262 = vmatprep.subr.mxu0 0.0
    %2263 = vmatpush1.msra.mxu0 0.0
    %2264 = vmatprep.subr.mxu0 0.0
    %2265 = vmatpush1.msra.mxu0 0.0
    %2266 = vmatprep.subr.mxu0 0.0
    %2267 = vmatpush1.msra.mxu0 0.0
    %2268 = vmatprep.subr.mxu0 0.0
    %2269 = vmatpush1.msra.mxu0 0.0
    %2270 = vmatprep.subr.mxu0 0.0
    %2271 = vmatpush1.msra.mxu0 0.0
    %2272 = vmatprep.subr.mxu0 0.0
    %2273 = vmatpush1.msra.mxu0 0.0
    %2274 = vmatprep.subr.mxu0 0.0
    %2275 = vmatpush1.msra.mxu0 0.0
    %2276 = vmatprep.subr.mxu0 0.0
    %2277 = vmatpush1.msra.mxu0 0.0
    %2278 = vmatprep.subr.mxu0 0.0
    %2279 = vmatpush1.msra.mxu0 0.0
    %2280 = vmatprep.subr.mxu0 0.0
    %2281 = vmatpush1.msra.mxu0 0.0
    %2282 = vmatprep.subr.mxu0 0.0
    %2283 = vmatpush1.msra.mxu0 0.0
    %2284 = vmatprep.mubr.f32.mxu0 0.0
    %v2285 = vand.u32 %v2118, 4294901760
    %2286 = vmatmul.mubr.f32.gmra.mrb[0].mxu0 %v2285
    %v2287 = vpop.f32.mrb[0].mxu0
    %v2288 = vadd.f32 %v2197, %v2287
    %v2289 = vpop.f32.mrb[0].mxu0
    %2290 = vmatprep.mubr.f32.mxu0 0.0
    %v2291 = vand.u32 %v2121, 4294901760
    %2292 = vmatmul.mubr.f32.gmra.mrb[0].mxu0 %v2291
    %v2293 = vpop.f32.mrb[0].mxu0
    %v2294 = vadd.f32 %v2207, %v2293
    %v2295 = vpop.f32.mrb[0].mxu0
    %2296 = vdwg.mxu0
    %2297 = vmatprep.subr.mxu0 0.0
    %v2298 = vand.u32 %v42, 4294901760
    %v2299 = vsub.f32 %v42, %v2298
    %2300 = vmatpush1.msra.mxu0 %v2299
    %2301 = vmatprep.subr.mxu0 0.0
    %v2302 = vand.u32 %v43, 4294901760
    %v2303 = vsub.f32 %v43, %v2302
    %2304 = vmatpush1.msra.mxu0 %v2303
    %2305 = vmatprep.subr.mxu0 0.0
    %2306 = vmatpush1.msra.mxu0 0.0
    %2307 = vmatprep.subr.mxu0 0.0
    %2308 = vmatpush1.msra.mxu0 0.0
    %2309 = vmatprep.subr.mxu0 0.0
    %2310 = vmatpush1.msra.mxu0 0.0
    %2311 = vmatprep.subr.mxu0 0.0
    %2312 = vmatpush1.msra.mxu0 0.0
    %2313 = vmatprep.subr.mxu0 0.0
    %2314 = vmatpush1.msra.mxu0 0.0
    %2315 = vmatprep.subr.mxu0 0.0
    %2316 = vmatpush1.msra.mxu0 0.0
    %2317 = vmatprep.subr.mxu0 0.0
    %2318 = vmatpush1.msra.mxu0 0.0
    %2319 = vmatprep.subr.mxu0 0.0
    %2320 = vmatpush1.msra.mxu0 0.0
    %2321 = vmatprep.subr.mxu0 0.0
    %2322 = vmatpush1.msra.mxu0 0.0
    %2323 = vmatprep.subr.mxu0 0.0
    %2324 = vmatpush1.msra.mxu0 0.0
    %2325 = vmatprep.subr.mxu0 0.0
    %2326 = vmatpush1.msra.mxu0 0.0
    %2327 = vmatprep.subr.mxu0 0.0
    %2328 = vmatpush1.msra.mxu0 0.0
    %2329 = vmatprep.subr.mxu0 0.0
    %2330 = vmatpush1.msra.mxu0 0.0
    %2331 = vmatprep.subr.mxu0 0.0
    %2332 = vmatpush1.msra.mxu0 0.0
    %2333 = vmatprep.subr.mxu0 0.0
    %2334 = vmatpush1.msra.mxu0 0.0
    %2335 = vmatprep.subr.mxu0 0.0
    %2336 = vmatpush1.msra.mxu0 0.0
    %2337 = vmatprep.subr.mxu0 0.0
    %2338 = vmatpush1.msra.mxu0 0.0
    %2339 = vmatprep.subr.mxu0 0.0
    %2340 = vmatpush1.msra.mxu0 0.0
    %2341 = vmatprep.subr.mxu0 0.0
    %2342 = vmatpush1.msra.mxu0 0.0
    %2343 = vmatprep.subr.mxu0 0.0
    %2344 = vmatpush1.msra.mxu0 0.0
    %2345 = vmatprep.subr.mxu0 0.0
    %2346 = vmatpush1.msra.mxu0 0.0
    %2347 = vmatprep.subr.mxu0 0.0
    %2348 = vmatpush1.msra.mxu0 0.0
    %2349 = vmatprep.subr.mxu0 0.0
    %2350 = vmatpush1.msra.mxu0 0.0
    %2351 = vmatprep.subr.mxu0 0.0
    %2352 = vmatpush1.msra.mxu0 0.0
    %2353 = vmatprep.subr.mxu0 0.0
    %2354 = vmatpush1.msra.mxu0 0.0
    %2355 = vmatprep.subr.mxu0 0.0
    %2356 = vmatpush1.msra.mxu0 0.0
    %2357 = vmatprep.subr.mxu0 0.0
    %2358 = vmatpush1.msra.mxu0 0.0
    %2359 = vmatprep.subr.mxu0 0.0
    %2360 = vmatpush1.msra.mxu0 0.0
    %2361 = vmatprep.subr.mxu0 0.0
    %2362 = vmatpush1.msra.mxu0 0.0
    %2363 = vmatprep.subr.mxu0 0.0
    %2364 = vmatpush1.msra.mxu0 0.0
    %2365 = vmatprep.mubr.f32.mxu0 0.0
    %v2366 = vand.u32 %v2118, 4294901760
    %v2367 = vsub.f32 %v2118, %v2366
    %2368 = vmatmul.mubr.f32.gmra.mrb[0].mxu0 %v2367
    %v2369 = vpop.f32.mrb[0].mxu0
    %v2370 = vadd.f32 %v2288, %v2369
    %v2371 = vpop.f32.mrb[0].mxu0
    %2372 = vmatprep.mubr.f32.mxu0 0.0
    %v2373 = vand.u32 %v2121, 4294901760
    %v2374 = vsub.f32 %v2121, %v2373
    %2375 = vmatmul.mubr.f32.gmra.mrb[0].mxu0 %v2374
    %v2376 = vpop.f32.mrb[0].mxu0
    %v2377 = vadd.f32 %v2294, %v2376
    %v2378 = vpop.f32.mrb[0].mxu0
    %2379 = vdwg.mxu0
    %2380 = vmatprep.subr.mxu0 0.0
    %v2381 = vand.u32 %v42, 4294901760
    %2382 = vmatpush1.msra.mxu0 %v2381
    %2383 = vmatprep.subr.mxu0 0.0
    %v2384 = vand.u32 %v43, 4294901760
    %2385 = vmatpush1.msra.mxu0 %v2384
    %2386 = vmatprep.subr.mxu0 0.0
    %2387 = vmatpush1.msra.mxu0 0.0
    %2388 = vmatprep.subr.mxu0 0.0
    %2389 = vmatpush1.msra.mxu0 0.0
    %2390 = vmatprep.subr.mxu0 0.0
    %2391 = vmatpush1.msra.mxu0 0.0
    %2392 = vmatprep.subr.mxu0 0.0
    %2393 = vmatpush1.msra.mxu0 0.0
    %2394 = vmatprep.subr.mxu0 0.0
    %2395 = vmatpush1.msra.mxu0 0.0
    %2396 = vmatprep.subr.mxu0 0.0
    %2397 = vmatpush1.msra.mxu0 0.0
    %2398 = vmatprep.subr.mxu0 0.0
    %2399 = vmatpush1.msra.mxu0 0.0
    %2400 = vmatprep.subr.mxu0 0.0
    %2401 = vmatpush1.msra.mxu0 0.0
    %2402 = vmatprep.subr.mxu0 0.0
    %2403 = vmatpush1.msra.mxu0 0.0
    %2404 = vmatprep.subr.mxu0 0.0
    %2405 = vmatpush1.msra.mxu0 0.0
    %2406 = vmatprep.subr.mxu0 0.0
    %2407 = vmatpush1.msra.mxu0 0.0
    %2408 = vmatprep.subr.mxu0 0.0
    %2409 = vmatpush1.msra.mxu0 0.0
    %2410 = vmatprep.subr.mxu0 0.0
    %2411 = vmatpush1.msra.mxu0 0.0
    %2412 = vmatprep.subr.mxu0 0.0
    %2413 = vmatpush1.msra.mxu0 0.0
    %2414 = vmatprep.subr.mxu0 0.0
    %2415 = vmatpush1.msra.mxu0 0.0
    %2416 = vmatprep.subr.mxu0 0.0
    %2417 = vmatpush1.msra.mxu0 0.0
    %2418 = vmatprep.subr.mxu0 0.0
    %2419 = vmatpush1.msra.mxu0 0.0
    %2420 = vmatprep.subr.mxu0 0.0
    %2421 = vmatpush1.msra.mxu0 0.0
    %2422 = vmatprep.subr.mxu0 0.0
    %2423 = vmatpush1.msra.mxu0 0.0
    %2424 = vmatprep.subr.mxu0 0.0
    %2425 = vmatpush1.msra.mxu0 0.0
    %2426 = vmatprep.subr.mxu0 0.0
    %2427 = vmatpush1.msra.mxu0 0.0
    %2428 = vmatprep.subr.mxu0 0.0
    %2429 = vmatpush1.msra.mxu0 0.0
    %2430 = vmatprep.subr.mxu0 0.0
    %2431 = vmatpush1.msra.mxu0 0.0
    %2432 = vmatprep.subr.mxu0 0.0
    %2433 = vmatpush1.msra.mxu0 0.0
    %2434 = vmatprep.subr.mxu0 0.0
    %2435 = vmatpush1.msra.mxu0 0.0
    %2436 = vmatprep.subr.mxu0 0.0
    %2437 = vmatpush1.msra.mxu0 0.0
    %2438 = vmatprep.subr.mxu0 0.0
    %2439 = vmatpush1.msra.mxu0 0.0
    %2440 = vmatprep.subr.mxu0 0.0
    %2441 = vmatpush1.msra.mxu0 0.0
    %2442 = vmatprep.subr.mxu0 0.0
    %2443 = vmatpush1.msra.mxu0 0.0
    %2444 = vmatprep.subr.mxu0 0.0
    %2445 = vmatpush1.msra.mxu0 0.0
    %2446 = vmatprep.mubr.f32.mxu0 0.0
    %v2447 = vand.u32 %v2118, 4294901760
    %v2448 = vsub.f32 %v2118, %v2447
    %v2449 = vand.u32 %v2448, 4294901760
    %2450 = vmatmul.mubr.f32.gmra.mrb[0].mxu0 %v2449
    %v2451 = vpop.f32.mrb[0].mxu0
    %v2452 = vadd.f32 %v2370, %v2451
    %v2453 = vpop.f32.mrb[0].mxu0
    %2454 = vmatprep.mubr.f32.mxu0 0.0
    %v2455 = vand.u32 %v2121, 4294901760
    %v2456 = vsub.f32 %v2121, %v2455
    %v2457 = vand.u32 %v2456, 4294901760
    %2458 = vmatmul.mubr.f32.gmra.mrb[0].mxu0 %v2457
    %v2459 = vpop.f32.mrb[0].mxu0
    %v2460 = vadd.f32 %v2377, %v2459
    %v2461 = vpop.f32.mrb[0].mxu0
    %2462 = vdwg.mxu0
    %2463 = vmatprep.subr.mxu0 0.0
    %v2464 = vand.u32 %v42, 4294901760
    %v2465 = vsub.f32 %v42, %v2464
    %v2466 = vand.u32 %v2465, 4294901760
    %2467 = vmatpush1.msra.mxu0 %v2466
    %2468 = vmatprep.subr.mxu0 0.0
    %v2469 = vand.u32 %v43, 4294901760
    %v2470 = vsub.f32 %v43, %v2469
    %v2471 = vand.u32 %v2470, 4294901760
    %2472 = vmatpush1.msra.mxu0 %v2471
    %2473 = vmatprep.subr.mxu0 0.0
    %2474 = vmatpush1.msra.mxu0 0.0
    %2475 = vmatprep.subr.mxu0 0.0
    %2476 = vmatpush1.msra.mxu0 0.0
    %2477 = vmatprep.subr.mxu0 0.0
    %2478 = vmatpush1.msra.mxu0 0.0
    %2479 = vmatprep.subr.mxu0 0.0
    %2480 = vmatpush1.msra.mxu0 0.0
    %2481 = vmatprep.subr.mxu0 0.0
    %2482 = vmatpush1.msra.mxu0 0.0
    %2483 = vmatprep.subr.mxu0 0.0
    %2484 = vmatpush1.msra.mxu0 0.0
    %2485 = vmatprep.subr.mxu0 0.0
    %2486 = vmatpush1.msra.mxu0 0.0
    %2487 = vmatprep.subr.mxu0 0.0
    %2488 = vmatpush1.msra.mxu0 0.0
    %2489 = vmatprep.subr.mxu0 0.0
    %2490 = vmatpush1.msra.mxu0 0.0
    %2491 = vmatprep.subr.mxu0 0.0
    %2492 = vmatpush1.msra.mxu0 0.0
    %2493 = vmatprep.subr.mxu0 0.0
    %2494 = vmatpush1.msra.mxu0 0.0
    %2495 = vmatprep.subr.mxu0 0.0
    %2496 = vmatpush1.msra.mxu0 0.0
    %2497 = vmatprep.subr.mxu0 0.0
    %2498 = vmatpush1.msra.mxu0 0.0
    %2499 = vmatprep.subr.mxu0 0.0
    %2500 = vmatpush1.msra.mxu0 0.0
    %2501 = vmatprep.subr.mxu0 0.0
    %2502 = vmatpush1.msra.mxu0 0.0
    %2503 = vmatprep.subr.mxu0 0.0
    %2504 = vmatpush1.msra.mxu0 0.0
    %2505 = vmatprep.subr.mxu0 0.0
    %2506 = vmatpush1.msra.mxu0 0.0
    %2507 = vmatprep.subr.mxu0 0.0
    %2508 = vmatpush1.msra.mxu0 0.0
    %2509 = vmatprep.subr.mxu0 0.0
    %2510 = vmatpush1.msra.mxu0 0.0
    %2511 = vmatprep.subr.mxu0 0.0
    %2512 = vmatpush1.msra.mxu0 0.0
    %2513 = vmatprep.subr.mxu0 0.0
    %2514 = vmatpush1.msra.mxu0 0.0
    %2515 = vmatprep.subr.mxu0 0.0
    %2516 = vmatpush1.msra.mxu0 0.0
    %2517 = vmatprep.subr.mxu0 0.0
    %2518 = vmatpush1.msra.mxu0 0.0
    %2519 = vmatprep.subr.mxu0 0.0
    %2520 = vmatpush1.msra.mxu0 0.0
    %2521 = vmatprep.subr.mxu0 0.0
    %2522 = vmatpush1.msra.mxu0 0.0
    %2523 = vmatprep.subr.mxu0 0.0
    %2524 = vmatpush1.msra.mxu0 0.0
    %2525 = vmatprep.subr.mxu0 0.0
    %2526 = vmatpush1.msra.mxu0 0.0
    %2527 = vmatprep.subr.mxu0 0.0
    %2528 = vmatpush1.msra.mxu0 0.0
    %2529 = vmatprep.subr.mxu0 0.0
    %2530 = vmatpush1.msra.mxu0 0.0
    %2531 = vmatprep.subr.mxu0 0.0
    %2532 = vmatpush1.msra.mxu0 0.0
    %2533 = vmatprep.mubr.f32.mxu0 0.0
    %v2534 = vand.u32 %v2118, 4294901760
    %2535 = vmatmul.mubr.f32.gmra.mrb[0].mxu0 %v2534
    %v2536 = vpop.f32.mrb[0].mxu0
    %v2537 = vadd.f32 %v2452, %v2536
    %v2538 = vpop.f32.mrb[0].mxu0
    %2539 = vmatprep.mubr.f32.mxu0 0.0
    %v2540 = vand.u32 %v2121, 4294901760
    %2541 = vmatmul.mubr.f32.gmra.mrb[0].mxu0 %v2540
    %v2542 = vpop.f32.mrb[0].mxu0
    %v2543 = vadd.f32 %v2460, %v2542
    %v2544 = vpop.f32.mrb[0].mxu0
    %2545 = vdwg.mxu0
    %2546 = vmatprep.subr.mxu0 0.0
    %v2547 = vand.u32 %v42, 4294901760
    %2548 = vmatpush1.msra.mxu0 %v2547
    %2549 = vmatprep.subr.mxu0 0.0
    %v2550 = vand.u32 %v43, 4294901760
    %2551 = vmatpush1.msra.mxu0 %v2550
    %2552 = vmatprep.subr.mxu0 0.0
    %2553 = vmatpush1.msra.mxu0 0.0
    %2554 = vmatprep.subr.mxu0 0.0
    %2555 = vmatpush1.msra.mxu0 0.0
    %2556 = vmatprep.subr.mxu0 0.0
    %2557 = vmatpush1.msra.mxu0 0.0
    %2558 = vmatprep.subr.mxu0 0.0
    %2559 = vmatpush1.msra.mxu0 0.0
    %2560 = vmatprep.subr.mxu0 0.0
    %2561 = vmatpush1.msra.mxu0 0.0
    %2562 = vmatprep.subr.mxu0 0.0
    %2563 = vmatpush1.msra.mxu0 0.0
    %2564 = vmatprep.subr.mxu0 0.0
    %2565 = vmatpush1.msra.mxu0 0.0
    %2566 = vmatprep.subr.mxu0 0.0
    %2567 = vmatpush1.msra.mxu0 0.0
    %2568 = vmatprep.subr.mxu0 0.0
    %2569 = vmatpush1.msra.mxu0 0.0
    %2570 = vmatprep.subr.mxu0 0.0
    %2571 = vmatpush1.msra.mxu0 0.0
    %2572 = vmatprep.subr.mxu0 0.0
    %2573 = vmatpush1.msra.mxu0 0.0
    %2574 = vmatprep.subr.mxu0 0.0
    %2575 = vmatpush1.msra.mxu0 0.0
    %2576 = vmatprep.subr.mxu0 0.0
    %2577 = vmatpush1.msra.mxu0 0.0
    %2578 = vmatprep.subr.mxu0 0.0
    %2579 = vmatpush1.msra.mxu0 0.0
    %2580 = vmatprep.subr.mxu0 0.0
    %2581 = vmatpush1.msra.mxu0 0.0
    %2582 = vmatprep.subr.mxu0 0.0
    %2583 = vmatpush1.msra.mxu0 0.0
    %2584 = vmatprep.subr.mxu0 0.0
    %2585 = vmatpush1.msra.mxu0 0.0
    %2586 = vmatprep.subr.mxu0 0.0
    %2587 = vmatpush1.msra.mxu0 0.0
    %2588 = vmatprep.subr.mxu0 0.0
    %2589 = vmatpush1.msra.mxu0 0.0
    %2590 = vmatprep.subr.mxu0 0.0
    %2591 = vmatpush1.msra.mxu0 0.0
    %2592 = vmatprep.subr.mxu0 0.0
    %2593 = vmatpush1.msra.mxu0 0.0
    %2594 = vmatprep.subr.mxu0 0.0
    %2595 = vmatpush1.msra.mxu0 0.0
    %2596 = vmatprep.subr.mxu0 0.0
    %2597 = vmatpush1.msra.mxu0 0.0
    %2598 = vmatprep.subr.mxu0 0.0
    %2599 = vmatpush1.msra.mxu0 0.0
    %2600 = vmatprep.subr.mxu0 0.0
    %2601 = vmatpush1.msra.mxu0 0.0
    %2602 = vmatprep.subr.mxu0 0.0
    %2603 = vmatpush1.msra.mxu0 0.0
    %2604 = vmatprep.subr.mxu0 0.0
    %2605 = vmatpush1.msra.mxu0 0.0
    %2606 = vmatprep.subr.mxu0 0.0
    %2607 = vmatpush1.msra.mxu0 0.0
    %2608 = vmatprep.subr.mxu0 0.0
    %2609 = vmatpush1.msra.mxu0 0.0
    %2610 = vmatprep.subr.mxu0 0.0
    %2611 = vmatpush1.msra.mxu0 0.0
    %2612 = vmatprep.mubr.f32.mxu0 0.0
    %v2613 = vand.u32 %v2118, 4294901760
    %2614 = vmatmul.mubr.f32.gmra.mrb[0].mxu0 %v2613
    %v2615 = vpop.f32.mrb[0].mxu0
    %v2616 = vadd.f32 %v2537, %v2615
    %v2617 = vpop.f32.mrb[0].mxu0
    %2618 = vmatprep.mubr.f32.mxu0 0.0
    %v2619 = vand.u32 %v2121, 4294901760
    %2620 = vmatmul.mubr.f32.gmra.mrb[0].mxu0 %v2619
    %v2621 = vpop.f32.mrb[0].mxu0
    %v2622 = vadd.f32 %v2543, %v2621
    %v2623 = vpop.f32.mrb[0].mxu0
    %2624 = vdwg.mxu0
    %v2626 = vsel %vm65, %v2112, 0
    %v2629 = vsel %vm65, %v2113, 0
    %2631 = vmatprep.subr.mxu0 0.0
    %v2632 = vand.u32 %v34, 4294901760
    %2633 = vmatpush1.msra.mxu0 %v2632
    %2634 = vmatprep.subr.mxu0 0.0
    %v2635 = vand.u32 %v35, 4294901760
    %2636 = vmatpush1.msra.mxu0 %v2635
    %2637 = vmatprep.subr.mxu0 0.0
    %2638 = vmatpush1.msra.mxu0 0.0
    %2639 = vmatprep.subr.mxu0 0.0
    %2640 = vmatpush1.msra.mxu0 0.0
    %2641 = vmatprep.subr.mxu0 0.0
    %2642 = vmatpush1.msra.mxu0 0.0
    %2643 = vmatprep.subr.mxu0 0.0
    %2644 = vmatpush1.msra.mxu0 0.0
    %2645 = vmatprep.subr.mxu0 0.0
    %2646 = vmatpush1.msra.mxu0 0.0
    %2647 = vmatprep.subr.mxu0 0.0
    %2648 = vmatpush1.msra.mxu0 0.0
    %2649 = vmatprep.subr.mxu0 0.0
    %2650 = vmatpush1.msra.mxu0 0.0
    %2651 = vmatprep.subr.mxu0 0.0
    %2652 = vmatpush1.msra.mxu0 0.0
    %2653 = vmatprep.subr.mxu0 0.0
    %2654 = vmatpush1.msra.mxu0 0.0
    %2655 = vmatprep.subr.mxu0 0.0
    %2656 = vmatpush1.msra.mxu0 0.0
    %2657 = vmatprep.subr.mxu0 0.0
    %2658 = vmatpush1.msra.mxu0 0.0
    %2659 = vmatprep.subr.mxu0 0.0
    %2660 = vmatpush1.msra.mxu0 0.0
    %2661 = vmatprep.subr.mxu0 0.0
    %2662 = vmatpush1.msra.mxu0 0.0
    %2663 = vmatprep.subr.mxu0 0.0
    %2664 = vmatpush1.msra.mxu0 0.0
    %2665 = vmatprep.subr.mxu0 0.0
    %2666 = vmatpush1.msra.mxu0 0.0
    %2667 = vmatprep.subr.mxu0 0.0
    %2668 = vmatpush1.msra.mxu0 0.0
    %2669 = vmatprep.subr.mxu0 0.0
    %2670 = vmatpush1.msra.mxu0 0.0
    %2671 = vmatprep.subr.mxu0 0.0
    %2672 = vmatpush1.msra.mxu0 0.0
    %2673 = vmatprep.subr.mxu0 0.0
    %2674 = vmatpush1.msra.mxu0 0.0
    %2675 = vmatprep.subr.mxu0 0.0
    %2676 = vmatpush1.msra.mxu0 0.0
    %2677 = vmatprep.subr.mxu0 0.0
    %2678 = vmatpush1.msra.mxu0 0.0
    %2679 = vmatprep.subr.mxu0 0.0
    %2680 = vmatpush1.msra.mxu0 0.0
    %2681 = vmatprep.subr.mxu0 0.0
    %2682 = vmatpush1.msra.mxu0 0.0
    %2683 = vmatprep.subr.mxu0 0.0
    %2684 = vmatpush1.msra.mxu0 0.0
    %2685 = vmatprep.subr.mxu0 0.0
    %2686 = vmatpush1.msra.mxu0 0.0
    %2687 = vmatprep.subr.mxu0 0.0
    %2688 = vmatpush1.msra.mxu0 0.0
    %2689 = vmatprep.subr.mxu0 0.0
    %2690 = vmatpush1.msra.mxu0 0.0
    %2691 = vmatprep.subr.mxu0 0.0
    %2692 = vmatpush1.msra.mxu0 0.0
    %2693 = vmatprep.subr.mxu0 0.0
    %2694 = vmatpush1.msra.mxu0 0.0
    %2695 = vmatprep.subr.mxu0 0.0
    %2696 = vmatpush1.msra.mxu0 0.0
    %2697 = vmatprep.mubr.f32.mxu0 0.0
    %v2698 = vand.u32 %v2626, 4294901760
    %v2699 = vsub.f32 %v2626, %v2698
    %v2700 = vand.u32 %v2699, 4294901760
    %v2701 = vsub.f32 %v2699, %v2700
    %v2702 = vand.u32 %v2701, 4294901760
    %2703 = vmatmul.mubr.f32.gmra.mrb[0].mxu0 %v2702
    %v2704 = vpop.f32.mrb[0].mxu0
    %v2705 = vadd.f32 %v2616, %v2704
    %v2706 = vpop.f32.mrb[0].mxu0
    %2707 = vmatprep.mubr.f32.mxu0 0.0
    %v2708 = vand.u32 %v2629, 4294901760
    %v2709 = vsub.f32 %v2629, %v2708
    %v2710 = vand.u32 %v2709, 4294901760
    %v2711 = vsub.f32 %v2709, %v2710
    %v2712 = vand.u32 %v2711, 4294901760
    %2713 = vmatmul.mubr.f32.gmra.mrb[0].mxu0 %v2712
    %v2714 = vpop.f32.mrb[0].mxu0
    %v2715 = vadd.f32 %v2622, %v2714
    %v2716 = vpop.f32.mrb[0].mxu0
    %2717 = vdwg.mxu0
    %2718 = vmatprep.subr.mxu0 0.0
    %v2719 = vand.u32 %v34, 4294901760
    %v2720 = vsub.f32 %v34, %v2719
    %v2721 = vand.u32 %v2720, 4294901760
    %v2722 = vsub.f32 %v2720, %v2721
    %v2723 = vand.u32 %v2722, 4294901760
    %2724 = vmatpush1.msra.mxu0 %v2723
    %2725 = vmatprep.subr.mxu0 0.0
    %v2726 = vand.u32 %v35, 4294901760
    %v2727 = vsub.f32 %v35, %v2726
    %v2728 = vand.u32 %v2727, 4294901760
    %v2729 = vsub.f32 %v2727, %v2728
    %v2730 = vand.u32 %v2729, 4294901760
    %2731 = vmatpush1.msra.mxu0 %v2730
    %2732 = vmatprep.subr.mxu0 0.0
    %2733 = vmatpush1.msra.mxu0 0.0
    %2734 = vmatprep.subr.mxu0 0.0
    %2735 = vmatpush1.msra.mxu0 0.0
    %2736 = vmatprep.subr.mxu0 0.0
    %2737 = vmatpush1.msra.mxu0 0.0
    %2738 = vmatprep.subr.mxu0 0.0
    %2739 = vmatpush1.msra.mxu0 0.0
    %2740 = vmatprep.subr.mxu0 0.0
    %2741 = vmatpush1.msra.mxu0 0.0
    %2742 = vmatprep.subr.mxu0 0.0
    %2743 = vmatpush1.msra.mxu0 0.0
    %2744 = vmatprep.subr.mxu0 0.0
    %2745 = vmatpush1.msra.mxu0 0.0
    %2746 = vmatprep.subr.mxu0 0.0
    %2747 = vmatpush1.msra.mxu0 0.0
    %2748 = vmatprep.subr.mxu0 0.0
    %2749 = vmatpush1.msra.mxu0 0.0
    %2750 = vmatprep.subr.mxu0 0.0
    %2751 = vmatpush1.msra.mxu0 0.0
    %2752 = vmatprep.subr.mxu0 0.0
    %2753 = vmatpush1.msra.mxu0 0.0
    %2754 = vmatprep.subr.mxu0 0.0
    %2755 = vmatpush1.msra.mxu0 0.0
    %2756 = vmatprep.subr.mxu0 0.0
    %2757 = vmatpush1.msra.mxu0 0.0
    %2758 = vmatprep.subr.mxu0 0.0
    %2759 = vmatpush1.msra.mxu0 0.0
    %2760 = vmatprep.subr.mxu0 0.0
    %2761 = vmatpush1.msra.mxu0 0.0
    %2762 = vmatprep.subr.mxu0 0.0
    %2763 = vmatpush1.msra.mxu0 0.0
    %2764 = vmatprep.subr.mxu0 0.0
    %2765 = vmatpush1.msra.mxu0 0.0
    %2766 = vmatprep.subr.mxu0 0.0
    %2767 = vmatpush1.msra.mxu0 0.0
    %2768 = vmatprep.subr.mxu0 0.0
    %2769 = vmatpush1.msra.mxu0 0.0
    %2770 = vmatprep.subr.mxu0 0.0
    %2771 = vmatpush1.msra.mxu0 0.0
    %2772 = vmatprep.subr.mxu0 0.0
    %2773 = vmatpush1.msra.mxu0 0.0
    %2774 = vmatprep.subr.mxu0 0.0
    %2775 = vmatpush1.msra.mxu0 0.0
    %2776 = vmatprep.subr.mxu0 0.0
    %2777 = vmatpush1.msra.mxu0 0.0
    %2778 = vmatprep.subr.mxu0 0.0
    %2779 = vmatpush1.msra.mxu0 0.0
    %2780 = vmatprep.subr.mxu0 0.0
    %2781 = vmatpush1.msra.mxu0 0.0
    %2782 = vmatprep.subr.mxu0 0.0
    %2783 = vmatpush1.msra.mxu0 0.0
    %2784 = vmatprep.subr.mxu0 0.0
    %2785 = vmatpush1.msra.mxu0 0.0
    %2786 = vmatprep.subr.mxu0 0.0
    %2787 = vmatpush1.msra.mxu0 0.0
    %2788 = vmatprep.subr.mxu0 0.0
    %2789 = vmatpush1.msra.mxu0 0.0
    %2790 = vmatprep.subr.mxu0 0.0
    %2791 = vmatpush1.msra.mxu0 0.0
    %2792 = vmatprep.mubr.f32.mxu0 0.0
    %v2793 = vand.u32 %v2626, 4294901760
    %2794 = vmatmul.mubr.f32.gmra.mrb[0].mxu0 %v2793
    %v2795 = vpop.f32.mrb[0].mxu0
    %v2796 = vadd.f32 %v2705, %v2795
    %v2797 = vpop.f32.mrb[0].mxu0
    %2798 = vmatprep.mubr.f32.mxu0 0.0
    %v2799 = vand.u32 %v2629, 4294901760
    %2800 = vmatmul.mubr.f32.gmra.mrb[0].mxu0 %v2799
    %v2801 = vpop.f32.mrb[0].mxu0
    %v2802 = vadd.f32 %v2715, %v2801
    %v2803 = vpop.f32.mrb[0].mxu0
    %2804 = vdwg.mxu0
    %2805 = vmatprep.subr.mxu0 0.0
    %v2806 = vand.u32 %v34, 4294901760
    %v2807 = vsub.f32 %v34, %v2806
    %2808 = vmatpush1.msra.mxu0 %v2807
    %2809 = vmatprep.subr.mxu0 0.0
    %v2810 = vand.u32 %v35, 4294901760
    %v2811 = vsub.f32 %v35, %v2810
    %2812 = vmatpush1.msra.mxu0 %v2811
    %2813 = vmatprep.subr.mxu0 0.0
    %2814 = vmatpush1.msra.mxu0 0.0
    %2815 = vmatprep.subr.mxu0 0.0
    %2816 = vmatpush1.msra.mxu0 0.0
    %2817 = vmatprep.subr.mxu0 0.0
    %2818 = vmatpush1.msra.mxu0 0.0
    %2819 = vmatprep.subr.mxu0 0.0
    %2820 = vmatpush1.msra.mxu0 0.0
    %2821 = vmatprep.subr.mxu0 0.0
    %2822 = vmatpush1.msra.mxu0 0.0
    %2823 = vmatprep.subr.mxu0 0.0
    %2824 = vmatpush1.msra.mxu0 0.0
    %2825 = vmatprep.subr.mxu0 0.0
    %2826 = vmatpush1.msra.mxu0 0.0
    %2827 = vmatprep.subr.mxu0 0.0
    %2828 = vmatpush1.msra.mxu0 0.0
    %2829 = vmatprep.subr.mxu0 0.0
    %2830 = vmatpush1.msra.mxu0 0.0
    %2831 = vmatprep.subr.mxu0 0.0
    %2832 = vmatpush1.msra.mxu0 0.0
    %2833 = vmatprep.subr.mxu0 0.0
    %2834 = vmatpush1.msra.mxu0 0.0
    %2835 = vmatprep.subr.mxu0 0.0
    %2836 = vmatpush1.msra.mxu0 0.0
    %2837 = vmatprep.subr.mxu0 0.0
    %2838 = vmatpush1.msra.mxu0 0.0
    %2839 = vmatprep.subr.mxu0 0.0
    %2840 = vmatpush1.msra.mxu0 0.0
    %2841 = vmatprep.subr.mxu0 0.0
    %2842 = vmatpush1.msra.mxu0 0.0
    %2843 = vmatprep.subr.mxu0 0.0
    %2844 = vmatpush1.msra.mxu0 0.0
    %2845 = vmatprep.subr.mxu0 0.0
    %2846 = vmatpush1.msra.mxu0 0.0
    %2847 = vmatprep.subr.mxu0 0.0
    %2848 = vmatpush1.msra.mxu0 0.0
    %2849 = vmatprep.subr.mxu0 0.0
    %2850 = vmatpush1.msra.mxu0 0.0
    %2851 = vmatprep.subr.mxu0 0.0
    %2852 = vmatpush1.msra.mxu0 0.0
    %2853 = vmatprep.subr.mxu0 0.0
    %2854 = vmatpush1.msra.mxu0 0.0
    %2855 = vmatprep.subr.mxu0 0.0
    %2856 = vmatpush1.msra.mxu0 0.0
    %2857 = vmatprep.subr.mxu0 0.0
    %2858 = vmatpush1.msra.mxu0 0.0
    %2859 = vmatprep.subr.mxu0 0.0
    %2860 = vmatpush1.msra.mxu0 0.0
    %2861 = vmatprep.subr.mxu0 0.0
    %2862 = vmatpush1.msra.mxu0 0.0
    %2863 = vmatprep.subr.mxu0 0.0
    %2864 = vmatpush1.msra.mxu0 0.0
    %2865 = vmatprep.subr.mxu0 0.0
    %2866 = vmatpush1.msra.mxu0 0.0
    %2867 = vmatprep.subr.mxu0 0.0
    %2868 = vmatpush1.msra.mxu0 0.0
    %2869 = vmatprep.subr.mxu0 0.0
    %2870 = vmatpush1.msra.mxu0 0.0
    %2871 = vmatprep.subr.mxu0 0.0
    %2872 = vmatpush1.msra.mxu0 0.0
    %2873 = vmatprep.mubr.f32.mxu0 0.0
    %v2874 = vand.u32 %v2626, 4294901760
    %v2875 = vsub.f32 %v2626, %v2874
    %2876 = vmatmul.mubr.f32.gmra.mrb[0].mxu0 %v2875
    %v2877 = vpop.f32.mrb[0].mxu0
    %v2878 = vadd.f32 %v2796, %v2877
    %v2879 = vpop.f32.mrb[0].mxu0
    %2880 = vmatprep.mubr.f32.mxu0 0.0
    %v2881 = vand.u32 %v2629, 4294901760
    %v2882 = vsub.f32 %v2629, %v2881
    %2883 = vmatmul.mubr.f32.gmra.mrb[0].mxu0 %v2882
    %v2884 = vpop.f32.mrb[0].mxu0
    %v2885 = vadd.f32 %v2802, %v2884
    %v2886 = vpop.f32.mrb[0].mxu0
    %2887 = vdwg.mxu0
    %2888 = vmatprep.subr.mxu0 0.0
    %v2889 = vand.u32 %v34, 4294901760
    %2890 = vmatpush1.msra.mxu0 %v2889
    %2891 = vmatprep.subr.mxu0 0.0
    %v2892 = vand.u32 %v35, 4294901760
    %2893 = vmatpush1.msra.mxu0 %v2892
    %2894 = vmatprep.subr.mxu0 0.0
    %2895 = vmatpush1.msra.mxu0 0.0
    %2896 = vmatprep.subr.mxu0 0.0
    %2897 = vmatpush1.msra.mxu0 0.0
    %2898 = vmatprep.subr.mxu0 0.0
    %2899 = vmatpush1.msra.mxu0 0.0
    %2900 = vmatprep.subr.mxu0 0.0
    %2901 = vmatpush1.msra.mxu0 0.0
    %2902 = vmatprep.subr.mxu0 0.0
    %2903 = vmatpush1.msra.mxu0 0.0
    %2904 = vmatprep.subr.mxu0 0.0
    %2905 = vmatpush1.msra.mxu0 0.0
    %2906 = vmatprep.subr.mxu0 0.0
    %2907 = vmatpush1.msra.mxu0 0.0
    %2908 = vmatprep.subr.mxu0 0.0
    %2909 = vmatpush1.msra.mxu0 0.0
    %2910 = vmatprep.subr.mxu0 0.0
    %2911 = vmatpush1.msra.mxu0 0.0
    %2912 = vmatprep.subr.mxu0 0.0
    %2913 = vmatpush1.msra.mxu0 0.0
    %2914 = vmatprep.subr.mxu0 0.0
    %2915 = vmatpush1.msra.mxu0 0.0
    %2916 = vmatprep.subr.mxu0 0.0
    %2917 = vmatpush1.msra.mxu0 0.0
    %2918 = vmatprep.subr.mxu0 0.0
    %2919 = vmatpush1.msra.mxu0 0.0
    %2920 = vmatprep.subr.mxu0 0.0
    %2921 = vmatpush1.msra.mxu0 0.0
    %2922 = vmatprep.subr.mxu0 0.0
    %2923 = vmatpush1.msra.mxu0 0.0
    %2924 = vmatprep.subr.mxu0 0.0
    %2925 = vmatpush1.msra.mxu0 0.0
    %2926 = vmatprep.subr.mxu0 0.0
    %2927 = vmatpush1.msra.mxu0 0.0
    %2928 = vmatprep.subr.mxu0 0.0
    %2929 = vmatpush1.msra.mxu0 0.0
    %2930 = vmatprep.subr.mxu0 0.0
    %2931 = vmatpush1.msra.mxu0 0.0
    %2932 = vmatprep.subr.mxu0 0.0
    %2933 = vmatpush1.msra.mxu0 0.0
    %2934 = vmatprep.subr.mxu0 0.0
    %2935 = vmatpush1.msra.mxu0 0.0
    %2936 = vmatprep.subr.mxu0 0.0
    %2937 = vmatpush1.msra.mxu0 0.0
    %2938 = vmatprep.subr.mxu0 0.0
    %2939 = vmatpush1.msra.mxu0 0.0
    %2940 = vmatprep.subr.mxu0 0.0
    %2941 = vmatpush1.msra.mxu0 0.0
    %2942 = vmatprep.subr.mxu0 0.0
    %2943 = vmatpush1.msra.mxu0 0.0
    %2944 = vmatprep.subr.mxu0 0.0
    %2945 = vmatpush1.msra.mxu0 0.0
    %2946 = vmatprep.subr.mxu0 0.0
    %2947 = vmatpush1.msra.mxu0 0.0
    %2948 = vmatprep.subr.mxu0 0.0
    %2949 = vmatpush1.msra.mxu0 0.0
    %2950 = vmatprep.subr.mxu0 0.0
    %2951 = vmatpush1.msra.mxu0 0.0
    %2952 = vmatprep.subr.mxu0 0.0
    %2953 = vmatpush1.msra.mxu0 0.0
    %2954 = vmatprep.mubr.f32.mxu0 0.0
    %v2955 = vand.u32 %v2626, 4294901760
    %v2956 = vsub.f32 %v2626, %v2955
    %v2957 = vand.u32 %v2956, 4294901760
    %2958 = vmatmul.mubr.f32.gmra.mrb[0].mxu0 %v2957
    %v2959 = vpop.f32.mrb[0].mxu0
    %v2960 = vadd.f32 %v2878, %v2959
    %v2961 = vpop.f32.mrb[0].mxu0
    %2962 = vmatprep.mubr.f32.mxu0 0.0
    %v2963 = vand.u32 %v2629, 4294901760
    %v2964 = vsub.f32 %v2629, %v2963
    %v2965 = vand.u32 %v2964, 4294901760
    %2966 = vmatmul.mubr.f32.gmra.mrb[0].mxu0 %v2965
    %v2967 = vpop.f32.mrb[0].mxu0
    %v2968 = vadd.f32 %v2885, %v2967
    %v2969 = vpop.f32.mrb[0].mxu0
    %2970 = vdwg.mxu0
    %2971 = vmatprep.subr.mxu0 0.0
    %v2972 = vand.u32 %v34, 4294901760
    %v2973 = vsub.f32 %v34, %v2972
    %v2974 = vand.u32 %v2973, 4294901760
    %2975 = vmatpush1.msra.mxu0 %v2974
    %2976 = vmatprep.subr.mxu0 0.0
    %v2977 = vand.u32 %v35, 4294901760
    %v2978 = vsub.f32 %v35, %v2977
    %v2979 = vand.u32 %v2978, 4294901760
    %2980 = vmatpush1.msra.mxu0 %v2979
    %2981 = vmatprep.subr.mxu0 0.0
    %2982 = vmatpush1.msra.mxu0 0.0
    %2983 = vmatprep.subr.mxu0 0.0
    %2984 = vmatpush1.msra.mxu0 0.0
    %2985 = vmatprep.subr.mxu0 0.0
    %2986 = vmatpush1.msra.mxu0 0.0
    %2987 = vmatprep.subr.mxu0 0.0
    %2988 = vmatpush1.msra.mxu0 0.0
    %2989 = vmatprep.subr.mxu0 0.0
    %2990 = vmatpush1.msra.mxu0 0.0
    %2991 = vmatprep.subr.mxu0 0.0
    %2992 = vmatpush1.msra.mxu0 0.0
    %2993 = vmatprep.subr.mxu0 0.0
    %2994 = vmatpush1.msra.mxu0 0.0
    %2995 = vmatprep.subr.mxu0 0.0
    %2996 = vmatpush1.msra.mxu0 0.0
    %2997 = vmatprep.subr.mxu0 0.0
    %2998 = vmatpush1.msra.mxu0 0.0
    %2999 = vmatprep.subr.mxu0 0.0
    %3000 = vmatpush1.msra.mxu0 0.0
    %3001 = vmatprep.subr.mxu0 0.0
    %3002 = vmatpush1.msra.mxu0 0.0
    %3003 = vmatprep.subr.mxu0 0.0
    %3004 = vmatpush1.msra.mxu0 0.0
    %3005 = vmatprep.subr.mxu0 0.0
    %3006 = vmatpush1.msra.mxu0 0.0
    %3007 = vmatprep.subr.mxu0 0.0
    %3008 = vmatpush1.msra.mxu0 0.0
    %3009 = vmatprep.subr.mxu0 0.0
    %3010 = vmatpush1.msra.mxu0 0.0
    %3011 = vmatprep.subr.mxu0 0.0
    %3012 = vmatpush1.msra.mxu0 0.0
    %3013 = vmatprep.subr.mxu0 0.0
    %3014 = vmatpush1.msra.mxu0 0.0
    %3015 = vmatprep.subr.mxu0 0.0
    %3016 = vmatpush1.msra.mxu0 0.0
    %3017 = vmatprep.subr.mxu0 0.0
    %3018 = vmatpush1.msra.mxu0 0.0
    %3019 = vmatprep.subr.mxu0 0.0
    %3020 = vmatpush1.msra.mxu0 0.0
    %3021 = vmatprep.subr.mxu0 0.0
    %3022 = vmatpush1.msra.mxu0 0.0
    %3023 = vmatprep.subr.mxu0 0.0
    %3024 = vmatpush1.msra.mxu0 0.0
    %3025 = vmatprep.subr.mxu0 0.0
    %3026 = vmatpush1.msra.mxu0 0.0
    %3027 = vmatprep.subr.mxu0 0.0
    %3028 = vmatpush1.msra.mxu0 0.0
    %3029 = vmatprep.subr.mxu0 0.0
    %3030 = vmatpush1.msra.mxu0 0.0
    %3031 = vmatprep.subr.mxu0 0.0
    %3032 = vmatpush1.msra.mxu0 0.0
    %3033 = vmatprep.subr.mxu0 0.0
    %3034 = vmatpush1.msra.mxu0 0.0
    %3035 = vmatprep.subr.mxu0 0.0
    %3036 = vmatpush1.msra.mxu0 0.0
    %3037 = vmatprep.subr.mxu0 0.0
    %3038 = vmatpush1.msra.mxu0 0.0
    %3039 = vmatprep.subr.mxu0 0.0
    %3040 = vmatpush1.msra.mxu0 0.0
    %3041 = vmatprep.mubr.f32.mxu0 0.0
    %v3042 = vand.u32 %v2626, 4294901760
    %3043 = vmatmul.mubr.f32.gmra.mrb[0].mxu0 %v3042
    %v3044 = vpop.f32.mrb[0].mxu0
    %v3045 = vadd.f32 %v2960, %v3044
    %v3046 = vpop.f32.mrb[0].mxu0
    %3047 = vmatprep.mubr.f32.mxu0 0.0
    %v3048 = vand.u32 %v2629, 4294901760
    %3049 = vmatmul.mubr.f32.gmra.mrb[0].mxu0 %v3048
    %v3050 = vpop.f32.mrb[0].mxu0
    %v3051 = vadd.f32 %v2968, %v3050
    %v3052 = vpop.f32.mrb[0].mxu0
    %3053 = vdwg.mxu0
    %3054 = vmatprep.subr.mxu0 0.0
    %v3055 = vand.u32 %v34, 4294901760
    %3056 = vmatpush1.msra.mxu0 %v3055
    %3057 = vmatprep.subr.mxu0 0.0
    %v3058 = vand.u32 %v35, 4294901760
    %3059 = vmatpush1.msra.mxu0 %v3058
    %3060 = vmatprep.subr.mxu0 0.0
    %3061 = vmatpush1.msra.mxu0 0.0
    %3062 = vmatprep.subr.mxu0 0.0
    %3063 = vmatpush1.msra.mxu0 0.0
    %3064 = vmatprep.subr.mxu0 0.0
    %3065 = vmatpush1.msra.mxu0 0.0
    %3066 = vmatprep.subr.mxu0 0.0
    %3067 = vmatpush1.msra.mxu0 0.0
    %3068 = vmatprep.subr.mxu0 0.0
    %3069 = vmatpush1.msra.mxu0 0.0
    %3070 = vmatprep.subr.mxu0 0.0
    %3071 = vmatpush1.msra.mxu0 0.0
    %3072 = vmatprep.subr.mxu0 0.0
    %3073 = vmatpush1.msra.mxu0 0.0
    %3074 = vmatprep.subr.mxu0 0.0
    %3075 = vmatpush1.msra.mxu0 0.0
    %3076 = vmatprep.subr.mxu0 0.0
    %3077 = vmatpush1.msra.mxu0 0.0
    %3078 = vmatprep.subr.mxu0 0.0
    %3079 = vmatpush1.msra.mxu0 0.0
    %3080 = vmatprep.subr.mxu0 0.0
    %3081 = vmatpush1.msra.mxu0 0.0
    %3082 = vmatprep.subr.mxu0 0.0
    %3083 = vmatpush1.msra.mxu0 0.0
    %3084 = vmatprep.subr.mxu0 0.0
    %3085 = vmatpush1.msra.mxu0 0.0
    %3086 = vmatprep.subr.mxu0 0.0
    %3087 = vmatpush1.msra.mxu0 0.0
    %3088 = vmatprep.subr.mxu0 0.0
    %3089 = vmatpush1.msra.mxu0 0.0
    %3090 = vmatprep.subr.mxu0 0.0
    %3091 = vmatpush1.msra.mxu0 0.0
    %3092 = vmatprep.subr.mxu0 0.0
    %3093 = vmatpush1.msra.mxu0 0.0
    %3094 = vmatprep.subr.mxu0 0.0
    %3095 = vmatpush1.msra.mxu0 0.0
    %3096 = vmatprep.subr.mxu0 0.0
    %3097 = vmatpush1.msra.mxu0 0.0
    %3098 = vmatprep.subr.mxu0 0.0
    %3099 = vmatpush1.msra.mxu0 0.0
    %3100 = vmatprep.subr.mxu0 0.0
    %3101 = vmatpush1.msra.mxu0 0.0
    %3102 = vmatprep.subr.mxu0 0.0
    %3103 = vmatpush1.msra.mxu0 0.0
    %3104 = vmatprep.subr.mxu0 0.0
    %3105 = vmatpush1.msra.mxu0 0.0
    %3106 = vmatprep.subr.mxu0 0.0
    %3107 = vmatpush1.msra.mxu0 0.0
    %3108 = vmatprep.subr.mxu0 0.0
    %3109 = vmatpush1.msra.mxu0 0.0
    %3110 = vmatprep.subr.mxu0 0.0
    %3111 = vmatpush1.msra.mxu0 0.0
    %3112 = vmatprep.subr.mxu0 0.0
    %3113 = vmatpush1.msra.mxu0 0.0
    %3114 = vmatprep.subr.mxu0 0.0
    %3115 = vmatpush1.msra.mxu0 0.0
    %3116 = vmatprep.subr.mxu0 0.0
    %3117 = vmatpush1.msra.mxu0 0.0
    %3118 = vmatprep.subr.mxu0 0.0
    %3119 = vmatpush1.msra.mxu0 0.0
    %3120 = vmatprep.mubr.f32.mxu0 0.0
    %v3121 = vand.u32 %v2626, 4294901760
    %3122 = vmatmul.mubr.f32.gmra.mrb[0].mxu0 %v3121
    %v3123 = vpop.f32.mrb[0].mxu0
    %v3124 = vadd.f32 %v3045, %v3123
    %v3125 = vpop.f32.mrb[0].mxu0
    %3126 = vmatprep.mubr.f32.mxu0 0.0
    %v3127 = vand.u32 %v2629, 4294901760
    %3128 = vmatmul.mubr.f32.gmra.mrb[0].mxu0 %v3127
    %v3129 = vpop.f32.mrb[0].mxu0
    %v3130 = vadd.f32 %v3051, %v3129
    %v3131 = vpop.f32.mrb[0].mxu0
    %3132 = vdwg.mxu0
    %s3133 = scalar_lea.vmem [#allocation2], 96
    %v3134 = vld [vmem:[%s3133] sm:$0xff]
    %v3135 = vld [vmem:[%s3133 + $0x8] sm:$0xff]
    %v3137 = vsel %vm65, %v3134, 0
    %v3140 = vsel %vm65, %v3135, 0
    %3142 = vmatprep.subr.mxu0 0.0
    %v3143 = vand.u32 %v50, 4294901760
    %3144 = vmatpush1.msra.mxu0 %v3143
    %3145 = vmatprep.subr.mxu0 0.0
    %v3146 = vand.u32 %v51, 4294901760
    %3147 = vmatpush1.msra.mxu0 %v3146
    %3148 = vmatprep.subr.mxu0 0.0
    %3149 = vmatpush1.msra.mxu0 0.0
    %3150 = vmatprep.subr.mxu0 0.0
    %3151 = vmatpush1.msra.mxu0 0.0
    %3152 = vmatprep.subr.mxu0 0.0
    %3153 = vmatpush1.msra.mxu0 0.0
    %3154 = vmatprep.subr.mxu0 0.0
    %3155 = vmatpush1.msra.mxu0 0.0
    %3156 = vmatprep.subr.mxu0 0.0
    %3157 = vmatpush1.msra.mxu0 0.0
    %3158 = vmatprep.subr.mxu0 0.0
    %3159 = vmatpush1.msra.mxu0 0.0
    %3160 = vmatprep.subr.mxu0 0.0
    %3161 = vmatpush1.msra.mxu0 0.0
    %3162 = vmatprep.subr.mxu0 0.0
    %3163 = vmatpush1.msra.mxu0 0.0
    %3164 = vmatprep.subr.mxu0 0.0
    %3165 = vmatpush1.msra.mxu0 0.0
    %3166 = vmatprep.subr.mxu0 0.0
    %3167 = vmatpush1.msra.mxu0 0.0
    %3168 = vmatprep.subr.mxu0 0.0
    %3169 = vmatpush1.msra.mxu0 0.0
    %3170 = vmatprep.subr.mxu0 0.0
    %3171 = vmatpush1.msra.mxu0 0.0
    %3172 = vmatprep.subr.mxu0 0.0
    %3173 = vmatpush1.msra.mxu0 0.0
    %3174 = vmatprep.subr.mxu0 0.0
    %3175 = vmatpush1.msra.mxu0 0.0
    %3176 = vmatprep.subr.mxu0 0.0
    %3177 = vmatpush1.msra.mxu0 0.0
    %3178 = vmatprep.subr.mxu0 0.0
    %3179 = vmatpush1.msra.mxu0 0.0
    %3180 = vmatprep.subr.mxu0 0.0
    %3181 = vmatpush1.msra.mxu0 0.0
    %3182 = vmatprep.subr.mxu0 0.0
    %3183 = vmatpush1.msra.mxu0 0.0
    %3184 = vmatprep.subr.mxu0 0.0
    %3185 = vmatpush1.msra.mxu0 0.0
    %3186 = vmatprep.subr.mxu0 0.0
    %3187 = vmatpush1.msra.mxu0 0.0
    %3188 = vmatprep.subr.mxu0 0.0
    %3189 = vmatpush1.msra.mxu0 0.0
    %3190 = vmatprep.subr.mxu0 0.0
    %3191 = vmatpush1.msra.mxu0 0.0
    %3192 = vmatprep.subr.mxu0 0.0
    %3193 = vmatpush1.msra.mxu0 0.0
    %3194 = vmatprep.subr.mxu0 0.0
    %3195 = vmatpush1.msra.mxu0 0.0
    %3196 = vmatprep.subr.mxu0 0.0
    %3197 = vmatpush1.msra.mxu0 0.0
    %3198 = vmatprep.subr.mxu0 0.0
    %3199 = vmatpush1.msra.mxu0 0.0
    %3200 = vmatprep.subr.mxu0 0.0
    %3201 = vmatpush1.msra.mxu0 0.0
    %3202 = vmatprep.subr.mxu0 0.0
    %3203 = vmatpush1.msra.mxu0 0.0
    %3204 = vmatprep.subr.mxu0 0.0
    %3205 = vmatpush1.msra.mxu0 0.0
    %3206 = vmatprep.subr.mxu0 0.0
    %3207 = vmatpush1.msra.mxu0 0.0
    %3208 = vmatprep.mubr.f32.mxu0 0.0
    %v3209 = vand.u32 %v3137, 4294901760
    %v3210 = vsub.f32 %v3137, %v3209
    %v3211 = vand.u32 %v3210, 4294901760
    %v3212 = vsub.f32 %v3210, %v3211
    %v3213 = vand.u32 %v3212, 4294901760
    %3214 = vmatmul.mubr.f32.gmra.mrb[0].mxu0 %v3213
    %v3215 = vpop.f32.mrb[0].mxu0
    %v3216 = vadd.f32 0.0, %v3215
    %v3217 = vpop.f32.mrb[0].mxu0
    %3218 = vmatprep.mubr.f32.mxu0 0.0
    %v3219 = vand.u32 %v3140, 4294901760
    %v3220 = vsub.f32 %v3140, %v3219
    %v3221 = vand.u32 %v3220, 4294901760
    %v3222 = vsub.f32 %v3220, %v3221
    %v3223 = vand.u32 %v3222, 4294901760
    %3224 = vmatmul.mubr.f32.gmra.mrb[0].mxu0 %v3223
    %v3225 = vpop.f32.mrb[0].mxu0
    %v3226 = vadd.f32 0.0, %v3225
    %v3227 = vpop.f32.mrb[0].mxu0
    %3228 = vdwg.mxu0
    %3229 = vmatprep.subr.mxu0 0.0
    %v3230 = vand.u32 %v50, 4294901760
    %v3231 = vsub.f32 %v50, %v3230
    %v3232 = vand.u32 %v3231, 4294901760
    %v3233 = vsub.f32 %v3231, %v3232
    %v3234 = vand.u32 %v3233, 4294901760
    %3235 = vmatpush1.msra.mxu0 %v3234
    %3236 = vmatprep.subr.mxu0 0.0
    %v3237 = vand.u32 %v51, 4294901760
    %v3238 = vsub.f32 %v51, %v3237
    %v3239 = vand.u32 %v3238, 4294901760
    %v3240 = vsub.f32 %v3238, %v3239
    %v3241 = vand.u32 %v3240, 4294901760
    %3242 = vmatpush1.msra.mxu0 %v3241
    %3243 = vmatprep.subr.mxu0 0.0
    %3244 = vmatpush1.msra.mxu0 0.0
    %3245 = vmatprep.subr.mxu0 0.0
    %3246 = vmatpush1.msra.mxu0 0.0
    %3247 = vmatprep.subr.mxu0 0.0
    %3248 = vmatpush1.msra.mxu0 0.0
    %3249 = vmatprep.subr.mxu0 0.0
    %3250 = vmatpush1.msra.mxu0 0.0
    %3251 = vmatprep.subr.mxu0 0.0
    %3252 = vmatpush1.msra.mxu0 0.0
    %3253 = vmatprep.subr.mxu0 0.0
    %3254 = vmatpush1.msra.mxu0 0.0
    %3255 = vmatprep.subr.mxu0 0.0
    %3256 = vmatpush1.msra.mxu0 0.0
    %3257 = vmatprep.subr.mxu0 0.0
    %3258 = vmatpush1.msra.mxu0 0.0
    %3259 = vmatprep.subr.mxu0 0.0
    %3260 = vmatpush1.msra.mxu0 0.0
    %3261 = vmatprep.subr.mxu0 0.0
    %3262 = vmatpush1.msra.mxu0 0.0
    %3263 = vmatprep.subr.mxu0 0.0
    %3264 = vmatpush1.msra.mxu0 0.0
    %3265 = vmatprep.subr.mxu0 0.0
    %3266 = vmatpush1.msra.mxu0 0.0
    %3267 = vmatprep.subr.mxu0 0.0
    %3268 = vmatpush1.msra.mxu0 0.0
    %3269 = vmatprep.subr.mxu0 0.0
    %3270 = vmatpush1.msra.mxu0 0.0
    %3271 = vmatprep.subr.mxu0 0.0
    %3272 = vmatpush1.msra.mxu0 0.0
    %3273 = vmatprep.subr.mxu0 0.0
    %3274 = vmatpush1.msra.mxu0 0.0
    %3275 = vmatprep.subr.mxu0 0.0
    %3276 = vmatpush1.msra.mxu0 0.0
    %3277 = vmatprep.subr.mxu0 0.0
    %3278 = vmatpush1.msra.mxu0 0.0
    %3279 = vmatprep.subr.mxu0 0.0
    %3280 = vmatpush1.msra.mxu0 0.0
    %3281 = vmatprep.subr.mxu0 0.0
    %3282 = vmatpush1.msra.mxu0 0.0
    %3283 = vmatprep.subr.mxu0 0.0
    %3284 = vmatpush1.msra.mxu0 0.0
    %3285 = vmatprep.subr.mxu0 0.0
    %3286 = vmatpush1.msra.mxu0 0.0
    %3287 = vmatprep.subr.mxu0 0.0
    %3288 = vmatpush1.msra.mxu0 0.0
    %3289 = vmatprep.subr.mxu0 0.0
    %3290 = vmatpush1.msra.mxu0 0.0
    %3291 = vmatprep.subr.mxu0 0.0
    %3292 = vmatpush1.msra.mxu0 0.0
    %3293 = vmatprep.subr.mxu0 0.0
    %3294 = vmatpush1.msra.mxu0 0.0
    %3295 = vmatprep.subr.mxu0 0.0
    %3296 = vmatpush1.msra.mxu0 0.0
    %3297 = vmatprep.subr.mxu0 0.0
    %3298 = vmatpush1.msra.mxu0 0.0
    %3299 = vmatprep.subr.mxu0 0.0
    %3300 = vmatpush1.msra.mxu0 0.0
    %3301 = vmatprep.subr.mxu0 0.0
    %3302 = vmatpush1.msra.mxu0 0.0
    %3303 = vmatprep.mubr.f32.mxu0 0.0
    %v3304 = vand.u32 %v3137, 4294901760
    %3305 = vmatmul.mubr.f32.gmra.mrb[0].mxu0 %v3304
    %v3306 = vpop.f32.mrb[0].mxu0
    %v3307 = vadd.f32 %v3216, %v3306
    %v3308 = vpop.f32.mrb[0].mxu0
    %3309 = vmatprep.mubr.f32.mxu0 0.0
    %v3310 = vand.u32 %v3140, 4294901760
    %3311 = vmatmul.mubr.f32.gmra.mrb[0].mxu0 %v3310
    %v3312 = vpop.f32.mrb[0].mxu0
    %v3313 = vadd.f32 %v3226, %v3312
    %v3314 = vpop.f32.mrb[0].mxu0
    %3315 = vdwg.mxu0
    %3316 = vmatprep.subr.mxu0 0.0
    %v3317 = vand.u32 %v50, 4294901760
    %v3318 = vsub.f32 %v50, %v3317
    %3319 = vmatpush1.msra.mxu0 %v3318
    %3320 = vmatprep.subr.mxu0 0.0
    %v3321 = vand.u32 %v51, 4294901760
    %v3322 = vsub.f32 %v51, %v3321
    %3323 = vmatpush1.msra.mxu0 %v3322
    %3324 = vmatprep.subr.mxu0 0.0
    %3325 = vmatpush1.msra.mxu0 0.0
    %3326 = vmatprep.subr.mxu0 0.0
    %3327 = vmatpush1.msra.mxu0 0.0
    %3328 = vmatprep.subr.mxu0 0.0
    %3329 = vmatpush1.msra.mxu0 0.0
    %3330 = vmatprep.subr.mxu0 0.0
    %3331 = vmatpush1.msra.mxu0 0.0
    %3332 = vmatprep.subr.mxu0 0.0
    %3333 = vmatpush1.msra.mxu0 0.0
    %3334 = vmatprep.subr.mxu0 0.0
    %3335 = vmatpush1.msra.mxu0 0.0
    %3336 = vmatprep.subr.mxu0 0.0
    %3337 = vmatpush1.msra.mxu0 0.0
    %3338 = vmatprep.subr.mxu0 0.0
    %3339 = vmatpush1.msra.mxu0 0.0
    %3340 = vmatprep.subr.mxu0 0.0
    %3341 = vmatpush1.msra.mxu0 0.0
    %3342 = vmatprep.subr.mxu0 0.0
    %3343 = vmatpush1.msra.mxu0 0.0
    %3344 = vmatprep.subr.mxu0 0.0
    %3345 = vmatpush1.msra.mxu0 0.0
    %3346 = vmatprep.subr.mxu0 0.0
    %3347 = vmatpush1.msra.mxu0 0.0
    %3348 = vmatprep.subr.mxu0 0.0
    %3349 = vmatpush1.msra.mxu0 0.0
    %3350 = vmatprep.subr.mxu0 0.0
    %3351 = vmatpush1.msra.mxu0 0.0
    %3352 = vmatprep.subr.mxu0 0.0
    %3353 = vmatpush1.msra.mxu0 0.0
    %3354 = vmatprep.subr.mxu0 0.0
    %3355 = vmatpush1.msra.mxu0 0.0
    %3356 = vmatprep.subr.mxu0 0.0
    %3357 = vmatpush1.msra.mxu0 0.0
    %3358 = vmatprep.subr.mxu0 0.0
    %3359 = vmatpush1.msra.mxu0 0.0
    %3360 = vmatprep.subr.mxu0 0.0
    %3361 = vmatpush1.msra.mxu0 0.0
    %3362 = vmatprep.subr.mxu0 0.0
    %3363 = vmatpush1.msra.mxu0 0.0
    %3364 = vmatprep.subr.mxu0 0.0
    %3365 = vmatpush1.msra.mxu0 0.0
    %3366 = vmatprep.subr.mxu0 0.0
    %3367 = vmatpush1.msra.mxu0 0.0
    %3368 = vmatprep.subr.mxu0 0.0
    %3369 = vmatpush1.msra.mxu0 0.0
    %3370 = vmatprep.subr.mxu0 0.0
    %3371 = vmatpush1.msra.mxu0 0.0
    %3372 = vmatprep.subr.mxu0 0.0
    %3373 = vmatpush1.msra.mxu0 0.0
    %3374 = vmatprep.subr.mxu0 0.0
    %3375 = vmatpush1.msra.mxu0 0.0
    %3376 = vmatprep.subr.mxu0 0.0
    %3377 = vmatpush1.msra.mxu0 0.0
    %3378 = vmatprep.subr.mxu0 0.0
    %3379 = vmatpush1.msra.mxu0 0.0
    %3380 = vmatprep.subr.mxu0 0.0
    %3381 = vmatpush1.msra.mxu0 0.0
    %3382 = vmatprep.subr.mxu0 0.0
    %3383 = vmatpush1.msra.mxu0 0.0
    %3384 = vmatprep.mubr.f32.mxu0 0.0
    %v3385 = vand.u32 %v3137, 4294901760
    %v3386 = vsub.f32 %v3137, %v3385
    %3387 = vmatmul.mubr.f32.gmra.mrb[0].mxu0 %v3386
    %v3388 = vpop.f32.mrb[0].mxu0
    %v3389 = vadd.f32 %v3307, %v3388
    %v3390 = vpop.f32.mrb[0].mxu0
    %3391 = vmatprep.mubr.f32.mxu0 0.0
    %v3392 = vand.u32 %v3140, 4294901760
    %v3393 = vsub.f32 %v3140, %v3392
    %3394 = vmatmul.mubr.f32.gmra.mrb[0].mxu0 %v3393
    %v3395 = vpop.f32.mrb[0].mxu0
    %v3396 = vadd.f32 %v3313, %v3395
    %v3397 = vpop.f32.mrb[0].mxu0
    %3398 = vdwg.mxu0
    %3399 = vmatprep.subr.mxu0 0.0
    %v3400 = vand.u32 %v50, 4294901760
    %3401 = vmatpush1.msra.mxu0 %v3400
    %3402 = vmatprep.subr.mxu0 0.0
    %v3403 = vand.u32 %v51, 4294901760
    %3404 = vmatpush1.msra.mxu0 %v3403
    %3405 = vmatprep.subr.mxu0 0.0
    %3406 = vmatpush1.msra.mxu0 0.0
    %3407 = vmatprep.subr.mxu0 0.0
    %3408 = vmatpush1.msra.mxu0 0.0
    %3409 = vmatprep.subr.mxu0 0.0
    %3410 = vmatpush1.msra.mxu0 0.0
    %3411 = vmatprep.subr.mxu0 0.0
    %3412 = vmatpush1.msra.mxu0 0.0
    %3413 = vmatprep.subr.mxu0 0.0
    %3414 = vmatpush1.msra.mxu0 0.0
    %3415 = vmatprep.subr.mxu0 0.0
    %3416 = vmatpush1.msra.mxu0 0.0
    %3417 = vmatprep.subr.mxu0 0.0
    %3418 = vmatpush1.msra.mxu0 0.0
    %3419 = vmatprep.subr.mxu0 0.0
    %3420 = vmatpush1.msra.mxu0 0.0
    %3421 = vmatprep.subr.mxu0 0.0
    %3422 = vmatpush1.msra.mxu0 0.0
    %3423 = vmatprep.subr.mxu0 0.0
    %3424 = vmatpush1.msra.mxu0 0.0
    %3425 = vmatprep.subr.mxu0 0.0
    %3426 = vmatpush1.msra.mxu0 0.0
    %3427 = vmatprep.subr.mxu0 0.0
    %3428 = vmatpush1.msra.mxu0 0.0
    %3429 = vmatprep.subr.mxu0 0.0
    %3430 = vmatpush1.msra.mxu0 0.0
    %3431 = vmatprep.subr.mxu0 0.0
    %3432 = vmatpush1.msra.mxu0 0.0
    %3433 = vmatprep.subr.mxu0 0.0
    %3434 = vmatpush1.msra.mxu0 0.0
    %3435 = vmatprep.subr.mxu0 0.0
    %3436 = vmatpush1.msra.mxu0 0.0
    %3437 = vmatprep.subr.mxu0 0.0
    %3438 = vmatpush1.msra.mxu0 0.0
    %3439 = vmatprep.subr.mxu0 0.0
    %3440 = vmatpush1.msra.mxu0 0.0
    %3441 = vmatprep.subr.mxu0 0.0
    %3442 = vmatpush1.msra.mxu0 0.0
    %3443 = vmatprep.subr.mxu0 0.0
    %3444 = vmatpush1.msra.mxu0 0.0
    %3445 = vmatprep.subr.mxu0 0.0
    %3446 = vmatpush1.msra.mxu0 0.0
    %3447 = vmatprep.subr.mxu0 0.0
    %3448 = vmatpush1.msra.mxu0 0.0
    %3449 = vmatprep.subr.mxu0 0.0
    %3450 = vmatpush1.msra.mxu0 0.0
    %3451 = vmatprep.subr.mxu0 0.0
    %3452 = vmatpush1.msra.mxu0 0.0
    %3453 = vmatprep.subr.mxu0 0.0
    %3454 = vmatpush1.msra.mxu0 0.0
    %3455 = vmatprep.subr.mxu0 0.0
    %3456 = vmatpush1.msra.mxu0 0.0
    %3457 = vmatprep.subr.mxu0 0.0
    %3458 = vmatpush1.msra.mxu0 0.0
    %3459 = vmatprep.subr.mxu0 0.0
    %3460 = vmatpush1.msra.mxu0 0.0
    %3461 = vmatprep.subr.mxu0 0.0
    %3462 = vmatpush1.msra.mxu0 0.0
    %3463 = vmatprep.subr.mxu0 0.0
    %3464 = vmatpush1.msra.mxu0 0.0
    %3465 = vmatprep.mubr.f32.mxu0 0.0
    %v3466 = vand.u32 %v3137, 4294901760
    %v3467 = vsub.f32 %v3137, %v3466
    %v3468 = vand.u32 %v3467, 4294901760
    %3469 = vmatmul.mubr.f32.gmra.mrb[0].mxu0 %v3468
    %v3470 = vpop.f32.mrb[0].mxu0
    %v3471 = vadd.f32 %v3389, %v3470
    %v3472 = vpop.f32.mrb[0].mxu0
    %3473 = vmatprep.mubr.f32.mxu0 0.0
    %v3474 = vand.u32 %v3140, 4294901760
    %v3475 = vsub.f32 %v3140, %v3474
    %v3476 = vand.u32 %v3475, 4294901760
    %3477 = vmatmul.mubr.f32.gmra.mrb[0].mxu0 %v3476
    %v3478 = vpop.f32.mrb[0].mxu0
    %v3479 = vadd.f32 %v3396, %v3478
    %v3480 = vpop.f32.mrb[0].mxu0
    %3481 = vdwg.mxu0
    %3482 = vmatprep.subr.mxu0 0.0
    %v3483 = vand.u32 %v50, 4294901760
    %v3484 = vsub.f32 %v50, %v3483
    %v3485 = vand.u32 %v3484, 4294901760
    %3486 = vmatpush1.msra.mxu0 %v3485
    %3487 = vmatprep.subr.mxu0 0.0
    %v3488 = vand.u32 %v51, 4294901760
    %v3489 = vsub.f32 %v51, %v3488
    %v3490 = vand.u32 %v3489, 4294901760
    %3491 = vmatpush1.msra.mxu0 %v3490
    %3492 = vmatprep.subr.mxu0 0.0
    %3493 = vmatpush1.msra.mxu0 0.0
    %3494 = vmatprep.subr.mxu0 0.0
    %3495 = vmatpush1.msra.mxu0 0.0
    %3496 = vmatprep.subr.mxu0 0.0
    %3497 = vmatpush1.msra.mxu0 0.0
    %3498 = vmatprep.subr.mxu0 0.0
    %3499 = vmatpush1.msra.mxu0 0.0
    %3500 = vmatprep.subr.mxu0 0.0
    %3501 = vmatpush1.msra.mxu0 0.0
    %3502 = vmatprep.subr.mxu0 0.0
    %3503 = vmatpush1.msra.mxu0 0.0
    %3504 = vmatprep.subr.mxu0 0.0
    %3505 = vmatpush1.msra.mxu0 0.0
    %3506 = vmatprep.subr.mxu0 0.0
    %3507 = vmatpush1.msra.mxu0 0.0
    %3508 = vmatprep.subr.mxu0 0.0
    %3509 = vmatpush1.msra.mxu0 0.0
    %3510 = vmatprep.subr.mxu0 0.0
    %3511 = vmatpush1.msra.mxu0 0.0
    %3512 = vmatprep.subr.mxu0 0.0
    %3513 = vmatpush1.msra.mxu0 0.0
    %3514 = vmatprep.subr.mxu0 0.0
    %3515 = vmatpush1.msra.mxu0 0.0
    %3516 = vmatprep.subr.mxu0 0.0
    %3517 = vmatpush1.msra.mxu0 0.0
    %3518 = vmatprep.subr.mxu0 0.0
    %3519 = vmatpush1.msra.mxu0 0.0
    %3520 = vmatprep.subr.mxu0 0.0
    %3521 = vmatpush1.msra.mxu0 0.0
    %3522 = vmatprep.subr.mxu0 0.0
    %3523 = vmatpush1.msra.mxu0 0.0
    %3524 = vmatprep.subr.mxu0 0.0
    %3525 = vmatpush1.msra.mxu0 0.0
    %3526 = vmatprep.subr.mxu0 0.0
    %3527 = vmatpush1.msra.mxu0 0.0
    %3528 = vmatprep.subr.mxu0 0.0
    %3529 = vmatpush1.msra.mxu0 0.0
    %3530 = vmatprep.subr.mxu0 0.0
    %3531 = vmatpush1.msra.mxu0 0.0
    %3532 = vmatprep.subr.mxu0 0.0
    %3533 = vmatpush1.msra.mxu0 0.0
    %3534 = vmatprep.subr.mxu0 0.0
    %3535 = vmatpush1.msra.mxu0 0.0
    %3536 = vmatprep.subr.mxu0 0.0
    %3537 = vmatpush1.msra.mxu0 0.0
    %3538 = vmatprep.subr.mxu0 0.0
    %3539 = vmatpush1.msra.mxu0 0.0
    %3540 = vmatprep.subr.mxu0 0.0
    %3541 = vmatpush1.msra.mxu0 0.0
    %3542 = vmatprep.subr.mxu0 0.0
    %3543 = vmatpush1.msra.mxu0 0.0
    %3544 = vmatprep.subr.mxu0 0.0
    %3545 = vmatpush1.msra.mxu0 0.0
    %3546 = vmatprep.subr.mxu0 0.0
    %3547 = vmatpush1.msra.mxu0 0.0
    %3548 = vmatprep.subr.mxu0 0.0
    %3549 = vmatpush1.msra.mxu0 0.0
    %3550 = vmatprep.subr.mxu0 0.0
    %3551 = vmatpush1.msra.mxu0 0.0
    %3552 = vmatprep.mubr.f32.mxu0 0.0
    %v3553 = vand.u32 %v3137, 4294901760
    %3554 = vmatmul.mubr.f32.gmra.mrb[0].mxu0 %v3553
    %v3555 = vpop.f32.mrb[0].mxu0
    %v3556 = vadd.f32 %v3471, %v3555
    %v3557 = vpop.f32.mrb[0].mxu0
    %3558 = vmatprep.mubr.f32.mxu0 0.0
    %v3559 = vand.u32 %v3140, 4294901760
    %3560 = vmatmul.mubr.f32.gmra.mrb[0].mxu0 %v3559
    %v3561 = vpop.f32.mrb[0].mxu0
    %v3562 = vadd.f32 %v3479, %v3561
    %v3563 = vpop.f32.mrb[0].mxu0
    %3564 = vdwg.mxu0
    %3565 = vmatprep.subr.mxu0 0.0
    %v3566 = vand.u32 %v50, 4294901760
    %3567 = vmatpush1.msra.mxu0 %v3566
    %3568 = vmatprep.subr.mxu0 0.0
    %v3569 = vand.u32 %v51, 4294901760
    %3570 = vmatpush1.msra.mxu0 %v3569
    %3571 = vmatprep.subr.mxu0 0.0
    %3572 = vmatpush1.msra.mxu0 0.0
    %3573 = vmatprep.subr.mxu0 0.0
    %3574 = vmatpush1.msra.mxu0 0.0
    %3575 = vmatprep.subr.mxu0 0.0
    %3576 = vmatpush1.msra.mxu0 0.0
    %3577 = vmatprep.subr.mxu0 0.0
    %3578 = vmatpush1.msra.mxu0 0.0
    %3579 = vmatprep.subr.mxu0 0.0
    %3580 = vmatpush1.msra.mxu0 0.0
    %3581 = vmatprep.subr.mxu0 0.0
    %3582 = vmatpush1.msra.mxu0 0.0
    %3583 = vmatprep.subr.mxu0 0.0
    %3584 = vmatpush1.msra.mxu0 0.0
    %3585 = vmatprep.subr.mxu0 0.0
    %3586 = vmatpush1.msra.mxu0 0.0
    %3587 = vmatprep.subr.mxu0 0.0
    %3588 = vmatpush1.msra.mxu0 0.0
    %3589 = vmatprep.subr.mxu0 0.0
    %3590 = vmatpush1.msra.mxu0 0.0
    %3591 = vmatprep.subr.mxu0 0.0
    %3592 = vmatpush1.msra.mxu0 0.0
    %3593 = vmatprep.subr.mxu0 0.0
    %3594 = vmatpush1.msra.mxu0 0.0
    %3595 = vmatprep.subr.mxu0 0.0
    %3596 = vmatpush1.msra.mxu0 0.0
    %3597 = vmatprep.subr.mxu0 0.0
    %3598 = vmatpush1.msra.mxu0 0.0
    %3599 = vmatprep.subr.mxu0 0.0
    %3600 = vmatpush1.msra.mxu0 0.0
    %3601 = vmatprep.subr.mxu0 0.0
    %3602 = vmatpush1.msra.mxu0 0.0
    %3603 = vmatprep.subr.mxu0 0.0
    %3604 = vmatpush1.msra.mxu0 0.0
    %3605 = vmatprep.subr.mxu0 0.0
    %3606 = vmatpush1.msra.mxu0 0.0
    %3607 = vmatprep.subr.mxu0 0.0
    %3608 = vmatpush1.msra.mxu0 0.0
    %3609 = vmatprep.subr.mxu0 0.0
    %3610 = vmatpush1.msra.mxu0 0.0
    %3611 = vmatprep.subr.mxu0 0.0
    %3612 = vmatpush1.msra.mxu0 0.0
    %3613 = vmatprep.subr.mxu0 0.0
    %3614 = vmatpush1.msra.mxu0 0.0
    %3615 = vmatprep.subr.mxu0 0.0
    %3616 = vmatpush1.msra.mxu0 0.0
    %3617 = vmatprep.subr.mxu0 0.0
    %3618 = vmatpush1.msra.mxu0 0.0
    %3619 = vmatprep.subr.mxu0 0.0
    %3620 = vmatpush1.msra.mxu0 0.0
    %3621 = vmatprep.subr.mxu0 0.0
    %3622 = vmatpush1.msra.mxu0 0.0
    %3623 = vmatprep.subr.mxu0 0.0
    %3624 = vmatpush1.msra.mxu0 0.0
    %3625 = vmatprep.subr.mxu0 0.0
    %3626 = vmatpush1.msra.mxu0 0.0
    %3627 = vmatprep.subr.mxu0 0.0
    %3628 = vmatpush1.msra.mxu0 0.0
    %3629 = vmatprep.subr.mxu0 0.0
    %3630 = vmatpush1.msra.mxu0 0.0
    %3631 = vmatprep.mubr.f32.mxu0 0.0
    %v3632 = vand.u32 %v3137, 4294901760
    %3633 = vmatmul.mubr.f32.gmra.mrb[0].mxu0 %v3632
    %v3634 = vpop.f32.mrb[0].mxu0
    %v3635 = vadd.f32 %v3556, %v3634
    %v3636 = vpop.f32.mrb[0].mxu0
    %3637 = vmatprep.mubr.f32.mxu0 0.0
    %v3638 = vand.u32 %v3140, 4294901760
    %3639 = vmatmul.mubr.f32.gmra.mrb[0].mxu0 %v3638
    %v3640 = vpop.f32.mrb[0].mxu0
    %v3641 = vadd.f32 %v3562, %v3640
    %v3642 = vpop.f32.mrb[0].mxu0
    %3643 = vdwg.mxu0
    %v3644 = vadd.f32 %v3124, %v3635
    %v3645 = vadd.f32 %v3130, %v3641
    %s3646 = scalar_lea.vmem [#allocation2], 112
    %v3647 = vld [vmem:[%s3646] sm:$0xff]
    %v3648 = vld [vmem:[%s3646 + $0x8] sm:$0xff]
    %v3650 = vsel %vm65, %v3647, 0
    %v3653 = vsel %vm65, %v3648, 0
    %3655 = vmatprep.subr.mxu0 0.0
    %v3656 = vand.u32 %v58, 4294901760
    %3657 = vmatpush1.msra.mxu0 %v3656
    %3658 = vmatprep.subr.mxu0 0.0
    %v3659 = vand.u32 %v59, 4294901760
    %3660 = vmatpush1.msra.mxu0 %v3659
    %3661 = vmatprep.subr.mxu0 0.0
    %3662 = vmatpush1.msra.mxu0 0.0
    %3663 = vmatprep.subr.mxu0 0.0
    %3664 = vmatpush1.msra.mxu0 0.0
    %3665 = vmatprep.subr.mxu0 0.0
    %3666 = vmatpush1.msra.mxu0 0.0
    %3667 = vmatprep.subr.mxu0 0.0
    %3668 = vmatpush1.msra.mxu0 0.0
    %3669 = vmatprep.subr.mxu0 0.0
    %3670 = vmatpush1.msra.mxu0 0.0
    %3671 = vmatprep.subr.mxu0 0.0
    %3672 = vmatpush1.msra.mxu0 0.0
    %3673 = vmatprep.subr.mxu0 0.0
    %3674 = vmatpush1.msra.mxu0 0.0
    %3675 = vmatprep.subr.mxu0 0.0
    %3676 = vmatpush1.msra.mxu0 0.0
    %3677 = vmatprep.subr.mxu0 0.0
    %3678 = vmatpush1.msra.mxu0 0.0
    %3679 = vmatprep.subr.mxu0 0.0
    %3680 = vmatpush1.msra.mxu0 0.0
    %3681 = vmatprep.subr.mxu0 0.0
    %3682 = vmatpush1.msra.mxu0 0.0
    %3683 = vmatprep.subr.mxu0 0.0
    %3684 = vmatpush1.msra.mxu0 0.0
    %3685 = vmatprep.subr.mxu0 0.0
    %3686 = vmatpush1.msra.mxu0 0.0
    %3687 = vmatprep.subr.mxu0 0.0
    %3688 = vmatpush1.msra.mxu0 0.0
    %3689 = vmatprep.subr.mxu0 0.0
    %3690 = vmatpush1.msra.mxu0 0.0
    %3691 = vmatprep.subr.mxu0 0.0
    %3692 = vmatpush1.msra.mxu0 0.0
    %3693 = vmatprep.subr.mxu0 0.0
    %3694 = vmatpush1.msra.mxu0 0.0
    %3695 = vmatprep.subr.mxu0 0.0
    %3696 = vmatpush1.msra.mxu0 0.0
    %3697 = vmatprep.subr.mxu0 0.0
    %3698 = vmatpush1.msra.mxu0 0.0
    %3699 = vmatprep.subr.mxu0 0.0
    %3700 = vmatpush1.msra.mxu0 0.0
    %3701 = vmatprep.subr.mxu0 0.0
    %3702 = vmatpush1.msra.mxu0 0.0
    %3703 = vmatprep.subr.mxu0 0.0
    %3704 = vmatpush1.msra.mxu0 0.0
    %3705 = vmatprep.subr.mxu0 0.0
    %3706 = vmatpush1.msra.mxu0 0.0
    %3707 = vmatprep.subr.mxu0 0.0
    %3708 = vmatpush1.msra.mxu0 0.0
    %3709 = vmatprep.subr.mxu0 0.0
    %3710 = vmatpush1.msra.mxu0 0.0
    %3711 = vmatprep.subr.mxu0 0.0
    %3712 = vmatpush1.msra.mxu0 0.0
    %3713 = vmatprep.subr.mxu0 0.0
    %3714 = vmatpush1.msra.mxu0 0.0
    %3715 = vmatprep.subr.mxu0 0.0
    %3716 = vmatpush1.msra.mxu0 0.0
    %3717 = vmatprep.subr.mxu0 0.0
    %3718 = vmatpush1.msra.mxu0 0.0
    %3719 = vmatprep.subr.mxu0 0.0
    %3720 = vmatpush1.msra.mxu0 0.0
    %3721 = vmatprep.mubr.f32.mxu0 0.0
    %v3722 = vand.u32 %v3650, 4294901760
    %v3723 = vsub.f32 %v3650, %v3722
    %v3724 = vand.u32 %v3723, 4294901760
    %v3725 = vsub.f32 %v3723, %v3724
    %v3726 = vand.u32 %v3725, 4294901760
    %3727 = vmatmul.mubr.f32.gmra.mrb[0].mxu0 %v3726
    %v3728 = vpop.f32.mrb[0].mxu0
    %v3729 = vadd.f32 0.0, %v3728
    %v3730 = vpop.f32.mrb[0].mxu0
    %3731 = vmatprep.mubr.f32.mxu0 0.0
    %v3732 = vand.u32 %v3653, 4294901760
    %v3733 = vsub.f32 %v3653, %v3732
    %v3734 = vand.u32 %v3733, 4294901760
    %v3735 = vsub.f32 %v3733, %v3734
    %v3736 = vand.u32 %v3735, 4294901760
    %3737 = vmatmul.mubr.f32.gmra.mrb[0].mxu0 %v3736
    %v3738 = vpop.f32.mrb[0].mxu0
    %v3739 = vadd.f32 0.0, %v3738
    %v3740 = vpop.f32.mrb[0].mxu0
    %3741 = vdwg.mxu0
    %3742 = vmatprep.subr.mxu0 0.0
    %v3743 = vand.u32 %v58, 4294901760
    %v3744 = vsub.f32 %v58, %v3743
    %v3745 = vand.u32 %v3744, 4294901760
    %v3746 = vsub.f32 %v3744, %v3745
    %v3747 = vand.u32 %v3746, 4294901760
    %3748 = vmatpush1.msra.mxu0 %v3747
    %3749 = vmatprep.subr.mxu0 0.0
    %v3750 = vand.u32 %v59, 4294901760
    %v3751 = vsub.f32 %v59, %v3750
    %v3752 = vand.u32 %v3751, 4294901760
    %v3753 = vsub.f32 %v3751, %v3752
    %v3754 = vand.u32 %v3753, 4294901760
    %3755 = vmatpush1.msra.mxu0 %v3754
    %3756 = vmatprep.subr.mxu0 0.0
    %3757 = vmatpush1.msra.mxu0 0.0
    %3758 = vmatprep.subr.mxu0 0.0
    %3759 = vmatpush1.msra.mxu0 0.0
    %3760 = vmatprep.subr.mxu0 0.0
    %3761 = vmatpush1.msra.mxu0 0.0
    %3762 = vmatprep.subr.mxu0 0.0
    %3763 = vmatpush1.msra.mxu0 0.0
    %3764 = vmatprep.subr.mxu0 0.0
    %3765 = vmatpush1.msra.mxu0 0.0
    %3766 = vmatprep.subr.mxu0 0.0
    %3767 = vmatpush1.msra.mxu0 0.0
    %3768 = vmatprep.subr.mxu0 0.0
    %3769 = vmatpush1.msra.mxu0 0.0
    %3770 = vmatprep.subr.mxu0 0.0
    %3771 = vmatpush1.msra.mxu0 0.0
    %3772 = vmatprep.subr.mxu0 0.0
    %3773 = vmatpush1.msra.mxu0 0.0
    %3774 = vmatprep.subr.mxu0 0.0
    %3775 = vmatpush1.msra.mxu0 0.0
    %3776 = vmatprep.subr.mxu0 0.0
    %3777 = vmatpush1.msra.mxu0 0.0
    %3778 = vmatprep.subr.mxu0 0.0
    %3779 = vmatpush1.msra.mxu0 0.0
    %3780 = vmatprep.subr.mxu0 0.0
    %3781 = vmatpush1.msra.mxu0 0.0
    %3782 = vmatprep.subr.mxu0 0.0
    %3783 = vmatpush1.msra.mxu0 0.0
    %3784 = vmatprep.subr.mxu0 0.0
    %3785 = vmatpush1.msra.mxu0 0.0
    %3786 = vmatprep.subr.mxu0 0.0
    %3787 = vmatpush1.msra.mxu0 0.0
    %3788 = vmatprep.subr.mxu0 0.0
    %3789 = vmatpush1.msra.mxu0 0.0
    %3790 = vmatprep.subr.mxu0 0.0
    %3791 = vmatpush1.msra.mxu0 0.0
    %3792 = vmatprep.subr.mxu0 0.0
    %3793 = vmatpush1.msra.mxu0 0.0
    %3794 = vmatprep.subr.mxu0 0.0
    %3795 = vmatpush1.msra.mxu0 0.0
    %3796 = vmatprep.subr.mxu0 0.0
    %3797 = vmatpush1.msra.mxu0 0.0
    %3798 = vmatprep.subr.mxu0 0.0
    %3799 = vmatpush1.msra.mxu0 0.0
    %3800 = vmatprep.subr.mxu0 0.0
    %3801 = vmatpush1.msra.mxu0 0.0
    %3802 = vmatprep.subr.mxu0 0.0
    %3803 = vmatpush1.msra.mxu0 0.0
    %3804 = vmatprep.subr.mxu0 0.0
    %3805 = vmatpush1.msra.mxu0 0.0
    %3806 = vmatprep.subr.mxu0 0.0
    %3807 = vmatpush1.msra.mxu0 0.0
    %3808 = vmatprep.subr.mxu0 0.0
    %3809 = vmatpush1.msra.mxu0 0.0
    %3810 = vmatprep.subr.mxu0 0.0
    %3811 = vmatpush1.msra.mxu0 0.0
    %3812 = vmatprep.subr.mxu0 0.0
    %3813 = vmatpush1.msra.mxu0 0.0
    %3814 = vmatprep.subr.mxu0 0.0
    %3815 = vmatpush1.msra.mxu0 0.0
    %3816 = vmatprep.mubr.f32.mxu0 0.0
    %v3817 = vand.u32 %v3650, 4294901760
    %3818 = vmatmul.mubr.f32.gmra.mrb[0].mxu0 %v3817
    %v3819 = vpop.f32.mrb[0].mxu0
    %v3820 = vadd.f32 %v3729, %v3819
    %v3821 = vpop.f32.mrb[0].mxu0
    %3822 = vmatprep.mubr.f32.mxu0 0.0
    %v3823 = vand.u32 %v3653, 4294901760
    %3824 = vmatmul.mubr.f32.gmra.mrb[0].mxu0 %v3823
    %v3825 = vpop.f32.mrb[0].mxu0
    %v3826 = vadd.f32 %v3739, %v3825
    %v3827 = vpop.f32.mrb[0].mxu0
    %3828 = vdwg.mxu0
    %3829 = vmatprep.subr.mxu0 0.0
    %v3830 = vand.u32 %v58, 4294901760
    %v3831 = vsub.f32 %v58, %v3830
    %3832 = vmatpush1.msra.mxu0 %v3831
    %3833 = vmatprep.subr.mxu0 0.0
    %v3834 = vand.u32 %v59, 4294901760
    %v3835 = vsub.f32 %v59, %v3834
    %3836 = vmatpush1.msra.mxu0 %v3835
    %3837 = vmatprep.subr.mxu0 0.0
    %3838 = vmatpush1.msra.mxu0 0.0
    %3839 = vmatprep.subr.mxu0 0.0
    %3840 = vmatpush1.msra.mxu0 0.0
    %3841 = vmatprep.subr.mxu0 0.0
    %3842 = vmatpush1.msra.mxu0 0.0
    %3843 = vmatprep.subr.mxu0 0.0
    %3844 = vmatpush1.msra.mxu0 0.0
    %3845 = vmatprep.subr.mxu0 0.0
    %3846 = vmatpush1.msra.mxu0 0.0
    %3847 = vmatprep.subr.mxu0 0.0
    %3848 = vmatpush1.msra.mxu0 0.0
    %3849 = vmatprep.subr.mxu0 0.0
    %3850 = vmatpush1.msra.mxu0 0.0
    %3851 = vmatprep.subr.mxu0 0.0
    %3852 = vmatpush1.msra.mxu0 0.0
    %3853 = vmatprep.subr.mxu0 0.0
    %3854 = vmatpush1.msra.mxu0 0.0
    %3855 = vmatprep.subr.mxu0 0.0
    %3856 = vmatpush1.msra.mxu0 0.0
    %3857 = vmatprep.subr.mxu0 0.0
    %3858 = vmatpush1.msra.mxu0 0.0
    %3859 = vmatprep.subr.mxu0 0.0
    %3860 = vmatpush1.msra.mxu0 0.0
    %3861 = vmatprep.subr.mxu0 0.0
    %3862 = vmatpush1.msra.mxu0 0.0
    %3863 = vmatprep.subr.mxu0 0.0
    %3864 = vmatpush1.msra.mxu0 0.0
    %3865 = vmatprep.subr.mxu0 0.0
    %3866 = vmatpush1.msra.mxu0 0.0
    %3867 = vmatprep.subr.mxu0 0.0
    %3868 = vmatpush1.msra.mxu0 0.0
    %3869 = vmatprep.subr.mxu0 0.0
    %3870 = vmatpush1.msra.mxu0 0.0
    %3871 = vmatprep.subr.mxu0 0.0
    %3872 = vmatpush1.msra.mxu0 0.0
    %3873 = vmatprep.subr.mxu0 0.0
    %3874 = vmatpush1.msra.mxu0 0.0
    %3875 = vmatprep.subr.mxu0 0.0
    %3876 = vmatpush1.msra.mxu0 0.0
    %3877 = vmatprep.subr.mxu0 0.0
    %3878 = vmatpush1.msra.mxu0 0.0
    %3879 = vmatprep.subr.mxu0 0.0
    %3880 = vmatpush1.msra.mxu0 0.0
    %3881 = vmatprep.subr.mxu0 0.0
    %3882 = vmatpush1.msra.mxu0 0.0
    %3883 = vmatprep.subr.mxu0 0.0
    %3884 = vmatpush1.msra.mxu0 0.0
    %3885 = vmatprep.subr.mxu0 0.0
    %3886 = vmatpush1.msra.mxu0 0.0
    %3887 = vmatprep.subr.mxu0 0.0
    %3888 = vmatpush1.msra.mxu0 0.0
    %3889 = vmatprep.subr.mxu0 0.0
    %3890 = vmatpush1.msra.mxu0 0.0
    %3891 = vmatprep.subr.mxu0 0.0
    %3892 = vmatpush1.msra.mxu0 0.0
    %3893 = vmatprep.subr.mxu0 0.0
    %3894 = vmatpush1.msra.mxu0 0.0
    %3895 = vmatprep.subr.mxu0 0.0
    %3896 = vmatpush1.msra.mxu0 0.0
    %3897 = vmatprep.mubr.f32.mxu0 0.0
    %v3898 = vand.u32 %v3650, 4294901760
    %v3899 = vsub.f32 %v3650, %v3898
    %3900 = vmatmul.mubr.f32.gmra.mrb[0].mxu0 %v3899
    %v3901 = vpop.f32.mrb[0].mxu0
    %v3902 = vadd.f32 %v3820, %v3901
    %v3903 = vpop.f32.mrb[0].mxu0
    %3904 = vmatprep.mubr.f32.mxu0 0.0
    %v3905 = vand.u32 %v3653, 4294901760
    %v3906 = vsub.f32 %v3653, %v3905
    %3907 = vmatmul.mubr.f32.gmra.mrb[0].mxu0 %v3906
    %v3908 = vpop.f32.mrb[0].mxu0
    %v3909 = vadd.f32 %v3826, %v3908
    %v3910 = vpop.f32.mrb[0].mxu0
    %3911 = vdwg.mxu0
    %3912 = vmatprep.subr.mxu0 0.0
    %v3913 = vand.u32 %v58, 4294901760
    %3914 = vmatpush1.msra.mxu0 %v3913
    %3915 = vmatprep.subr.mxu0 0.0
    %v3916 = vand.u32 %v59, 4294901760
    %3917 = vmatpush1.msra.mxu0 %v3916
    %3918 = vmatprep.subr.mxu0 0.0
    %3919 = vmatpush1.msra.mxu0 0.0
    %3920 = vmatprep.subr.mxu0 0.0
    %3921 = vmatpush1.msra.mxu0 0.0
    %3922 = vmatprep.subr.mxu0 0.0
    %3923 = vmatpush1.msra.mxu0 0.0
    %3924 = vmatprep.subr.mxu0 0.0
    %3925 = vmatpush1.msra.mxu0 0.0
    %3926 = vmatprep.subr.mxu0 0.0
    %3927 = vmatpush1.msra.mxu0 0.0
    %3928 = vmatprep.subr.mxu0 0.0
    %3929 = vmatpush1.msra.mxu0 0.0
    %3930 = vmatprep.subr.mxu0 0.0
    %3931 = vmatpush1.msra.mxu0 0.0
    %3932 = vmatprep.subr.mxu0 0.0
    %3933 = vmatpush1.msra.mxu0 0.0
    %3934 = vmatprep.subr.mxu0 0.0
    %3935 = vmatpush1.msra.mxu0 0.0
    %3936 = vmatprep.subr.mxu0 0.0
    %3937 = vmatpush1.msra.mxu0 0.0
    %3938 = vmatprep.subr.mxu0 0.0
    %3939 = vmatpush1.msra.mxu0 0.0
    %3940 = vmatprep.subr.mxu0 0.0
    %3941 = vmatpush1.msra.mxu0 0.0
    %3942 = vmatprep.subr.mxu0 0.0
    %3943 = vmatpush1.msra.mxu0 0.0
    %3944 = vmatprep.subr.mxu0 0.0
    %3945 = vmatpush1.msra.mxu0 0.0
    %3946 = vmatprep.subr.mxu0 0.0
    %3947 = vmatpush1.msra.mxu0 0.0
    %3948 = vmatprep.subr.mxu0 0.0
    %3949 = vmatpush1.msra.mxu0 0.0
    %3950 = vmatprep.subr.mxu0 0.0
    %3951 = vmatpush1.msra.mxu0 0.0
    %3952 = vmatprep.subr.mxu0 0.0
    %3953 = vmatpush1.msra.mxu0 0.0
    %3954 = vmatprep.subr.mxu0 0.0
    %3955 = vmatpush1.msra.mxu0 0.0
    %3956 = vmatprep.subr.mxu0 0.0
    %3957 = vmatpush1.msra.mxu0 0.0
    %3958 = vmatprep.subr.mxu0 0.0
    %3959 = vmatpush1.msra.mxu0 0.0
    %3960 = vmatprep.subr.mxu0 0.0
    %3961 = vmatpush1.msra.mxu0 0.0
    %3962 = vmatprep.subr.mxu0 0.0
    %3963 = vmatpush1.msra.mxu0 0.0
    %3964 = vmatprep.subr.mxu0 0.0
    %3965 = vmatpush1.msra.mxu0 0.0
    %3966 = vmatprep.subr.mxu0 0.0
    %3967 = vmatpush1.msra.mxu0 0.0
    %3968 = vmatprep.subr.mxu0 0.0
    %3969 = vmatpush1.msra.mxu0 0.0
    %3970 = vmatprep.subr.mxu0 0.0
    %3971 = vmatpush1.msra.mxu0 0.0
    %3972 = vmatprep.subr.mxu0 0.0
    %3973 = vmatpush1.msra.mxu0 0.0
    %3974 = vmatprep.subr.mxu0 0.0
    %3975 = vmatpush1.msra.mxu0 0.0
    %3976 = vmatprep.subr.mxu0 0.0
    %3977 = vmatpush1.msra.mxu0 0.0
    %3978 = vmatprep.mubr.f32.mxu0 0.0
    %v3979 = vand.u32 %v3650, 4294901760
    %v3980 = vsub.f32 %v3650, %v3979
    %v3981 = vand.u32 %v3980, 4294901760
    %3982 = vmatmul.mubr.f32.gmra.mrb[0].mxu0 %v3981
    %v3983 = vpop.f32.mrb[0].mxu0
    %v3984 = vadd.f32 %v3902, %v3983
    %v3985 = vpop.f32.mrb[0].mxu0
    %3986 = vmatprep.mubr.f32.mxu0 0.0
    %v3987 = vand.u32 %v3653, 4294901760
    %v3988 = vsub.f32 %v3653, %v3987
    %v3989 = vand.u32 %v3988, 4294901760
    %3990 = vmatmul.mubr.f32.gmra.mrb[0].mxu0 %v3989
    %v3991 = vpop.f32.mrb[0].mxu0
    %v3992 = vadd.f32 %v3909, %v3991
    %v3993 = vpop.f32.mrb[0].mxu0
    %3994 = vdwg.mxu0
    %3995 = vmatprep.subr.mxu0 0.0
    %v3996 = vand.u32 %v58, 4294901760
    %v3997 = vsub.f32 %v58, %v3996
    %v3998 = vand.u32 %v3997, 4294901760
    %3999 = vmatpush1.msra.mxu0 %v3998
    %4000 = vmatprep.subr.mxu0 0.0
    %v4001 = vand.u32 %v59, 4294901760
    %v4002 = vsub.f32 %v59, %v4001
    %v4003 = vand.u32 %v4002, 4294901760
    %4004 = vmatpush1.msra.mxu0 %v4003
    %4005 = vmatprep.subr.mxu0 0.0
    %4006 = vmatpush1.msra.mxu0 0.0
    %4007 = vmatprep.subr.mxu0 0.0
    %4008 = vmatpush1.msra.mxu0 0.0
    %4009 = vmatprep.subr.mxu0 0.0
    %4010 = vmatpush1.msra.mxu0 0.0
    %4011 = vmatprep.subr.mxu0 0.0
    %4012 = vmatpush1.msra.mxu0 0.0
    %4013 = vmatprep.subr.mxu0 0.0
    %4014 = vmatpush1.msra.mxu0 0.0
    %4015 = vmatprep.subr.mxu0 0.0
    %4016 = vmatpush1.msra.mxu0 0.0
    %4017 = vmatprep.subr.mxu0 0.0
    %4018 = vmatpush1.msra.mxu0 0.0
    %4019 = vmatprep.subr.mxu0 0.0
    %4020 = vmatpush1.msra.mxu0 0.0
    %4021 = vmatprep.subr.mxu0 0.0
    %4022 = vmatpush1.msra.mxu0 0.0
    %4023 = vmatprep.subr.mxu0 0.0
    %4024 = vmatpush1.msra.mxu0 0.0
    %4025 = vmatprep.subr.mxu0 0.0
    %4026 = vmatpush1.msra.mxu0 0.0
    %4027 = vmatprep.subr.mxu0 0.0
    %4028 = vmatpush1.msra.mxu0 0.0
    %4029 = vmatprep.subr.mxu0 0.0
    %4030 = vmatpush1.msra.mxu0 0.0
    %4031 = vmatprep.subr.mxu0 0.0
    %4032 = vmatpush1.msra.mxu0 0.0
    %4033 = vmatprep.subr.mxu0 0.0
    %4034 = vmatpush1.msra.mxu0 0.0
    %4035 = vmatprep.subr.mxu0 0.0
    %4036 = vmatpush1.msra.mxu0 0.0
    %4037 = vmatprep.subr.mxu0 0.0
    %4038 = vmatpush1.msra.mxu0 0.0
    %4039 = vmatprep.subr.mxu0 0.0
    %4040 = vmatpush1.msra.mxu0 0.0
    %4041 = vmatprep.subr.mxu0 0.0
    %4042 = vmatpush1.msra.mxu0 0.0
    %4043 = vmatprep.subr.mxu0 0.0
    %4044 = vmatpush1.msra.mxu0 0.0
    %4045 = vmatprep.subr.mxu0 0.0
    %4046 = vmatpush1.msra.mxu0 0.0
    %4047 = vmatprep.subr.mxu0 0.0
    %4048 = vmatpush1.msra.mxu0 0.0
    %4049 = vmatprep.subr.mxu0 0.0
    %4050 = vmatpush1.msra.mxu0 0.0
    %4051 = vmatprep.subr.mxu0 0.0
    %4052 = vmatpush1.msra.mxu0 0.0
    %4053 = vmatprep.subr.mxu0 0.0
    %4054 = vmatpush1.msra.mxu0 0.0
    %4055 = vmatprep.subr.mxu0 0.0
    %4056 = vmatpush1.msra.mxu0 0.0
    %4057 = vmatprep.subr.mxu0 0.0
    %4058 = vmatpush1.msra.mxu0 0.0
    %4059 = vmatprep.subr.mxu0 0.0
    %4060 = vmatpush1.msra.mxu0 0.0
    %4061 = vmatprep.subr.mxu0 0.0
    %4062 = vmatpush1.msra.mxu0 0.0
    %4063 = vmatprep.subr.mxu0 0.0
    %4064 = vmatpush1.msra.mxu0 0.0
    %4065 = vmatprep.mubr.f32.mxu0 0.0
    %v4066 = vand.u32 %v3650, 4294901760
    %4067 = vmatmul.mubr.f32.gmra.mrb[0].mxu0 %v4066
    %v4068 = vpop.f32.mrb[0].mxu0
    %v4069 = vadd.f32 %v3984, %v4068
    %v4070 = vpop.f32.mrb[0].mxu0
    %4071 = vmatprep.mubr.f32.mxu0 0.0
    %v4072 = vand.u32 %v3653, 4294901760
    %4073 = vmatmul.mubr.f32.gmra.mrb[0].mxu0 %v4072
    %v4074 = vpop.f32.mrb[0].mxu0
    %v4075 = vadd.f32 %v3992, %v4074
    %v4076 = vpop.f32.mrb[0].mxu0
    %4077 = vdwg.mxu0
    %4078 = vmatprep.subr.mxu0 0.0
    %v4079 = vand.u32 %v58, 4294901760
    %4080 = vmatpush1.msra.mxu0 %v4079
    %4081 = vmatprep.subr.mxu0 0.0
    %v4082 = vand.u32 %v59, 4294901760
    %4083 = vmatpush1.msra.mxu0 %v4082
    %4084 = vmatprep.subr.mxu0 0.0
    %4085 = vmatpush1.msra.mxu0 0.0
    %4086 = vmatprep.subr.mxu0 0.0
    %4087 = vmatpush1.msra.mxu0 0.0
    %4088 = vmatprep.subr.mxu0 0.0
    %4089 = vmatpush1.msra.mxu0 0.0
    %4090 = vmatprep.subr.mxu0 0.0
    %4091 = vmatpush1.msra.mxu0 0.0
    %4092 = vmatprep.subr.mxu0 0.0
    %4093 = vmatpush1.msra.mxu0 0.0
    %4094 = vmatprep.subr.mxu0 0.0
    %4095 = vmatpush1.msra.mxu0 0.0
    %4096 = vmatprep.subr.mxu0 0.0
    %4097 = vmatpush1.msra.mxu0 0.0
    %4098 = vmatprep.subr.mxu0 0.0
    %4099 = vmatpush1.msra.mxu0 0.0
    %4100 = vmatprep.subr.mxu0 0.0
    %4101 = vmatpush1.msra.mxu0 0.0
    %4102 = vmatprep.subr.mxu0 0.0
    %4103 = vmatpush1.msra.mxu0 0.0
    %4104 = vmatprep.subr.mxu0 0.0
    %4105 = vmatpush1.msra.mxu0 0.0
    %4106 = vmatprep.subr.mxu0 0.0
    %4107 = vmatpush1.msra.mxu0 0.0
    %4108 = vmatprep.subr.mxu0 0.0
    %4109 = vmatpush1.msra.mxu0 0.0
    %4110 = vmatprep.subr.mxu0 0.0
    %4111 = vmatpush1.msra.mxu0 0.0
    %4112 = vmatprep.subr.mxu0 0.0
    %4113 = vmatpush1.msra.mxu0 0.0
    %4114 = vmatprep.subr.mxu0 0.0
    %4115 = vmatpush1.msra.mxu0 0.0
    %4116 = vmatprep.subr.mxu0 0.0
    %4117 = vmatpush1.msra.mxu0 0.0
    %4118 = vmatprep.subr.mxu0 0.0
    %4119 = vmatpush1.msra.mxu0 0.0
    %4120 = vmatprep.subr.mxu0 0.0
    %4121 = vmatpush1.msra.mxu0 0.0
    %4122 = vmatprep.subr.mxu0 0.0
    %4123 = vmatpush1.msra.mxu0 0.0
    %4124 = vmatprep.subr.mxu0 0.0
    %4125 = vmatpush1.msra.mxu0 0.0
    %4126 = vmatprep.subr.mxu0 0.0
    %4127 = vmatpush1.msra.mxu0 0.0
    %4128 = vmatprep.subr.mxu0 0.0
    %4129 = vmatpush1.msra.mxu0 0.0
    %4130 = vmatprep.subr.mxu0 0.0
    %4131 = vmatpush1.msra.mxu0 0.0
    %4132 = vmatprep.subr.mxu0 0.0
    %4133 = vmatpush1.msra.mxu0 0.0
    %4134 = vmatprep.subr.mxu0 0.0
    %4135 = vmatpush1.msra.mxu0 0.0
    %4136 = vmatprep.subr.mxu0 0.0
    %4137 = vmatpush1.msra.mxu0 0.0
    %4138 = vmatprep.subr.mxu0 0.0
    %4139 = vmatpush1.msra.mxu0 0.0
    %4140 = vmatprep.subr.mxu0 0.0
    %4141 = vmatpush1.msra.mxu0 0.0
    %4142 = vmatprep.subr.mxu0 0.0
    %4143 = vmatpush1.msra.mxu0 0.0
    %4144 = vmatprep.mubr.f32.mxu0 0.0
    %v4145 = vand.u32 %v3650, 4294901760
    %4146 = vmatmul.mubr.f32.gmra.mrb[0].mxu0 %v4145
    %v4147 = vpop.f32.mrb[0].mxu0
    %v4148 = vadd.f32 %v4069, %v4147
    %v4149 = vpop.f32.mrb[0].mxu0
    %4150 = vmatprep.mubr.f32.mxu0 0.0
    %v4151 = vand.u32 %v3653, 4294901760
    %4152 = vmatmul.mubr.f32.gmra.mrb[0].mxu0 %v4151
    %v4153 = vpop.f32.mrb[0].mxu0
    %v4154 = vadd.f32 %v4075, %v4153
    %v4155 = vpop.f32.mrb[0].mxu0
    %4156 = vdwg.mxu0
    %v4157 = vadd.f32 %v3644, %v4148
    %v4158 = vadd.f32 %v3645, %v4154
    %s4159 = scalar_lea.vmem [#allocation5], 16
    %4160 = vst.msk [vmem:[%s4159] sm:$0xff] %vm2108, %v4157
    %4161 = vst.msk [vmem:[%s4159 + $0x8] sm:$0xff] %vm2108, %v4158
    // Predicated region
    $region10: #{tpu_custom_call.1} parent=1 // pred_check
      _
    $region11: #{tpu_custom_call.1} parent=1 // pred_check_branch
      %4163 = sbr.rel (0) target = $region13
    $region12: #{tpu_custom_call.1} parent=1 // pred_region
      %s4165 = ssub.s32 512, 512
      %4166 = vsyncadd [#allocation4], %s4165
      %s4167 = sshll.u32 [#allocation5], 4
      %s4168 = int_to_ptr.vmem [resolvable:$true] %s4167
      %4173 = dma.vmem_to_hbm [thread:$0]  %s4168, 512, %s1, [#allocation4], 128, 128, 8
    $region13: #{tpu_custom_call.1} parent=1 // pred_fallthru
      _
    // Predicated region
    $region14: #{tpu_custom_call.1} parent=1 // pred_check
      _
    $region15: #{tpu_custom_call.1} parent=1 // pred_check_branch
      %4175 = sbr.rel (0) target = $region17
    $region16: #{tpu_custom_call.1} parent=1 // pred_region
      %4176 = dma.done [#allocation4], 512
    $region17: #{tpu_custom_call.1} parent=1 // pred_fallthru
      _
    %4177 = vsyncpa [#allocation3], 1
    %4178 = vsyncpa [#allocation4], 1

</llo_original>
